<compile_context>
chip_gen: v7x
topology: tpu7x:2x2x1
jax: 0.10.0
libtpu: 0.0.40
codegen_flags: <defaults>
</compile_context>

<pallas_src>
import functools
import numpy as np
import jax
import jax.numpy as jnp
from jax.experimental import pallas as pl
from jax.experimental.pallas import tpu as pltpu

NUM_CLASSES = 80
TM_MAX = 512  # max row tile for the fused matmul kernel


def _round_up(v, m):
    return ((v + m - 1) // m) * m


# --------------------------------------------------------------------------- #
# Pallas kernel: fused (patches @ weights) + bias -> activation                 #
#   x: bf16 [TM, Kp]   w: bf16 [Kp, Np]   bias: f32 [1, Np]   out: f32 [TM, Np] #
# --------------------------------------------------------------------------- #
def _fused_matmul_kernel(x_ref, w_ref, bias_ref, o_ref, *, act):
    y = jnp.dot(x_ref[...], w_ref[...], preferred_element_type=jnp.float32)
    y = y + bias_ref[...]                      # f32 epilogue (v5e-safe)
    if act == "silu":
        y = y * jax.nn.sigmoid(y)
    elif act == "sigmoid":
        y = jax.nn.sigmoid(y)
    elif act == "pred":
        # fused head prediction: cols 0..3 = reg (identity), cols >=4 = obj/cls (sigmoid)
        col = jax.lax.broadcasted_iota(jnp.int32, y.shape, dimension=1)
        y = jnp.where(col >= 4, jax.nn.sigmoid(y), y)
    # act == "none": identity
    o_ref[...] = y.astype(o_ref.dtype)


def fused_matmul(x, w, bias, act, n_valid):
    """act((x @ w) + bias). x:[M,Kp] f32, w:[Kp,Np] bf16, bias:[1,Np] f32.
    Kp, Np are already multiples of 128. Returns f32 [M, n_valid]."""
    M, Kp = x.shape
    Np = w.shape[1]

    tm = min(TM_MAX, _round_up(M, 128))
    Mp = _round_up(M, tm)
    if Mp // tm == 1 and tm >= 256:
        tm //= 2  # give v7x megacore >=2 parallel grid steps for mid-size layers

    if Mp != M:
        x = jnp.pad(x, ((0, Mp - M), (0, 0)))
    x = x.astype(jnp.bfloat16)  # MXU-native inputs; f32 accumulation inside kernel

    out = pl.pallas_call(
        functools.partial(_fused_matmul_kernel, act=act),
        out_shape=jax.ShapeDtypeStruct((Mp, Np), jnp.float32),
        grid_spec=pltpu.PrefetchScalarGridSpec(
            num_scalar_prefetch=0,
            grid=(Mp // tm,),
            in_specs=[
                pl.BlockSpec((tm, Kp), lambda i: (i, 0)),
                pl.BlockSpec((Kp, Np), lambda i: (0, 0)),
                pl.BlockSpec((1, Np), lambda i: (0, 0)),
            ],
            out_specs=pl.BlockSpec((tm, Np), lambda i: (i, 0)),
        ),
        compiler_params=pltpu.CompilerParams(
            dimension_semantics=("parallel",),
            vmem_limit_bytes=32 * 1024 * 1024,  # explicit budget (fits v7x 64 MiB VMEM)
        ),
    )(x, w, bias)
    return out[:M, :n_valid]


# --------------------------------------------------------------------------- #
# Glue: im2col (3x3 only), conv application, upsample                          #
# --------------------------------------------------------------------------- #
def im2col(x, k, stride, pad, kp):
    """x: [N,H,W,C] -> patches [N*Ho*Wo, kp] (row-major over (ki,kj,c), zero-padded K)."""
    N, H, W, C = x.shape
    if pad:
        x = jnp.pad(x, ((0, 0), (pad, pad), (pad, pad), (0, 0)))
    Ho = (H + 2 * pad - k) // stride + 1
    Wo = (W + 2 * pad - k) // stride + 1
    cols = []
    for i in range(k):
        for j in range(k):
            cols.append(x[:, i:i + stride * Ho:stride, j:j + stride * Wo:stride, :])
    patches = jnp.concatenate(cols, axis=-1).reshape(N * Ho * Wo, k * k * C)
    if kp > k * k * C:
        patches = jnp.pad(patches, ((0, 0), (0, kp - k * k * C)))
    return patches, (N, Ho, Wo)


def conv_apply(x, pc, stride=1):
    """Apply a prepped conv (Conv2d + folded BN + act) to NHWC x."""
    k = pc["k"]
    kp = pc["wmat"].shape[0]
    if k == 1 and stride == 1:
        # 1x1 conv fast path: no im2col, just a reshape (+ K pad)
        N, H, W, C = x.shape
        patches = x.reshape(N * H * W, C)
        if kp > C:
            patches = jnp.pad(patches, ((0, 0), (0, kp - C)))
        Ho, Wo = H, W
    else:
        patches, (N, Ho, Wo) = im2col(x, k, stride, (k - 1) // 2, kp)
    y = fused_matmul(patches, pc["wmat"], pc["bias"], pc["act"], pc["cout"])
    return y.reshape(N, Ho, Wo, pc["cout"])


def upsample2x(x):  # nn.Upsample(scale_factor=2, mode="nearest")
    return jnp.repeat(jnp.repeat(x, 2, axis=1), 2, axis=2)


# --------------------------------------------------------------------------- #
# Deterministic raw-parameter init (identical to the PyTorch-style reference)   #
# --------------------------------------------------------------------------- #
def init_base_conv(key, cin, cout, k):
    w = jax.random.normal(key, (cout, cin, k, k), jnp.float32) / np.sqrt(cin * k * k)
    # BatchNorm2d(eps=1e-3) default init, eval mode, folded into scale/bias.
    scale = jnp.full((cout,), 1.0 / np.sqrt(1.0 + 1e-3), jnp.float32)
    bias = jnp.zeros((cout,), jnp.float32)
    return {"w": w, "scale": scale, "bias": bias}


def init_pred_conv(key, cin, cout):
    kw, kb = jax.random.split(key)
    w = jax.random.normal(kw, (cout, cin, 1, 1), jnp.float32) / np.sqrt(cin)
    b = jax.random.normal(kb, (cout,), jnp.float32) * 0.01
    return {"w": w, "scale": jnp.ones((cout,), jnp.float32), "bias": b}


def init_params():
    keys = iter(jax.random.split(jax.random.PRNGKey(0), 64))
    p = {}
    # ---- CSPDarknet backbone (width-scaled; CSP layers -> single BaseConv) ----
    p["stem"] = init_base_conv(next(keys), 12, 4, 3)          # Focus conv
    p["dark2_down"] = init_base_conv(next(keys), 4, 8, 3)     # stride 2
    p["dark2_csp"] = init_base_conv(next(keys), 8, 8, 3)
    p["dark3_down"] = init_base_conv(next(keys), 8, 16, 3)
    p["dark3_csp"] = init_base_conv(next(keys), 16, 16, 3)
    p["dark4_down"] = init_base_conv(next(keys), 16, 32, 3)
    p["dark4_csp"] = init_base_conv(next(keys), 32, 32, 3)
    p["dark5_down"] = init_base_conv(next(keys), 32, 64, 3)
    p["dark5_csp"] = init_base_conv(next(keys), 64, 64, 3)
    # ---- PAFPN ----
    p["lateral_conv0"] = init_base_conv(next(keys), 64, 32, 1)
    p["C3_p4"] = init_base_conv(next(keys), 64, 32, 3)
    p["reduce_conv1"] = init_base_conv(next(keys), 32, 16, 1)
    p["C3_p3"] = init_base_conv(next(keys), 32, 16, 3)
    p["bu_conv2"] = init_base_conv(next(keys), 16, 16, 3)
    p["C3_n3"] = init_base_conv(next(keys), 32, 32, 3)
    p["bu_conv1"] = init_base_conv(next(keys), 32, 32, 3)
    p["C3_n4"] = init_base_conv(next(keys), 64, 64, 3)
    # ---- YOLOXHead (decoupled) ----
    head = []
    for cin in (16, 32, 64):
        head.append({
            "stem": init_base_conv(next(keys), cin, 16, 1),
            "cls_conv0": init_base_conv(next(keys), 16, 16, 3),
            "cls_conv1": init_base_conv(next(keys), 16, 16, 3),
            "reg_conv0": init_base_conv(next(keys), 16, 16, 3),
            "reg_conv1": init_base_conv(next(keys), 16, 16, 3),
            "cls_pred": init_pred_conv(next(keys), 16, NUM_CLASSES),
            "reg_pred": init_pred_conv(next(keys), 16, 4),
            "obj_pred": init_pred_conv(next(keys), 16, 1),
        })
    p["head"] = head
    return p


# --------------------------------------------------------------------------- #
# Parameter prep: fold BN scale into weight, pad K/N to 128, cast to bf16,      #
# and build the fused (paired / block-diagonal) head weights.                   #
# --------------------------------------------------------------------------- #
def prep_conv(prm, act="silu"):
    w = prm["w"] * prm["scale"][:, None, None, None]  # fold BN scale (free at prep time)
    cout, cin, k, _ = w.shape
    wmat = jnp.transpose(w, (2, 3, 1, 0)).reshape(k * k * cin, cout)
    Kp = _round_up(k * k * cin, 128)
    Np = _round_up(cout, 128)
    wmat = jnp.pad(wmat, ((0, Kp - k * k * cin), (0, Np - cout))).astype(jnp.bfloat16)
    bias = jnp.pad(prm["bias"], (0, Np - cout)).reshape(1, Np).astype(jnp.float32)
    return {"wmat": wmat, "bias": bias, "k": k, "cout": cout, "act": act}


def prep_head_level(lvl):
    out = {"stem": prep_conv(lvl["stem"], "silu")}
    # pair0: cls_conv0 and reg_conv0 share the same input -> concat along Cout.
    w0 = jnp.concatenate([lvl["cls_conv0"]["w"], lvl["reg_conv0"]["w"]], axis=0)
    s0 = jnp.concatenate([lvl["cls_conv0"]["scale"], lvl["reg_conv0"]["scale"]])
    b0 = jnp.concatenate([lvl["cls_conv0"]["bias"], lvl["reg_conv0"]["bias"]])
    out["pair0"] = prep_conv({"w": w0, "scale": s0, "bias": b0}, "silu")
    # pair1: block-diagonal over the (cls, reg) channel halves.
    w1 = jnp.zeros((32, 32, 3, 3), jnp.float32)
    w1 = w1.at[:16, :16].set(lvl["cls_conv1"]["w"]).at[16:, 16:].set(lvl["reg_conv1"]["w"])
    s1 = jnp.concatenate([lvl["cls_conv1"]["scale"], lvl["reg_conv1"]["scale"]])
    b1 = jnp.concatenate([lvl["cls_conv1"]["bias"], lvl["reg_conv1"]["bias"]])
    out["pair1"] = prep_conv({"w": w1, "scale": s1, "bias": b1}, "silu")
    # fused prediction: reg(4)+obj(1) read the reg half (chans 16:32),
    # cls(80) reads the cls half (chans 0:16). Output order [reg, obj, cls].
    wp = jnp.zeros((5 + NUM_CLASSES, 32, 1, 1), jnp.float32)
    wp = wp.at[0:4, 16:32].set(lvl["reg_pred"]["w"])
    wp = wp.at[4:5, 16:32].set(lvl["obj_pred"]["w"])
    wp = wp.at[5:, 0:16].set(lvl["cls_pred"]["w"])
    sp = jnp.concatenate([lvl["reg_pred"]["scale"], lvl["obj_pred"]["scale"],
                          lvl["cls_pred"]["scale"]])
    bp = jnp.concatenate([lvl["reg_pred"]["bias"], lvl["obj_pred"]["bias"],
                          lvl["cls_pred"]["bias"]])
    out["pred"] = prep_conv({"w": wp, "scale": sp, "bias": bp}, "pred")
    return out


def prep_params(p):
    q = {}
    for name in ["stem", "dark2_down", "dark2_csp", "dark3_down", "dark3_csp",
                 "dark4_down", "dark4_csp", "dark5_down", "dark5_csp",
                 "lateral_conv0", "C3_p4", "reduce_conv1", "C3_p3", "bu_conv2",
                 "C3_n3", "bu_conv1", "C3_n4"]:
        q[name] = prep_conv(p[name], "silu")
    q["head"] = [prep_head_level(lvl) for lvl in p["head"]]
    return q


# --------------------------------------------------------------------------- #
# Forward: backbone -> PAFPN -> head -> decode                                  #
# --------------------------------------------------------------------------- #
def backbone_forward(p, x):
    # Focus: space-to-depth (H/2, W/2, 4C) then BaseConv
    tl, bl = x[:, ::2, ::2, :], x[:, 1::2, ::2, :]
    tr, br = x[:, ::2, 1::2, :], x[:, 1::2, 1::2, :]
    x = jnp.concatenate([tl, bl, tr, br], axis=-1)
    x = conv_apply(x, p["stem"], 1)
    x = conv_apply(x, p["dark2_down"], 2); x = conv_apply(x, p["dark2_csp"], 1)
    x = conv_apply(x, p["dark3_down"], 2); c3 = conv_apply(x, p["dark3_csp"], 1)
    x = conv_apply(c3, p["dark4_down"], 2); c4 = conv_apply(x, p["dark4_csp"], 1)
    x = conv_apply(c4, p["dark5_down"], 2); c5 = conv_apply(x, p["dark5_csp"], 1)
    return c3, c4, c5  # strides 8, 16, 32


def pafpn_forward(p, x):
    c3, c4, c5 = backbone_forward(p, x)
    fpn_out0 = conv_apply(c5, p["lateral_conv0"], 1)                                   # /32
    f_out0 = conv_apply(jnp.concatenate([upsample2x(fpn_out0), c4], -1), p["C3_p4"], 1)
    fpn_out1 = conv_apply(f_out0, p["reduce_conv1"], 1)                                # /16
    pan_out2 = conv_apply(jnp.concatenate([upsample2x(fpn_out1), c3], -1), p["C3_p3"], 1)
    d2 = conv_apply(pan_out2, p["bu_conv2"], 2)
    pan_out1 = conv_apply(jnp.concatenate([d2, fpn_out1], -1), p["C3_n3"], 1)
    d1 = conv_apply(pan_out1, p["bu_conv1"], 2)
    pan_out0 = conv_apply(jnp.concatenate([d1, fpn_out0], -1), p["C3_n4"], 1)
    return pan_out2, pan_out1, pan_out0  # strides 8, 16, 32


def head_forward(p_head, fpn_outs, strides=(8, 16, 32)):
    per_level, hws = [], []
    for lvl, feat in zip(p_head, fpn_outs):
        x = conv_apply(feat, lvl["stem"], 1)
        f = conv_apply(x, lvl["pair0"], 1)    # [N,h,w,32]: (cls_feat0 ‖ reg_feat0)
        f = conv_apply(f, lvl["pair1"], 1)    # [N,h,w,32]: (cls_feat1 ‖ reg_feat1)
        out = conv_apply(f, lvl["pred"], 1)   # [N,h,w,85]: reg, sigmoid(obj), sigmoid(cls)
        N, h, w, C = out.shape
        hws.append((h, w))
        per_level.append(out.reshape(N, h * w, C))
    outputs = jnp.concatenate(per_level, axis=1)                       # [N, A, 85]

    # decode_outputs (eval path, decode_in_inference=True)
    grids, strs = [], []
    for (h, w), s in zip(hws, strides):
        yv, xv = jnp.meshgrid(jnp.arange(h), jnp.arange(w), indexing="ij")
        grids.append(jnp.stack((xv, yv), axis=2).reshape(1, h * w, 2).astype(jnp.float32))
        strs.append(jnp.full((1, h * w, 1), float(s), jnp.float32))
    grids = jnp.concatenate(grids, axis=1)
    strs = jnp.concatenate(strs, axis=1)
    xy = (outputs[..., :2] + grids) * strs
    wh = jnp.exp(outputs[..., 2:4]) * strs
    return jnp.concatenate([xy, wh, outputs[..., 4:]], axis=-1)


def yolox_forward(params, x_nchw):
    x = jnp.transpose(x_nchw, (0, 2, 3, 1))  # NCHW -> NHWC
    fpn_outs = pafpn_forward(params, x)
    return head_forward(params["head"], fpn_outs)


# --------------------------------------------------------------------------- #
if __name__ == "__main__":
    raw_params = init_params()
    params = prep_params(raw_params)   # fold BN, pad, bf16-cast, build fused head weights
    x = jax.random.normal(jax.random.PRNGKey(0), (2, 3, 64, 64), jnp.float32)  # NCHW
    fwd = jax.jit(lambda inp: yolox_forward(params, inp))
    out = jax.block_until_ready(fwd(x))
    # 64x64 input -> anchors: 8*8 + 4*4 + 2*2 = 84 ; channels 4+1+80 = 85
    assert out.shape == (2, 84, 5 + NUM_CLASSES), out.shape
    assert bool(jnp.all(jnp.isfinite(out)))
    print("KERNEL_OK")
</pallas_src>

<mosaic_0001>
module attributes {stable_mosaic.version = 11 : i64} {
  func.func @_fused_matmul_kernel(%arg0: i32, %arg1: memref<512x128xbf16, #tpu.memory_space<vmem>>, %arg2: memref<128x128xbf16, #tpu.memory_space<vmem>>, %arg3: memref<1x128xf32, #tpu.memory_space<vmem>>, %arg4: memref<512x128xf32, #tpu.memory_space<vmem>>) attributes {dimension_semantics = [#tpu.dimension_semantics<parallel>], iteration_bounds = array<i64: 4>, scalar_prefetch = 0 : i64, scratch_operands = 0 : i64, tpu.core_type = #tpu.core_type<tc>, window_params = [{transform_indices = @transform_0, window_bounds = array<i64: 512, 128>}, {pipeline_mode = #tpu.pipeline_mode<synchronous>, transform_indices = @transform_1, window_bounds = array<i64: 128, 128>}, {pipeline_mode = #tpu.pipeline_mode<synchronous>, transform_indices = @transform_2, window_bounds = array<i64: 1, 128>}, {transform_indices = @transform_3, window_bounds = array<i64: 512, 128>}]} {
    %c0 = arith.constant 0 : index
    %c0_0 = arith.constant 0 : index
    %0 = vector.load %arg1[%c0, %c0_0] : memref<512x128xbf16, #tpu.memory_space<vmem>>, vector<512x128xbf16>
    %c0_1 = arith.constant 0 : index
    %c0_2 = arith.constant 0 : index
    %1 = vector.load %arg2[%c0_1, %c0_2] : memref<128x128xbf16, #tpu.memory_space<vmem>>, vector<128x128xbf16>
    %cst = arith.constant dense<0.000000e+00> : vector<512x128xf32>
    %2 = tpu.matmul %0, %1, %cst {dimension_numbers = #tpu.dot_dimension_numbers<[1], [0], [0], [1], [0, 0, 1, 1], [], []>} : vector<512x128xbf16>, vector<128x128xbf16>, vector<512x128xf32> -> vector<512x128xf32>
    %c0_3 = arith.constant 0 : index
    %c0_4 = arith.constant 0 : index
    %3 = vector.load %arg3[%c0_3, %c0_4] : memref<1x128xf32, #tpu.memory_space<vmem>>, vector<1x128xf32>
    %4 = vector.broadcast %3 : vector<1x128xf32> to vector<512x128xf32>
    %5 = arith.addf %2, %4 : vector<512x128xf32>
    %6 = arith.negf %5 : vector<512x128xf32>
    %7 = math.exp %6 : vector<512x128xf32>
    %cst_5 = arith.constant 1.000000e+00 : f32
    %8 = vector.broadcast %cst_5 : f32 to vector<512x128xf32>
    %9 = arith.addf %8, %7 : vector<512x128xf32>
    %10 = arith.divf %8, %9 : vector<512x128xf32>
    %11 = arith.mulf %5, %10 : vector<512x128xf32>
    %c0_6 = arith.constant 0 : index
    %c0_7 = arith.constant 0 : index
    %12 = vector.load %arg4[%c0_6, %c0_7] : memref<512x128xf32, #tpu.memory_space<vmem>>, vector<512x128xf32>
    tpu.vector_store %arg4[%c0_6, %c0_7], %11 {strides = array<i32>} : memref<512x128xf32, #tpu.memory_space<vmem>>, vector<512x128xf32>,
    return
  }
  func.func @transform_0(%arg0: i32) -> (i32, i32) {
    %c0_i32 = arith.constant 0 : i32
    %c0_i32_0 = arith.constant 0 : i32
    return %arg0, %c0_i32 : i32, i32
  }
  func.func @transform_1(%arg0: i32) -> (i32, i32) {
    %c0_i32 = arith.constant 0 : i32
    %c0_i32_0 = arith.constant 0 : i32
    %c0_i32_1 = arith.constant 0 : i32
    return %c0_i32, %c0_i32_0 : i32, i32
  }
  func.func @transform_2(%arg0: i32) -> (i32, i32) {
    %c0_i32 = arith.constant 0 : i32
    %c0_i32_0 = arith.constant 0 : i32
    %c0_i32_1 = arith.constant 0 : i32
    return %c0_i32, %c0_i32_0 : i32, i32
  }
  func.func @transform_3(%arg0: i32) -> (i32, i32) {
    %c0_i32 = arith.constant 0 : i32
    %c0_i32_0 = arith.constant 0 : i32
    return %arg0, %c0_i32 : i32, i32
  }
}

module attributes {stable_mosaic.version = 11 : i64} {
  func.func @_fused_matmul_kernel(%arg0: i32, %arg1: memref<256x128xbf16, #tpu.memory_space<vmem>>, %arg2: memref<128x128xbf16, #tpu.memory_space<vmem>>, %arg3: memref<1x128xf32, #tpu.memory_space<vmem>>, %arg4: memref<256x128xf32, #tpu.memory_space<vmem>>) attributes {dimension_semantics = [#tpu.dimension_semantics<parallel>], iteration_bounds = array<i64: 2>, scalar_prefetch = 0 : i64, scratch_operands = 0 : i64, tpu.core_type = #tpu.core_type<tc>, window_params = [{transform_indices = @transform_0, window_bounds = array<i64: 256, 128>}, {pipeline_mode = #tpu.pipeline_mode<synchronous>, transform_indices = @transform_1, window_bounds = array<i64: 128, 128>}, {pipeline_mode = #tpu.pipeline_mode<synchronous>, transform_indices = @transform_2, window_bounds = array<i64: 1, 128>}, {transform_indices = @transform_3, window_bounds = array<i64: 256, 128>}]} {
    %c0 = arith.constant 0 : index
    %c0_0 = arith.constant 0 : index
    %0 = vector.load %arg1[%c0, %c0_0] : memref<256x128xbf16, #tpu.memory_space<vmem>>, vector<256x128xbf16>
    %c0_1 = arith.constant 0 : index
    %c0_2 = arith.constant 0 : index
    %1 = vector.load %arg2[%c0_1, %c0_2] : memref<128x128xbf16, #tpu.memory_space<vmem>>, vector<128x128xbf16>
    %cst = arith.constant dense<0.000000e+00> : vector<256x128xf32>
    %2 = tpu.matmul %0, %1, %cst {dimension_numbers = #tpu.dot_dimension_numbers<[1], [0], [0], [1], [0, 0, 1, 1], [], []>} : vector<256x128xbf16>, vector<128x128xbf16>, vector<256x128xf32> -> vector<256x128xf32>
    %c0_3 = arith.constant 0 : index
    %c0_4 = arith.constant 0 : index
    %3 = vector.load %arg3[%c0_3, %c0_4] : memref<1x128xf32, #tpu.memory_space<vmem>>, vector<1x128xf32>
    %4 = vector.broadcast %3 : vector<1x128xf32> to vector<256x128xf32>
    %5 = arith.addf %2, %4 : vector<256x128xf32>
    %6 = arith.negf %5 : vector<256x128xf32>
    %7 = math.exp %6 : vector<256x128xf32>
    %cst_5 = arith.constant 1.000000e+00 : f32
    %8 = vector.broadcast %cst_5 : f32 to vector<256x128xf32>
    %9 = arith.addf %8, %7 : vector<256x128xf32>
    %10 = arith.divf %8, %9 : vector<256x128xf32>
    %11 = arith.mulf %5, %10 : vector<256x128xf32>
    %c0_6 = arith.constant 0 : index
    %c0_7 = arith.constant 0 : index
    %12 = vector.load %arg4[%c0_6, %c0_7] : memref<256x128xf32, #tpu.memory_space<vmem>>, vector<256x128xf32>
    tpu.vector_store %arg4[%c0_6, %c0_7], %11 {strides = array<i32>} : memref<256x128xf32, #tpu.memory_space<vmem>>, vector<256x128xf32>,
    return
  }
  func.func @transform_0(%arg0: i32) -> (i32, i32) {
    %c0_i32 = arith.constant 0 : i32
    %c0_i32_0 = arith.constant 0 : i32
    return %arg0, %c0_i32 : i32, i32
  }
  func.func @transform_1(%arg0: i32) -> (i32, i32) {
    %c0_i32 = arith.constant 0 : i32
    %c0_i32_0 = arith.constant 0 : i32
    %c0_i32_1 = arith.constant 0 : i32
    return %c0_i32, %c0_i32_0 : i32, i32
  }
  func.func @transform_2(%arg0: i32) -> (i32, i32) {
    %c0_i32 = arith.constant 0 : i32
    %c0_i32_0 = arith.constant 0 : i32
    %c0_i32_1 = arith.constant 0 : i32
    return %c0_i32, %c0_i32_0 : i32, i32
  }
  func.func @transform_3(%arg0: i32) -> (i32, i32) {
    %c0_i32 = arith.constant 0 : i32
    %c0_i32_0 = arith.constant 0 : i32
    return %arg0, %c0_i32 : i32, i32
  }
}

module attributes {stable_mosaic.version = 11 : i64} {
  func.func @_fused_matmul_kernel(%arg0: i32, %arg1: memref<128x128xbf16, #tpu.memory_space<vmem>>, %arg2: memref<128x128xbf16, #tpu.memory_space<vmem>>, %arg3: memref<1x128xf32, #tpu.memory_space<vmem>>, %arg4: memref<128x128xf32, #tpu.memory_space<vmem>>) attributes {dimension_semantics = [#tpu.dimension_semantics<parallel>], iteration_bounds = array<i64: 1>, scalar_prefetch = 0 : i64, scratch_operands = 0 : i64, tpu.core_type = #tpu.core_type<tc>, window_params = [{transform_indices = @transform_0, window_bounds = array<i64: 128, 128>}, {pipeline_mode = #tpu.pipeline_mode<synchronous>, transform_indices = @transform_1, window_bounds = array<i64: 128, 128>}, {pipeline_mode = #tpu.pipeline_mode<synchronous>, transform_indices = @transform_2, window_bounds = array<i64: 1, 128>}, {transform_indices = @transform_3, window_bounds = array<i64: 128, 128>}]} {
    %c0 = arith.constant 0 : index
    %c0_0 = arith.constant 0 : index
    %0 = vector.load %arg1[%c0, %c0_0] : memref<128x128xbf16, #tpu.memory_space<vmem>>, vector<128x128xbf16>
    %c0_1 = arith.constant 0 : index
    %c0_2 = arith.constant 0 : index
    %1 = vector.load %arg2[%c0_1, %c0_2] : memref<128x128xbf16, #tpu.memory_space<vmem>>, vector<128x128xbf16>
    %cst = arith.constant dense<0.000000e+00> : vector<128x128xf32>
    %2 = tpu.matmul %0, %1, %cst {dimension_numbers = #tpu.dot_dimension_numbers<[1], [0], [0], [1], [0, 0, 1, 1], [], []>} : vector<128x128xbf16>, vector<128x128xbf16>, vector<128x128xf32> -> vector<128x128xf32>
    %c0_3 = arith.constant 0 : index
    %c0_4 = arith.constant 0 : index
    %3 = vector.load %arg3[%c0_3, %c0_4] : memref<1x128xf32, #tpu.memory_space<vmem>>, vector<1x128xf32>
    %4 = vector.broadcast %3 : vector<1x128xf32> to vector<128x128xf32>
    %5 = arith.addf %2, %4 : vector<128x128xf32>
    %6 = arith.negf %5 : vector<128x128xf32>
    %7 = math.exp %6 : vector<128x128xf32>
    %cst_5 = arith.constant 1.000000e+00 : f32
    %8 = vector.broadcast %cst_5 : f32 to vector<128x128xf32>
    %9 = arith.addf %8, %7 : vector<128x128xf32>
    %10 = arith.divf %8, %9 : vector<128x128xf32>
    %11 = arith.mulf %5, %10 : vector<128x128xf32>
    %c0_6 = arith.constant 0 : index
    %c0_7 = arith.constant 0 : index
    %12 = vector.load %arg4[%c0_6, %c0_7] : memref<128x128xf32, #tpu.memory_space<vmem>>, vector<128x128xf32>
    tpu.vector_store %arg4[%c0_6, %c0_7], %11 {strides = array<i32>} : memref<128x128xf32, #tpu.memory_space<vmem>>, vector<128x128xf32>,
    return
  }
  func.func @transform_0(%arg0: i32) -> (i32, i32) {
    %c0_i32 = arith.constant 0 : i32
    %c0_i32_0 = arith.constant 0 : i32
    return %arg0, %c0_i32 : i32, i32
  }
  func.func @transform_1(%arg0: i32) -> (i32, i32) {
    %c0_i32 = arith.constant 0 : i32
    %c0_i32_0 = arith.constant 0 : i32
    %c0_i32_1 = arith.constant 0 : i32
    return %c0_i32, %c0_i32_0 : i32, i32
  }
  func.func @transform_2(%arg0: i32) -> (i32, i32) {
    %c0_i32 = arith.constant 0 : i32
    %c0_i32_0 = arith.constant 0 : i32
    %c0_i32_1 = arith.constant 0 : i32
    return %c0_i32, %c0_i32_0 : i32, i32
  }
  func.func @transform_3(%arg0: i32) -> (i32, i32) {
    %c0_i32 = arith.constant 0 : i32
    %c0_i32_0 = arith.constant 0 : i32
    return %arg0, %c0_i32 : i32, i32
  }
}

module attributes {stable_mosaic.version = 11 : i64} {
  func.func @_fused_matmul_kernel(%arg0: i32, %arg1: memref<128x256xbf16, #tpu.memory_space<vmem>>, %arg2: memref<256x128xbf16, #tpu.memory_space<vmem>>, %arg3: memref<1x128xf32, #tpu.memory_space<vmem>>, %arg4: memref<128x128xf32, #tpu.memory_space<vmem>>) attributes {dimension_semantics = [#tpu.dimension_semantics<parallel>], iteration_bounds = array<i64: 1>, scalar_prefetch = 0 : i64, scratch_operands = 0 : i64, tpu.core_type = #tpu.core_type<tc>, window_params = [{transform_indices = @transform_0, window_bounds = array<i64: 128, 256>}, {pipeline_mode = #tpu.pipeline_mode<synchronous>, transform_indices = @transform_1, window_bounds = array<i64: 256, 128>}, {pipeline_mode = #tpu.pipeline_mode<synchronous>, transform_indices = @transform_2, window_bounds = array<i64: 1, 128>}, {transform_indices = @transform_3, window_bounds = array<i64: 128, 128>}]} {
    %c0 = arith.constant 0 : index
    %c0_0 = arith.constant 0 : index
    %0 = vector.load %arg1[%c0, %c0_0] : memref<128x256xbf16, #tpu.memory_space<vmem>>, vector<128x256xbf16>
    %c0_1 = arith.constant 0 : index
    %c0_2 = arith.constant 0 : index
    %1 = vector.load %arg2[%c0_1, %c0_2] : memref<256x128xbf16, #tpu.memory_space<vmem>>, vector<256x128xbf16>
    %cst = arith.constant dense<0.000000e+00> : vector<128x128xf32>
    %2 = tpu.matmul %0, %1, %cst {dimension_numbers = #tpu.dot_dimension_numbers<[1], [0], [0], [1], [0, 0, 1, 1], [], []>} : vector<128x256xbf16>, vector<256x128xbf16>, vector<128x128xf32> -> vector<128x128xf32>
    %c0_3 = arith.constant 0 : index
    %c0_4 = arith.constant 0 : index
    %3 = vector.load %arg3[%c0_3, %c0_4] : memref<1x128xf32, #tpu.memory_space<vmem>>, vector<1x128xf32>
    %4 = vector.broadcast %3 : vector<1x128xf32> to vector<128x128xf32>
    %5 = arith.addf %2, %4 : vector<128x128xf32>
    %6 = arith.negf %5 : vector<128x128xf32>
    %7 = math.exp %6 : vector<128x128xf32>
    %cst_5 = arith.constant 1.000000e+00 : f32
    %8 = vector.broadcast %cst_5 : f32 to vector<128x128xf32>
    %9 = arith.addf %8, %7 : vector<128x128xf32>
    %10 = arith.divf %8, %9 : vector<128x128xf32>
    %11 = arith.mulf %5, %10 : vector<128x128xf32>
    %c0_6 = arith.constant 0 : index
    %c0_7 = arith.constant 0 : index
    %12 = vector.load %arg4[%c0_6, %c0_7] : memref<128x128xf32, #tpu.memory_space<vmem>>, vector<128x128xf32>
    tpu.vector_store %arg4[%c0_6, %c0_7], %11 {strides = array<i32>} : memref<128x128xf32, #tpu.memory_space<vmem>>, vector<128x128xf32>,
    return
  }
  func.func @transform_0(%arg0: i32) -> (i32, i32) {
    %c0_i32 = arith.constant 0 : i32
    %c0_i32_0 = arith.constant 0 : i32
    return %arg0, %c0_i32 : i32, i32
  }
  func.func @transform_1(%arg0: i32) -> (i32, i32) {
    %c0_i32 = arith.constant 0 : i32
    %c0_i32_0 = arith.constant 0 : i32
    %c0_i32_1 = arith.constant 0 : i32
    return %c0_i32, %c0_i32_0 : i32, i32
  }
  func.func @transform_2(%arg0: i32) -> (i32, i32) {
    %c0_i32 = arith.constant 0 : i32
    %c0_i32_0 = arith.constant 0 : i32
    %c0_i32_1 = arith.constant 0 : i32
    return %c0_i32, %c0_i32_0 : i32, i32
  }
  func.func @transform_3(%arg0: i32) -> (i32, i32) {
    %c0_i32 = arith.constant 0 : i32
    %c0_i32_0 = arith.constant 0 : i32
    return %arg0, %c0_i32 : i32, i32
  }
}

module attributes {stable_mosaic.version = 11 : i64} {
  func.func @_fused_matmul_kernel(%arg0: i32, %arg1: memref<128x384xbf16, #tpu.memory_space<vmem>>, %arg2: memref<384x128xbf16, #tpu.memory_space<vmem>>, %arg3: memref<1x128xf32, #tpu.memory_space<vmem>>, %arg4: memref<128x128xf32, #tpu.memory_space<vmem>>) attributes {dimension_semantics = [#tpu.dimension_semantics<parallel>], iteration_bounds = array<i64: 1>, scalar_prefetch = 0 : i64, scratch_operands = 0 : i64, tpu.core_type = #tpu.core_type<tc>, window_params = [{transform_indices = @transform_0, window_bounds = array<i64: 128, 384>}, {pipeline_mode = #tpu.pipeline_mode<synchronous>, transform_indices = @transform_1, window_bounds = array<i64: 384, 128>}, {pipeline_mode = #tpu.pipeline_mode<synchronous>, transform_indices = @transform_2, window_bounds = array<i64: 1, 128>}, {transform_indices = @transform_3, window_bounds = array<i64: 128, 128>}]} {
    %c0 = arith.constant 0 : index
    %c0_0 = arith.constant 0 : index
    %0 = vector.load %arg1[%c0, %c0_0] : memref<128x384xbf16, #tpu.memory_space<vmem>>, vector<128x384xbf16>
    %c0_1 = arith.constant 0 : index
    %c0_2 = arith.constant 0 : index
    %1 = vector.load %arg2[%c0_1, %c0_2] : memref<384x128xbf16, #tpu.memory_space<vmem>>, vector<384x128xbf16>
    %cst = arith.constant dense<0.000000e+00> : vector<128x128xf32>
    %2 = tpu.matmul %0, %1, %cst {dimension_numbers = #tpu.dot_dimension_numbers<[1], [0], [0], [1], [0, 0, 1, 1], [], []>} : vector<128x384xbf16>, vector<384x128xbf16>, vector<128x128xf32> -> vector<128x128xf32>
    %c0_3 = arith.constant 0 : index
    %c0_4 = arith.constant 0 : index
    %3 = vector.load %arg3[%c0_3, %c0_4] : memref<1x128xf32, #tpu.memory_space<vmem>>, vector<1x128xf32>
    %4 = vector.broadcast %3 : vector<1x128xf32> to vector<128x128xf32>
    %5 = arith.addf %2, %4 : vector<128x128xf32>
    %6 = arith.negf %5 : vector<128x128xf32>
    %7 = math.exp %6 : vector<128x128xf32>
    %cst_5 = arith.constant 1.000000e+00 : f32
    %8 = vector.broadcast %cst_5 : f32 to vector<128x128xf32>
    %9 = arith.addf %8, %7 : vector<128x128xf32>
    %10 = arith.divf %8, %9 : vector<128x128xf32>
    %11 = arith.mulf %5, %10 : vector<128x128xf32>
    %c0_6 = arith.constant 0 : index
    %c0_7 = arith.constant 0 : index
    %12 = vector.load %arg4[%c0_6, %c0_7] : memref<128x128xf32, #tpu.memory_space<vmem>>, vector<128x128xf32>
    tpu.vector_store %arg4[%c0_6, %c0_7], %11 {strides = array<i32>} : memref<128x128xf32, #tpu.memory_space<vmem>>, vector<128x128xf32>,
    return
  }
  func.func @transform_0(%arg0: i32) -> (i32, i32) {
    %c0_i32 = arith.constant 0 : i32
    %c0_i32_0 = arith.constant 0 : i32
    return %arg0, %c0_i32 : i32, i32
  }
  func.func @transform_1(%arg0: i32) -> (i32, i32) {
    %c0_i32 = arith.constant 0 : i32
    %c0_i32_0 = arith.constant 0 : i32
    %c0_i32_1 = arith.constant 0 : i32
    return %c0_i32, %c0_i32_0 : i32, i32
  }
  func.func @transform_2(%arg0: i32) -> (i32, i32) {
    %c0_i32 = arith.constant 0 : i32
    %c0_i32_0 = arith.constant 0 : i32
    %c0_i32_1 = arith.constant 0 : i32
    return %c0_i32, %c0_i32_0 : i32, i32
  }
  func.func @transform_3(%arg0: i32) -> (i32, i32) {
    %c0_i32 = arith.constant 0 : i32
    %c0_i32_0 = arith.constant 0 : i32
    return %arg0, %c0_i32 : i32, i32
  }
}

module attributes {stable_mosaic.version = 11 : i64} {
  func.func @_fused_matmul_kernel(%arg0: i32, %arg1: memref<128x640xbf16, #tpu.memory_space<vmem>>, %arg2: memref<640x128xbf16, #tpu.memory_space<vmem>>, %arg3: memref<1x128xf32, #tpu.memory_space<vmem>>, %arg4: memref<128x128xf32, #tpu.memory_space<vmem>>) attributes {dimension_semantics = [#tpu.dimension_semantics<parallel>], iteration_bounds = array<i64: 1>, scalar_prefetch = 0 : i64, scratch_operands = 0 : i64, tpu.core_type = #tpu.core_type<tc>, window_params = [{transform_indices = @transform_0, window_bounds = array<i64: 128, 640>}, {pipeline_mode = #tpu.pipeline_mode<synchronous>, transform_indices = @transform_1, window_bounds = array<i64: 640, 128>}, {pipeline_mode = #tpu.pipeline_mode<synchronous>, transform_indices = @transform_2, window_bounds = array<i64: 1, 128>}, {transform_indices = @transform_3, window_bounds = array<i64: 128, 128>}]} {
    %c0 = arith.constant 0 : index
    %c0_0 = arith.constant 0 : index
    %0 = vector.load %arg1[%c0, %c0_0] : memref<128x640xbf16, #tpu.memory_space<vmem>>, vector<128x640xbf16>
    %c0_1 = arith.constant 0 : index
    %c0_2 = arith.constant 0 : index
    %1 = vector.load %arg2[%c0_1, %c0_2] : memref<640x128xbf16, #tpu.memory_space<vmem>>, vector<640x128xbf16>
    %cst = arith.constant dense<0.000000e+00> : vector<128x128xf32>
    %2 = tpu.matmul %0, %1, %cst {dimension_numbers = #tpu.dot_dimension_numbers<[1], [0], [0], [1], [0, 0, 1, 1], [], []>} : vector<128x640xbf16>, vector<640x128xbf16>, vector<128x128xf32> -> vector<128x128xf32>
    %c0_3 = arith.constant 0 : index
    %c0_4 = arith.constant 0 : index
    %3 = vector.load %arg3[%c0_3, %c0_4] : memref<1x128xf32, #tpu.memory_space<vmem>>, vector<1x128xf32>
    %4 = vector.broadcast %3 : vector<1x128xf32> to vector<128x128xf32>
    %5 = arith.addf %2, %4 : vector<128x128xf32>
    %6 = arith.negf %5 : vector<128x128xf32>
    %7 = math.exp %6 : vector<128x128xf32>
    %cst_5 = arith.constant 1.000000e+00 : f32
    %8 = vector.broadcast %cst_5 : f32 to vector<128x128xf32>
    %9 = arith.addf %8, %7 : vector<128x128xf32>
    %10 = arith.divf %8, %9 : vector<128x128xf32>
    %11 = arith.mulf %5, %10 : vector<128x128xf32>
    %c0_6 = arith.constant 0 : index
    %c0_7 = arith.constant 0 : index
    %12 = vector.load %arg4[%c0_6, %c0_7] : memref<128x128xf32, #tpu.memory_space<vmem>>, vector<128x128xf32>
    tpu.vector_store %arg4[%c0_6, %c0_7], %11 {strides = array<i32>} : memref<128x128xf32, #tpu.memory_space<vmem>>, vector<128x128xf32>,
    return
  }
  func.func @transform_0(%arg0: i32) -> (i32, i32) {
    %c0_i32 = arith.constant 0 : i32
    %c0_i32_0 = arith.constant 0 : i32
    return %arg0, %c0_i32 : i32, i32
  }
  func.func @transform_1(%arg0: i32) -> (i32, i32) {
    %c0_i32 = arith.constant 0 : i32
    %c0_i32_0 = arith.constant 0 : i32
    %c0_i32_1 = arith.constant 0 : i32
    return %c0_i32, %c0_i32_0 : i32, i32
  }
  func.func @transform_2(%arg0: i32) -> (i32, i32) {
    %c0_i32 = arith.constant 0 : i32
    %c0_i32_0 = arith.constant 0 : i32
    %c0_i32_1 = arith.constant 0 : i32
    return %c0_i32, %c0_i32_0 : i32, i32
  }
  func.func @transform_3(%arg0: i32) -> (i32, i32) {
    %c0_i32 = arith.constant 0 : i32
    %c0_i32_0 = arith.constant 0 : i32
    return %arg0, %c0_i32 : i32, i32
  }
}

module attributes {stable_mosaic.version = 11 : i64} {
  func.func @_fused_matmul_kernel(%arg0: i32, %arg1: memref<128x128xbf16, #tpu.memory_space<vmem>>, %arg2: memref<128x128xbf16, #tpu.memory_space<vmem>>, %arg3: memref<1x128xf32, #tpu.memory_space<vmem>>, %arg4: memref<128x128xf32, #tpu.memory_space<vmem>>) attributes {dimension_semantics = [#tpu.dimension_semantics<parallel>], iteration_bounds = array<i64: 1>, scalar_prefetch = 0 : i64, scratch_operands = 0 : i64, tpu.core_type = #tpu.core_type<tc>, window_params = [{transform_indices = @transform_0, window_bounds = array<i64: 128, 128>}, {pipeline_mode = #tpu.pipeline_mode<synchronous>, transform_indices = @transform_1, window_bounds = array<i64: 128, 128>}, {pipeline_mode = #tpu.pipeline_mode<synchronous>, transform_indices = @transform_2, window_bounds = array<i64: 1, 128>}, {transform_indices = @transform_3, window_bounds = array<i64: 128, 128>}]} {
    %c0 = arith.constant 0 : index
    %c0_0 = arith.constant 0 : index
    %0 = vector.load %arg1[%c0, %c0_0] : memref<128x128xbf16, #tpu.memory_space<vmem>>, vector<128x128xbf16>
    %c0_1 = arith.constant 0 : index
    %c0_2 = arith.constant 0 : index
    %1 = vector.load %arg2[%c0_1, %c0_2] : memref<128x128xbf16, #tpu.memory_space<vmem>>, vector<128x128xbf16>
    %cst = arith.constant dense<0.000000e+00> : vector<128x128xf32>
    %2 = tpu.matmul %0, %1, %cst {dimension_numbers = #tpu.dot_dimension_numbers<[1], [0], [0], [1], [0, 0, 1, 1], [], []>} : vector<128x128xbf16>, vector<128x128xbf16>, vector<128x128xf32> -> vector<128x128xf32>
    %c0_3 = arith.constant 0 : index
    %c0_4 = arith.constant 0 : index
    %3 = vector.load %arg3[%c0_3, %c0_4] : memref<1x128xf32, #tpu.memory_space<vmem>>, vector<1x128xf32>
    %4 = vector.broadcast %3 : vector<1x128xf32> to vector<128x128xf32>
    %5 = arith.addf %2, %4 : vector<128x128xf32>
    %6 = tpu.iota {dimensions = array<i32: 1>} : vector<128x128xi32>
    %c4_i32 = arith.constant 4 : i32
    %7 = vector.broadcast %c4_i32 : i32 to vector<128x128xi32>
    %8 = arith.cmpi sge, %6, %7 : vector<128x128xi32>
    %9 = arith.negf %5 : vector<128x128xf32>
    %10 = math.exp %9 : vector<128x128xf32>
    %cst_5 = arith.constant 1.000000e+00 : f32
    %11 = vector.broadcast %cst_5 : f32 to vector<128x128xf32>
    %12 = arith.addf %11, %10 : vector<128x128xf32>
    %13 = arith.divf %11, %12 : vector<128x128xf32>
    %14 = arith.select %8, %13, %5 : vector<128x128xi1>, vector<128x128xf32>
    %c0_6 = arith.constant 0 : index
    %c0_7 = arith.constant 0 : index
    %15 = vector.load %arg4[%c0_6, %c0_7] : memref<128x128xf32, #tpu.memory_space<vmem>>, vector<128x128xf32>
    tpu.vector_store %arg4[%c0_6, %c0_7], %14 {strides = array<i32>} : memref<128x128xf32, #tpu.memory_space<vmem>>, vector<128x128xf32>,
    return
  }
  func.func @transform_0(%arg0: i32) -> (i32, i32) {
    %c0_i32 = arith.constant 0 : i32
    %c0_i32_0 = arith.constant 0 : i32
    return %arg0, %c0_i32 : i32, i32
  }
  func.func @transform_1(%arg0: i32) -> (i32, i32) {
    %c0_i32 = arith.constant 0 : i32
    %c0_i32_0 = arith.constant 0 : i32
    %c0_i32_1 = arith.constant 0 : i32
    return %c0_i32, %c0_i32_0 : i32, i32
  }
  func.func @transform_2(%arg0: i32) -> (i32, i32) {
    %c0_i32 = arith.constant 0 : i32
    %c0_i32_0 = arith.constant 0 : i32
    %c0_i32_1 = arith.constant 0 : i32
    return %c0_i32, %c0_i32_0 : i32, i32
  }
  func.func @transform_3(%arg0: i32) -> (i32, i32) {
    %c0_i32 = arith.constant 0 : i32
    %c0_i32_0 = arith.constant 0 : i32
    return %arg0, %c0_i32 : i32, i32
  }
}

</mosaic_0001>

<llo_original>
// kernel: _lambda_.29
$region0: #{_lambda_.29}
  #allocation0 [shape = 'u32[]', space=smem, size = 0x4, offset = 0x4, fixed_abs, tag = 'smem constant byte address 0x4 - core index']
  #allocation1 [shape = 'u32[144,128]{1,0:T(1,128)}', space=vmem, size = 0x12000, scoped, tag = 'internal scratch']
  %s0 = inlined_call_operand.vmem [shape: bf16[2048,128], index: 0, kind: input, shape index: {}]
  %s1 = inlined_call_operand.vmem [shape: bf16[128,128], index: 1, kind: input, shape index: {}]
  %s2 = inlined_call_operand.vmem [shape: f32[1,128], index: 2, kind: input, shape index: {}]
  %s3 = inlined_call_operand.vmem [shape: f32[2048,128], index: 3, kind: output, shape index: {}]
  %s4 = sld [smem:[#allocation0]]
  $region45: #{_lambda_.29} parent=0
    _
  %s6 = ssub.s32 1, %s4
  %s7 = scalar_select 0, %s6, %s4
  loop: start=0, step=1, limit=6
  $region2: #{_lambda_.29} parent=0 // loop_pre_header
    _
  $region3: #{_lambda_.29} parent=0 // loop_header
    %s9 = sphi 0, %s13
    %p10 = scmp.ge.s32.totalorder %s9, 6
    %s19 = sphi 0, %s21
    %s22 = sphi 0, %s19
    %s23 = sphi 0, %s22
    %s39 = sphi 0, %s23
    %s43 = sphi 0, %s43
    %s45 = sphi 0, %s43
    %s46 = sphi 0, %s45
    %s60 = sphi 0, %s46
    %s64 = sphi 0, %s64
    %s66 = sphi 0, %s64
    %s67 = sphi 0, %s66
    %s81 = sphi 0, %s67
    %s87 = sphi 0, %s89
    %s90 = sphi 0, %s87
    %s91 = sphi 0, %s90
    %s107 = sphi 0, %s91
  $region4: #{_lambda_.29} parent=0 // loop_header_branch
    %12 = sbr.rel (%p10) target = $region8
  $region5: #{_lambda_.29} parent=0 // loop_body
    %s14 = ssub.s32 %s9, 1
    %s15 = ssub.s32 %s9, 2
    %s16 = sadd.s32 %s9, 1
    %s17 = ssub.s32 %s9, %s16
    %p18 = scmp.eq.s32.totalorder %s17, 0
    %s20 = sadd.s32 %s19, 1
    %s21 = scalar_select %p18, %s19, %s20
    %p24 = pneg %p18
    %p25 = scmp.eq.s32.totalorder %s9, 3
    %p26 = por %p24, %p25
    %p27 = scmp.ne.s32.totalorder %s19, %s22
    %p28 = scmp.eq.s32.totalorder %s9, 0
    %p29 = por %p27, %p28
    %p30 = scmp.ne.s32.totalorder %s19, %s22
    %p31 = scmp.eq.s32.totalorder %s14, 3
    %p32 = por %p30, %p31
    %p33 = scmp.ne.s32.totalorder %s22, %s23
    %p34 = scmp.eq.s32.totalorder %s14, 0
    %p35 = por %p33, %p34
    %p36 = scmp.ne.s32.totalorder %s22, %s23
    %p37 = scmp.eq.s32.totalorder %s15, 3
    %p38 = por %p36, %p37
    %p40 = scmp.ne.s32.totalorder %s23, %s39
    %p41 = scmp.eq.s32.totalorder %s15, 0
    %p42 = por %p40, %p41
    %s44 = sadd.s32 %s43, 1
    %p47 = scmp.eq.s32.totalorder %s9, 3
    %p48 = scmp.ne.s32.totalorder %s43, %s45
    %p49 = scmp.eq.s32.totalorder %s9, 0
    %p50 = por %p48, %p49
    %p51 = scmp.ne.s32.totalorder %s43, %s45
    %p52 = scmp.eq.s32.totalorder %s14, 3
    %p53 = por %p51, %p52
    %p54 = scmp.ne.s32.totalorder %s45, %s46
    %p55 = scmp.eq.s32.totalorder %s14, 0
    %p56 = por %p54, %p55
    %p57 = scmp.ne.s32.totalorder %s45, %s46
    %p58 = scmp.eq.s32.totalorder %s15, 3
    %p59 = por %p57, %p58
    %p61 = scmp.ne.s32.totalorder %s46, %s60
    %p62 = scmp.eq.s32.totalorder %s15, 0
    %p63 = por %p61, %p62
    %s65 = sadd.s32 %s64, 1
    %p68 = scmp.eq.s32.totalorder %s9, 3
    %p69 = scmp.ne.s32.totalorder %s64, %s66
    %p70 = scmp.eq.s32.totalorder %s9, 0
    %p71 = por %p69, %p70
    %p72 = scmp.ne.s32.totalorder %s64, %s66
    %p73 = scmp.eq.s32.totalorder %s14, 3
    %p74 = por %p72, %p73
    %p75 = scmp.ne.s32.totalorder %s66, %s67
    %p76 = scmp.eq.s32.totalorder %s14, 0
    %p77 = por %p75, %p76
    %p78 = scmp.ne.s32.totalorder %s66, %s67
    %p79 = scmp.eq.s32.totalorder %s15, 3
    %p80 = por %p78, %p79
    %p82 = scmp.ne.s32.totalorder %s67, %s81
    %p83 = scmp.eq.s32.totalorder %s15, 0
    %p84 = por %p82, %p83
    %s85 = ssub.s32 %s9, %s16
    %p86 = scmp.eq.s32.totalorder %s85, 0
    %s88 = sadd.s32 %s87, 1
    %s89 = scalar_select %p86, %s87, %s88
    %p92 = pneg %p86
    %p93 = scmp.eq.s32.totalorder %s9, 3
    %p94 = por %p92, %p93
    %p95 = scmp.ne.s32.totalorder %s87, %s90
    %p96 = scmp.eq.s32.totalorder %s9, 0
    %p97 = por %p95, %p96
    %p98 = scmp.ne.s32.totalorder %s87, %s90
    %p99 = scmp.eq.s32.totalorder %s14, 3
    %p100 = por %p98, %p99
    %p101 = scmp.ne.s32.totalorder %s90, %s91
    %p102 = scmp.eq.s32.totalorder %s14, 0
    %p103 = por %p101, %p102
    %p104 = scmp.ne.s32.totalorder %s90, %s91
    %p105 = scmp.eq.s32.totalorder %s15, 3
    %p106 = por %p104, %p105
    %p108 = scmp.ne.s32.totalorder %s91, %s107
    %p109 = scmp.eq.s32.totalorder %s15, 0
    %p110 = por %p108, %p109
    %p111 = scmp.le.s32.totalorder 1, %s9
    %p112 = scmp.lt.s32.totalorder %s9, 5
    %p113 = pnand %p111, %p112
    %p114 = pneg %p113
    // Predicated region
    $region9: #{_lambda_.29} parent=5 // pred_check
      _
    $region10: #{_lambda_.29} parent=5 // pred_check_branch
      %116 = sbr.rel (%p113) target = $region12
    $region11: #{_lambda_.29} parent=5 // pred_region
      %s117 = ssub.s32 %s9, 1
      // Predicated region
      $region13: #{_lambda_.29} parent=11 // pred_check
        %p118 = pneg %p56
      $region14: #{_lambda_.29} parent=11 // pred_check_branch
        %120 = sbr.rel (%p118) target = $region16
      $region15: #{_lambda_.29} parent=11 // pred_region
        _
      $region16: #{_lambda_.29} parent=11 // pred_fallthru
        _
      // Predicated region
      $region17: #{_lambda_.29} parent=11 // pred_check
        %p121 = pneg %p77
      $region18: #{_lambda_.29} parent=11 // pred_check_branch
        %123 = sbr.rel (%p121) target = $region20
      $region19: #{_lambda_.29} parent=11 // pred_region
        _
      $region20: #{_lambda_.29} parent=11 // pred_fallthru
        _
    $region12: #{_lambda_.29} parent=5 // pred_fallthru
      _
    %p124 = scmp.lt.s32.totalorder %s9, 4
    // Predicated region
    $region21: #{_lambda_.29} parent=5 // pred_check
      %p125 = pneg %p124
    $region22: #{_lambda_.29} parent=5 // pred_check_branch
      %127 = sbr.rel (%p125) target = $region24
    $region23: #{_lambda_.29} parent=5 // pred_region
      // Predicated region
      $region25: #{_lambda_.29} parent=23 // pred_check
        %p128 = pneg %p29
      $region26: #{_lambda_.29} parent=23 // pred_check_branch
        %130 = sbr.rel (%p128) target = $region28
      $region27: #{_lambda_.29} parent=23 // pred_region
        %s131 = smul.u32 64, %s9
        %p132 = scmp.lt.s32.totalorder %s131, 255
        %s133 = scalar_select %p132, %s131, 255
        %s134 = smul.addr %s133, 4
        %s135 = scalar_lea.vmem %s0, %s134
        %s136 = smul.u32 64, %s9
      $region28: #{_lambda_.29} parent=23 // pred_fallthru
        _
    $region24: #{_lambda_.29} parent=5 // pred_fallthru
      _
    %p137 = scmp.le.s32.totalorder 1, %s9
    %p138 = scmp.lt.s32.totalorder %s9, 5
    %p139 = pnand %p137, %p138
    %p140 = pneg %p139
    // Predicated region
    $region29: #{_lambda_.29} parent=5 // pred_check
      _
    $region30: #{_lambda_.29} parent=5 // pred_check_branch
      %142 = sbr.rel (%p139) target = $region32
    $region31: #{_lambda_.29} parent=5 // pred_region
      %s143 = ssub.s32 %s9, 1
      %s144 = smul.u32 64, %s14
      %p145 = scmp.lt.s32.totalorder %s144, 255
      %s146 = scalar_select %p145, %s144, 255
      %s147 = smul.addr %s146, 4
      %s148 = scalar_lea.vmem %s0, %s147
      %p149 = pneg %p35
      %p150 = pneg %p32
      %p151 = pneg %p56
      %p152 = pneg %p53
      %p153 = pneg %p77
      %p154 = pneg %p74
      %p155 = pneg %p103
      %p156 = pneg %p100
      %s157 = smul.u32 64, %s14
      %p158 = scmp.lt.s32.totalorder %s157, 255
      %s159 = scalar_select %p158, %s157, 255
      %s160 = smul.addr %s159, 8
      %s161 = scalar_lea.vmem %s3, %s160
      %s162 = smul.u32 64, %s14
      %p163 = scmp.lt.s32.totalorder %s162, 255
      %s164 = scalar_select %p163, %s162, 255
      %s165 = smul.addr %s164, 4
      %s166 = scalar_lea.vmem %s0, %s165
      %s167 = smul.u32 64, %s14
      %s168 = smul.u32 64, %s14
      %p169 = scmp.lt.s32.totalorder %s168, 255
      %s170 = scalar_select %p169, %s168, 255
      %s171 = smul.addr %s170, 8
      %s172 = scalar_lea.vmem %s3, %s171
      %s173 = smul.u32 64, %s14
      %v175 = vld [vmem:[%s166] sm:$0xf]
      %v176 = vld [vmem:[%s166 + $0x4] sm:$0xf]
      %v177 = vld [vmem:[%s166 + $0x8] sm:$0xf]
      %v178 = vld [vmem:[%s166 + $0xc] sm:$0xf]
      %v179 = vld [vmem:[%s166 + $0x10] sm:$0xf]
      %v180 = vld [vmem:[%s166 + $0x14] sm:$0xf]
      %v181 = vld [vmem:[%s166 + $0x18] sm:$0xf]
      %v182 = vld [vmem:[%s166 + $0x1c] sm:$0xf]
      %v183 = vld [vmem:[%s166 + $0x20] sm:$0xf]
      %v184 = vld [vmem:[%s166 + $0x24] sm:$0xf]
      %v185 = vld [vmem:[%s166 + $0x28] sm:$0xf]
      %v186 = vld [vmem:[%s166 + $0x2c] sm:$0xf]
      %v187 = vld [vmem:[%s166 + $0x30] sm:$0xf]
      %v188 = vld [vmem:[%s166 + $0x34] sm:$0xf]
      %v189 = vld [vmem:[%s166 + $0x38] sm:$0xf]
      %v190 = vld [vmem:[%s166 + $0x3c] sm:$0xf]
      %v191 = vld [vmem:[%s166 + $0x40] sm:$0xf]
      %v192 = vld [vmem:[%s166 + $0x44] sm:$0xf]
      %v193 = vld [vmem:[%s166 + $0x48] sm:$0xf]
      %v194 = vld [vmem:[%s166 + $0x4c] sm:$0xf]
      %v195 = vld [vmem:[%s166 + $0x50] sm:$0xf]
      %v196 = vld [vmem:[%s166 + $0x54] sm:$0xf]
      %v197 = vld [vmem:[%s166 + $0x58] sm:$0xf]
      %v198 = vld [vmem:[%s166 + $0x5c] sm:$0xf]
      %v199 = vld [vmem:[%s166 + $0x60] sm:$0xf]
      %v200 = vld [vmem:[%s166 + $0x64] sm:$0xf]
      %v201 = vld [vmem:[%s166 + $0x68] sm:$0xf]
      %v202 = vld [vmem:[%s166 + $0x6c] sm:$0xf]
      %v203 = vld [vmem:[%s166 + $0x70] sm:$0xf]
      %v204 = vld [vmem:[%s166 + $0x74] sm:$0xf]
      %v205 = vld [vmem:[%s166 + $0x78] sm:$0xf]
      %v206 = vld [vmem:[%s166 + $0x7c] sm:$0xf]
      %v207 = vld [vmem:[%s166 + $0x80] sm:$0xf]
      %v208 = vld [vmem:[%s166 + $0x84] sm:$0xf]
      %v209 = vld [vmem:[%s166 + $0x88] sm:$0xf]
      %v210 = vld [vmem:[%s166 + $0x8c] sm:$0xf]
      %v211 = vld [vmem:[%s166 + $0x90] sm:$0xf]
      %v212 = vld [vmem:[%s166 + $0x94] sm:$0xf]
      %v213 = vld [vmem:[%s166 + $0x98] sm:$0xf]
      %v214 = vld [vmem:[%s166 + $0x9c] sm:$0xf]
      %v215 = vld [vmem:[%s166 + $0xa0] sm:$0xf]
      %v216 = vld [vmem:[%s166 + $0xa4] sm:$0xf]
      %v217 = vld [vmem:[%s166 + $0xa8] sm:$0xf]
      %v218 = vld [vmem:[%s166 + $0xac] sm:$0xf]
      %v219 = vld [vmem:[%s166 + $0xb0] sm:$0xf]
      %v220 = vld [vmem:[%s166 + $0xb4] sm:$0xf]
      %v221 = vld [vmem:[%s166 + $0xb8] sm:$0xf]
      %v222 = vld [vmem:[%s166 + $0xbc] sm:$0xf]
      %v223 = vld [vmem:[%s166 + $0xc0] sm:$0xf]
      %v224 = vld [vmem:[%s166 + $0xc4] sm:$0xf]
      %v225 = vld [vmem:[%s166 + $0xc8] sm:$0xf]
      %v226 = vld [vmem:[%s166 + $0xcc] sm:$0xf]
      %v227 = vld [vmem:[%s166 + $0xd0] sm:$0xf]
      %v228 = vld [vmem:[%s166 + $0xd4] sm:$0xf]
      %v229 = vld [vmem:[%s166 + $0xd8] sm:$0xf]
      %v230 = vld [vmem:[%s166 + $0xdc] sm:$0xf]
      %v231 = vld [vmem:[%s166 + $0xe0] sm:$0xf]
      %v232 = vld [vmem:[%s166 + $0xe4] sm:$0xf]
      %v233 = vld [vmem:[%s166 + $0xe8] sm:$0xf]
      %v234 = vld [vmem:[%s166 + $0xec] sm:$0xf]
      %v235 = vld [vmem:[%s166 + $0xf0] sm:$0xf]
      %v236 = vld [vmem:[%s166 + $0xf4] sm:$0xf]
      %v237 = vld [vmem:[%s166 + $0xf8] sm:$0xf]
      %v238 = vld [vmem:[%s166 + $0xfc] sm:$0xf]
      %v239 = vld [vmem:[%s1] sm:$0xf]
      %v240 = vld [vmem:[%s1 + $0x4] sm:$0xf]
      %v241 = vld [vmem:[%s1 + $0x8] sm:$0xf]
      %v242 = vld [vmem:[%s1 + $0xc] sm:$0xf]
      %v243 = vld [vmem:[%s1 + $0x10] sm:$0xf]
      %v244 = vld [vmem:[%s1 + $0x14] sm:$0xf]
      %v245 = vld [vmem:[%s1 + $0x18] sm:$0xf]
      %v246 = vld [vmem:[%s1 + $0x1c] sm:$0xf]
      %v247 = vld [vmem:[%s1 + $0x20] sm:$0xf]
      %v248 = vld [vmem:[%s1 + $0x24] sm:$0xf]
      %v249 = vld [vmem:[%s1 + $0x28] sm:$0xf]
      %v250 = vld [vmem:[%s1 + $0x2c] sm:$0xf]
      %v251 = vld [vmem:[%s1 + $0x30] sm:$0xf]
      %v252 = vld [vmem:[%s1 + $0x34] sm:$0xf]
      %v253 = vld [vmem:[%s1 + $0x38] sm:$0xf]
      %v254 = vld [vmem:[%s1 + $0x3c] sm:$0xf]
      %v255 = vld [vmem:[%s2] sm:$0x1]
      %v257 = vlaneseq
      %v258 = vshrl.u32 %v257, 7
      %v259 = vsub.s32 0, %v258
      %v260 = vrot.slane %v255, %v259
      %v326 = vunpack.c.l.b16 %v175
      %v327 = vunpack.c.l.b16 %v176
      %v328 = vunpack.c.l.b16 %v177
      %v329 = vunpack.c.l.b16 %v178
      %v330 = vunpack.c.l.b16 %v179
      %v331 = vunpack.c.l.b16 %v180
      %v332 = vunpack.c.l.b16 %v181
      %v333 = vunpack.c.l.b16 %v182
      %v334 = vunpack.c.l.b16 %v183
      %v335 = vunpack.c.l.b16 %v184
      %v336 = vunpack.c.l.b16 %v185
      %v337 = vunpack.c.l.b16 %v186
      %v338 = vunpack.c.l.b16 %v187
      %v339 = vunpack.c.l.b16 %v188
      %v340 = vunpack.c.l.b16 %v189
      %v341 = vunpack.c.l.b16 %v190
      %v342 = vunpack.c.l.b16 %v191
      %v343 = vunpack.c.l.b16 %v192
      %v344 = vunpack.c.l.b16 %v193
      %v345 = vunpack.c.l.b16 %v194
      %v346 = vunpack.c.l.b16 %v195
      %v347 = vunpack.c.l.b16 %v196
      %v348 = vunpack.c.l.b16 %v197
      %v349 = vunpack.c.l.b16 %v198
      %v350 = vunpack.c.l.b16 %v199
      %v351 = vunpack.c.l.b16 %v200
      %v352 = vunpack.c.l.b16 %v201
      %v353 = vunpack.c.l.b16 %v202
      %v354 = vunpack.c.l.b16 %v203
      %v355 = vunpack.c.l.b16 %v204
      %v356 = vunpack.c.l.b16 %v205
      %v357 = vunpack.c.l.b16 %v206
      %v358 = vunpack.c.l.b16 %v207
      %v359 = vunpack.c.l.b16 %v208
      %v360 = vunpack.c.l.b16 %v209
      %v361 = vunpack.c.l.b16 %v210
      %v362 = vunpack.c.l.b16 %v211
      %v363 = vunpack.c.l.b16 %v212
      %v364 = vunpack.c.l.b16 %v213
      %v365 = vunpack.c.l.b16 %v214
      %v366 = vunpack.c.l.b16 %v215
      %v367 = vunpack.c.l.b16 %v216
      %v368 = vunpack.c.l.b16 %v217
      %v369 = vunpack.c.l.b16 %v218
      %v370 = vunpack.c.l.b16 %v219
      %v371 = vunpack.c.l.b16 %v220
      %v372 = vunpack.c.l.b16 %v221
      %v373 = vunpack.c.l.b16 %v222
      %v374 = vunpack.c.l.b16 %v223
      %v375 = vunpack.c.l.b16 %v224
      %v376 = vunpack.c.l.b16 %v225
      %v377 = vunpack.c.l.b16 %v226
      %v378 = vunpack.c.l.b16 %v227
      %v379 = vunpack.c.l.b16 %v228
      %v380 = vunpack.c.l.b16 %v229
      %v381 = vunpack.c.l.b16 %v230
      %v382 = vunpack.c.l.b16 %v231
      %v383 = vunpack.c.l.b16 %v232
      %v384 = vunpack.c.l.b16 %v233
      %v385 = vunpack.c.l.b16 %v234
      %v386 = vunpack.c.l.b16 %v235
      %v387 = vunpack.c.l.b16 %v236
      %v388 = vunpack.c.l.b16 %v237
      %v389 = vunpack.c.l.b16 %v238
      %v390 = vpack.c.b16 %v327, %v326
      %v391 = vpack.c.b16 %v329, %v328
      %v392 = vpack.c.b16 %v331, %v330
      %v393 = vpack.c.b16 %v333, %v332
      %v394 = vpack.c.b16 %v335, %v334
      %v395 = vpack.c.b16 %v337, %v336
      %v396 = vpack.c.b16 %v339, %v338
      %v397 = vpack.c.b16 %v341, %v340
      %v398 = vpack.c.b16 %v343, %v342
      %v399 = vpack.c.b16 %v345, %v344
      %v400 = vpack.c.b16 %v347, %v346
      %v401 = vpack.c.b16 %v349, %v348
      %v402 = vpack.c.b16 %v351, %v350
      %v403 = vpack.c.b16 %v353, %v352
      %v404 = vpack.c.b16 %v355, %v354
      %v405 = vpack.c.b16 %v357, %v356
      %v406 = vpack.c.b16 %v359, %v358
      %v407 = vpack.c.b16 %v361, %v360
      %v408 = vpack.c.b16 %v363, %v362
      %v409 = vpack.c.b16 %v365, %v364
      %v410 = vpack.c.b16 %v367, %v366
      %v411 = vpack.c.b16 %v369, %v368
      %v412 = vpack.c.b16 %v371, %v370
      %v413 = vpack.c.b16 %v373, %v372
      %v414 = vpack.c.b16 %v375, %v374
      %v415 = vpack.c.b16 %v377, %v376
      %v416 = vpack.c.b16 %v379, %v378
      %v417 = vpack.c.b16 %v381, %v380
      %v418 = vpack.c.b16 %v383, %v382
      %v419 = vpack.c.b16 %v385, %v384
      %v420 = vpack.c.b16 %v387, %v386
      %v421 = vpack.c.b16 %v389, %v388
      %v470 = vunpack.c.l.b16 %v239
      %v471 = vunpack.c.l.b16 %v240
      %v472 = vunpack.c.l.b16 %v241
      %v473 = vunpack.c.l.b16 %v242
      %v474 = vunpack.c.l.b16 %v243
      %v475 = vunpack.c.l.b16 %v244
      %v476 = vunpack.c.l.b16 %v245
      %v477 = vunpack.c.l.b16 %v246
      %v478 = vunpack.c.l.b16 %v247
      %v479 = vunpack.c.l.b16 %v248
      %v480 = vunpack.c.l.b16 %v249
      %v481 = vunpack.c.l.b16 %v250
      %v482 = vunpack.c.l.b16 %v251
      %v483 = vunpack.c.l.b16 %v252
      %v484 = vunpack.c.l.b16 %v253
      %v485 = vunpack.c.l.b16 %v254
      %v486 = vpack.c.b16 %v471, %v470
      %v487 = vpack.c.b16 %v473, %v472
      %v488 = vpack.c.b16 %v475, %v474
      %v489 = vpack.c.b16 %v477, %v476
      %v490 = vpack.c.b16 %v479, %v478
      %v491 = vpack.c.b16 %v481, %v480
      %v492 = vpack.c.b16 %v483, %v482
      %v493 = vpack.c.b16 %v485, %v484
      %502 = vmatprep.subr.bf16.mxu0 0
      %503 = vmatpush1.bf16.msra.mxu0 %v486
      %504 = vmatprep.subr.bf16.mxu0 0
      %505 = vmatpush1.bf16.msra.mxu0 %v487
      %506 = vmatprep.subr.bf16.mxu0 0
      %507 = vmatpush1.bf16.msra.mxu0 %v488
      %508 = vmatprep.subr.bf16.mxu0 0
      %509 = vmatpush1.bf16.msra.mxu0 %v489
      %510 = vmatprep.subr.bf16.mxu0 0
      %511 = vmatpush1.bf16.msra.mxu0 %v490
      %512 = vmatprep.subr.bf16.mxu0 0
      %513 = vmatpush1.bf16.msra.mxu0 %v491
      %514 = vmatprep.subr.bf16.mxu0 0
      %515 = vmatpush1.bf16.msra.mxu0 %v492
      %516 = vmatprep.subr.bf16.mxu0 0
      %517 = vmatpush1.bf16.msra.mxu0 %v493
      %518 = vmatprep.subr.bf16.mxu0 0
      %519 = vmatpush1.bf16.msra.mxu0 0
      %520 = vmatprep.subr.bf16.mxu0 0
      %521 = vmatpush1.bf16.msra.mxu0 0
      %522 = vmatprep.subr.bf16.mxu0 0
      %523 = vmatpush1.bf16.msra.mxu0 0
      %524 = vmatprep.subr.bf16.mxu0 0
      %525 = vmatpush1.bf16.msra.mxu0 0
      %526 = vmatprep.subr.bf16.mxu0 0
      %527 = vmatpush1.bf16.msra.mxu0 0
      %528 = vmatprep.subr.bf16.mxu0 0
      %529 = vmatpush1.bf16.msra.mxu0 0
      %530 = vmatprep.subr.bf16.mxu0 0
      %531 = vmatpush1.bf16.msra.mxu0 0
      %532 = vmatprep.subr.bf16.mxu0 0
      %533 = vmatpush1.bf16.msra.mxu0 0
      %534 = vmatprep.mubr.bf16.mxu0 0
      %535 = vmatmul.mubr.bf16.gmra.mrb[0].mxu0 %v390
      %v536 = vpop.f32.mrb[0].mxu0
      %v537 = vadd.f32 %v260, %v536
      %v538 = vpop.f32.mrb[0].mxu0
      %v539 = vpop.f32.mrb[0].mxu0
      %v540 = vadd.f32 %v260, %v539
      %v541 = vpop.f32.mrb[0].mxu0
      %542 = vmatprep.mubr.bf16.mxu0 0
      %543 = vmatmul.mubr.bf16.gmra.mrb[0].mxu0 %v391
      %v544 = vpop.f32.mrb[0].mxu0
      %v545 = vadd.f32 %v260, %v544
      %v546 = vpop.f32.mrb[0].mxu0
      %v547 = vpop.f32.mrb[0].mxu0
      %v548 = vadd.f32 %v260, %v547
      %v549 = vpop.f32.mrb[0].mxu0
      %550 = vmatprep.mubr.bf16.mxu0 0
      %551 = vmatmul.mubr.bf16.gmra.mrb[0].mxu0 %v392
      %v552 = vpop.f32.mrb[0].mxu0
      %v553 = vadd.f32 %v260, %v552
      %v554 = vpop.f32.mrb[0].mxu0
      %v555 = vpop.f32.mrb[0].mxu0
      %v556 = vadd.f32 %v260, %v555
      %v557 = vpop.f32.mrb[0].mxu0
      %558 = vmatprep.mubr.bf16.mxu0 0
      %559 = vmatmul.mubr.bf16.gmra.mrb[0].mxu0 %v393
      %v560 = vpop.f32.mrb[0].mxu0
      %v561 = vadd.f32 %v260, %v560
      %v562 = vpop.f32.mrb[0].mxu0
      %v563 = vpop.f32.mrb[0].mxu0
      %v564 = vadd.f32 %v260, %v563
      %v565 = vpop.f32.mrb[0].mxu0
      %566 = vmatprep.mubr.bf16.mxu0 0
      %567 = vmatmul.mubr.bf16.gmra.mrb[0].mxu0 %v394
      %v568 = vpop.f32.mrb[0].mxu0
      %v569 = vadd.f32 %v260, %v568
      %v570 = vpop.f32.mrb[0].mxu0
      %v571 = vpop.f32.mrb[0].mxu0
      %v572 = vadd.f32 %v260, %v571
      %v573 = vpop.f32.mrb[0].mxu0
      %574 = vmatprep.mubr.bf16.mxu0 0
      %575 = vmatmul.mubr.bf16.gmra.mrb[0].mxu0 %v395
      %v576 = vpop.f32.mrb[0].mxu0
      %v577 = vadd.f32 %v260, %v576
      %v578 = vpop.f32.mrb[0].mxu0
      %v579 = vpop.f32.mrb[0].mxu0
      %v580 = vadd.f32 %v260, %v579
      %v581 = vpop.f32.mrb[0].mxu0
      %582 = vmatprep.mubr.bf16.mxu0 0
      %583 = vmatmul.mubr.bf16.gmra.mrb[0].mxu0 %v396
      %v584 = vpop.f32.mrb[0].mxu0
      %v585 = vadd.f32 %v260, %v584
      %v586 = vpop.f32.mrb[0].mxu0
      %v587 = vpop.f32.mrb[0].mxu0
      %v588 = vadd.f32 %v260, %v587
      %v589 = vpop.f32.mrb[0].mxu0
      %590 = vmatprep.mubr.bf16.mxu0 0
      %591 = vmatmul.mubr.bf16.gmra.mrb[0].mxu0 %v397
      %v592 = vpop.f32.mrb[0].mxu0
      %v593 = vadd.f32 %v260, %v592
      %v594 = vpop.f32.mrb[0].mxu0
      %v595 = vpop.f32.mrb[0].mxu0
      %v596 = vadd.f32 %v260, %v595
      %v597 = vpop.f32.mrb[0].mxu0
      %598 = vmatprep.mubr.bf16.mxu0 0
      %599 = vmatmul.mubr.bf16.gmra.mrb[0].mxu0 %v398
      %v600 = vpop.f32.mrb[0].mxu0
      %v601 = vadd.f32 %v260, %v600
      %v602 = vpop.f32.mrb[0].mxu0
      %v603 = vpop.f32.mrb[0].mxu0
      %v604 = vadd.f32 %v260, %v603
      %v605 = vpop.f32.mrb[0].mxu0
      %606 = vmatprep.mubr.bf16.mxu0 0
      %607 = vmatmul.mubr.bf16.gmra.mrb[0].mxu0 %v399
      %v608 = vpop.f32.mrb[0].mxu0
      %v609 = vadd.f32 %v260, %v608
      %v610 = vpop.f32.mrb[0].mxu0
      %v611 = vpop.f32.mrb[0].mxu0
      %v612 = vadd.f32 %v260, %v611
      %v613 = vpop.f32.mrb[0].mxu0
      %614 = vmatprep.mubr.bf16.mxu0 0
      %615 = vmatmul.mubr.bf16.gmra.mrb[0].mxu0 %v400
      %v616 = vpop.f32.mrb[0].mxu0
      %v617 = vadd.f32 %v260, %v616
      %v618 = vpop.f32.mrb[0].mxu0
      %v619 = vpop.f32.mrb[0].mxu0
      %v620 = vadd.f32 %v260, %v619
      %v621 = vpop.f32.mrb[0].mxu0
      %622 = vmatprep.mubr.bf16.mxu0 0
      %623 = vmatmul.mubr.bf16.gmra.mrb[0].mxu0 %v401
      %v624 = vpop.f32.mrb[0].mxu0
      %v625 = vadd.f32 %v260, %v624
      %v626 = vpop.f32.mrb[0].mxu0
      %v627 = vpop.f32.mrb[0].mxu0
      %v628 = vadd.f32 %v260, %v627
      %v629 = vpop.f32.mrb[0].mxu0
      %630 = vmatprep.mubr.bf16.mxu0 0
      %631 = vmatmul.mubr.bf16.gmra.mrb[0].mxu0 %v402
      %v632 = vpop.f32.mrb[0].mxu0
      %v633 = vadd.f32 %v260, %v632
      %v634 = vpop.f32.mrb[0].mxu0
      %v635 = vpop.f32.mrb[0].mxu0
      %v636 = vadd.f32 %v260, %v635
      %v637 = vpop.f32.mrb[0].mxu0
      %638 = vmatprep.mubr.bf16.mxu0 0
      %639 = vmatmul.mubr.bf16.gmra.mrb[0].mxu0 %v403
      %v640 = vpop.f32.mrb[0].mxu0
      %v641 = vadd.f32 %v260, %v640
      %v642 = vpop.f32.mrb[0].mxu0
      %v643 = vpop.f32.mrb[0].mxu0
      %v644 = vadd.f32 %v260, %v643
      %v645 = vpop.f32.mrb[0].mxu0
      %646 = vmatprep.mubr.bf16.mxu0 0
      %647 = vmatmul.mubr.bf16.gmra.mrb[0].mxu0 %v404
      %v648 = vpop.f32.mrb[0].mxu0
      %v649 = vadd.f32 %v260, %v648
      %v650 = vpop.f32.mrb[0].mxu0
      %v651 = vpop.f32.mrb[0].mxu0
      %v652 = vadd.f32 %v260, %v651
      %v653 = vpop.f32.mrb[0].mxu0
      %654 = vmatprep.mubr.bf16.mxu0 0
      %655 = vmatmul.mubr.bf16.gmra.mrb[0].mxu0 %v405
      %v656 = vpop.f32.mrb[0].mxu0
      %v657 = vadd.f32 %v260, %v656
      %v658 = vpop.f32.mrb[0].mxu0
      %v659 = vpop.f32.mrb[0].mxu0
      %v660 = vadd.f32 %v260, %v659
      %v661 = vpop.f32.mrb[0].mxu0
      %662 = vmatprep.mubr.bf16.mxu0 0
      %663 = vmatmul.mubr.bf16.gmra.mrb[0].mxu0 %v406
      %v664 = vpop.f32.mrb[0].mxu0
      %v665 = vadd.f32 %v260, %v664
      %v666 = vpop.f32.mrb[0].mxu0
      %v667 = vpop.f32.mrb[0].mxu0
      %v668 = vadd.f32 %v260, %v667
      %v669 = vpop.f32.mrb[0].mxu0
      %670 = vmatprep.mubr.bf16.mxu0 0
      %671 = vmatmul.mubr.bf16.gmra.mrb[0].mxu0 %v407
      %v672 = vpop.f32.mrb[0].mxu0
      %v673 = vadd.f32 %v260, %v672
      %v674 = vpop.f32.mrb[0].mxu0
      %v675 = vpop.f32.mrb[0].mxu0
      %v676 = vadd.f32 %v260, %v675
      %v677 = vpop.f32.mrb[0].mxu0
      %678 = vmatprep.mubr.bf16.mxu0 0
      %679 = vmatmul.mubr.bf16.gmra.mrb[0].mxu0 %v408
      %v680 = vpop.f32.mrb[0].mxu0
      %v681 = vadd.f32 %v260, %v680
      %v682 = vpop.f32.mrb[0].mxu0
      %v683 = vpop.f32.mrb[0].mxu0
      %v684 = vadd.f32 %v260, %v683
      %v685 = vpop.f32.mrb[0].mxu0
      %686 = vmatprep.mubr.bf16.mxu0 0
      %687 = vmatmul.mubr.bf16.gmra.mrb[0].mxu0 %v409
      %v688 = vpop.f32.mrb[0].mxu0
      %v689 = vadd.f32 %v260, %v688
      %v690 = vpop.f32.mrb[0].mxu0
      %v691 = vpop.f32.mrb[0].mxu0
      %v692 = vadd.f32 %v260, %v691
      %v693 = vpop.f32.mrb[0].mxu0
      %694 = vmatprep.mubr.bf16.mxu0 0
      %695 = vmatmul.mubr.bf16.gmra.mrb[0].mxu0 %v410
      %v696 = vpop.f32.mrb[0].mxu0
      %v697 = vadd.f32 %v260, %v696
      %v698 = vpop.f32.mrb[0].mxu0
      %v699 = vpop.f32.mrb[0].mxu0
      %v700 = vadd.f32 %v260, %v699
      %v701 = vpop.f32.mrb[0].mxu0
      %702 = vmatprep.mubr.bf16.mxu0 0
      %703 = vmatmul.mubr.bf16.gmra.mrb[0].mxu0 %v411
      %v704 = vpop.f32.mrb[0].mxu0
      %v705 = vadd.f32 %v260, %v704
      %v706 = vpop.f32.mrb[0].mxu0
      %v707 = vpop.f32.mrb[0].mxu0
      %v708 = vadd.f32 %v260, %v707
      %v709 = vpop.f32.mrb[0].mxu0
      %710 = vmatprep.mubr.bf16.mxu0 0
      %711 = vmatmul.mubr.bf16.gmra.mrb[0].mxu0 %v412
      %v712 = vpop.f32.mrb[0].mxu0
      %v713 = vadd.f32 %v260, %v712
      %v714 = vpop.f32.mrb[0].mxu0
      %v715 = vpop.f32.mrb[0].mxu0
      %v716 = vadd.f32 %v260, %v715
      %v717 = vpop.f32.mrb[0].mxu0
      %718 = vmatprep.mubr.bf16.mxu0 0
      %719 = vmatmul.mubr.bf16.gmra.mrb[0].mxu0 %v413
      %v720 = vpop.f32.mrb[0].mxu0
      %v721 = vadd.f32 %v260, %v720
      %v722 = vpop.f32.mrb[0].mxu0
      %v723 = vpop.f32.mrb[0].mxu0
      %v724 = vadd.f32 %v260, %v723
      %v725 = vpop.f32.mrb[0].mxu0
      %726 = vmatprep.mubr.bf16.mxu0 0
      %727 = vmatmul.mubr.bf16.gmra.mrb[0].mxu0 %v414
      %v728 = vpop.f32.mrb[0].mxu0
      %v729 = vadd.f32 %v260, %v728
      %v730 = vpop.f32.mrb[0].mxu0
      %v731 = vpop.f32.mrb[0].mxu0
      %v732 = vadd.f32 %v260, %v731
      %v733 = vpop.f32.mrb[0].mxu0
      %734 = vmatprep.mubr.bf16.mxu0 0
      %735 = vmatmul.mubr.bf16.gmra.mrb[0].mxu0 %v415
      %v736 = vpop.f32.mrb[0].mxu0
      %v737 = vadd.f32 %v260, %v736
      %v738 = vpop.f32.mrb[0].mxu0
      %v739 = vpop.f32.mrb[0].mxu0
      %v740 = vadd.f32 %v260, %v739
      %v741 = vpop.f32.mrb[0].mxu0
      %742 = vmatprep.mubr.bf16.mxu0 0
      %743 = vmatmul.mubr.bf16.gmra.mrb[0].mxu0 %v416
      %v744 = vpop.f32.mrb[0].mxu0
      %v745 = vadd.f32 %v260, %v744
      %v746 = vpop.f32.mrb[0].mxu0
      %v747 = vpop.f32.mrb[0].mxu0
      %v748 = vadd.f32 %v260, %v747
      %v749 = vpop.f32.mrb[0].mxu0
      %750 = vmatprep.mubr.bf16.mxu0 0
      %751 = vmatmul.mubr.bf16.gmra.mrb[0].mxu0 %v417
      %v752 = vpop.f32.mrb[0].mxu0
      %v753 = vadd.f32 %v260, %v752
      %v754 = vpop.f32.mrb[0].mxu0
      %v755 = vpop.f32.mrb[0].mxu0
      %v756 = vadd.f32 %v260, %v755
      %v757 = vpop.f32.mrb[0].mxu0
      %758 = vmatprep.mubr.bf16.mxu0 0
      %759 = vmatmul.mubr.bf16.gmra.mrb[0].mxu0 %v418
      %v760 = vpop.f32.mrb[0].mxu0
      %v761 = vadd.f32 %v260, %v760
      %v762 = vpop.f32.mrb[0].mxu0
      %v763 = vpop.f32.mrb[0].mxu0
      %v764 = vadd.f32 %v260, %v763
      %v765 = vpop.f32.mrb[0].mxu0
      %766 = vmatprep.mubr.bf16.mxu0 0
      %767 = vmatmul.mubr.bf16.gmra.mrb[0].mxu0 %v419
      %v768 = vpop.f32.mrb[0].mxu0
      %v769 = vadd.f32 %v260, %v768
      %v770 = vpop.f32.mrb[0].mxu0
      %v771 = vpop.f32.mrb[0].mxu0
      %v772 = vadd.f32 %v260, %v771
      %v773 = vpop.f32.mrb[0].mxu0
      %774 = vmatprep.mubr.bf16.mxu0 0
      %775 = vmatmul.mubr.bf16.gmra.mrb[0].mxu0 %v420
      %v776 = vpop.f32.mrb[0].mxu0
      %v777 = vadd.f32 %v260, %v776
      %v778 = vpop.f32.mrb[0].mxu0
      %v779 = vpop.f32.mrb[0].mxu0
      %v780 = vadd.f32 %v260, %v779
      %v781 = vpop.f32.mrb[0].mxu0
      %782 = vmatprep.mubr.bf16.mxu0 0
      %783 = vmatmul.mubr.bf16.gmra.mrb[0].mxu0 %v421
      %v784 = vpop.f32.mrb[0].mxu0
      %v785 = vadd.f32 %v260, %v784
      %v786 = vpop.f32.mrb[0].mxu0
      %v787 = vpop.f32.mrb[0].mxu0
      %v788 = vadd.f32 %v260, %v787
      %v789 = vpop.f32.mrb[0].mxu0
      %790 = vdwg.mxu0
      %v791 = vxor.u32 %v537, 2147483648
      %v792 = vxor.u32 %v540, 2147483648
      %v793 = vxor.u32 %v545, 2147483648
      %v794 = vxor.u32 %v548, 2147483648
      %v795 = vxor.u32 %v553, 2147483648
      %v796 = vxor.u32 %v556, 2147483648
      %v797 = vxor.u32 %v561, 2147483648
      %v798 = vxor.u32 %v564, 2147483648
      %v799 = vxor.u32 %v569, 2147483648
      %v800 = vxor.u32 %v572, 2147483648
      %v801 = vxor.u32 %v577, 2147483648
      %v802 = vxor.u32 %v580, 2147483648
      %v803 = vxor.u32 %v585, 2147483648
      %v804 = vxor.u32 %v588, 2147483648
      %v805 = vxor.u32 %v593, 2147483648
      %v806 = vxor.u32 %v596, 2147483648
      %v807 = vxor.u32 %v601, 2147483648
      %v808 = vxor.u32 %v604, 2147483648
      %v809 = vxor.u32 %v609, 2147483648
      %v810 = vxor.u32 %v612, 2147483648
      %v811 = vxor.u32 %v617, 2147483648
      %v812 = vxor.u32 %v620, 2147483648
      %v813 = vxor.u32 %v625, 2147483648
      %v814 = vxor.u32 %v628, 2147483648
      %v815 = vxor.u32 %v633, 2147483648
      %v816 = vxor.u32 %v636, 2147483648
      %v817 = vxor.u32 %v641, 2147483648
      %v818 = vxor.u32 %v644, 2147483648
      %v819 = vxor.u32 %v649, 2147483648
      %v820 = vxor.u32 %v652, 2147483648
      %v821 = vxor.u32 %v657, 2147483648
      %v822 = vxor.u32 %v660, 2147483648
      %v823 = vxor.u32 %v665, 2147483648
      %v824 = vxor.u32 %v668, 2147483648
      %v825 = vxor.u32 %v673, 2147483648
      %v826 = vxor.u32 %v676, 2147483648
      %v827 = vxor.u32 %v681, 2147483648
      %v828 = vxor.u32 %v684, 2147483648
      %v829 = vxor.u32 %v689, 2147483648
      %v830 = vxor.u32 %v692, 2147483648
      %v831 = vxor.u32 %v697, 2147483648
      %v832 = vxor.u32 %v700, 2147483648
      %v833 = vxor.u32 %v705, 2147483648
      %v834 = vxor.u32 %v708, 2147483648
      %v835 = vxor.u32 %v713, 2147483648
      %v836 = vxor.u32 %v716, 2147483648
      %v837 = vxor.u32 %v721, 2147483648
      %v838 = vxor.u32 %v724, 2147483648
      %v839 = vxor.u32 %v729, 2147483648
      %v840 = vxor.u32 %v732, 2147483648
      %v841 = vxor.u32 %v737, 2147483648
      %v842 = vxor.u32 %v740, 2147483648
      %v843 = vxor.u32 %v745, 2147483648
      %v844 = vxor.u32 %v748, 2147483648
      %v845 = vxor.u32 %v753, 2147483648
      %v846 = vxor.u32 %v756, 2147483648
      %v847 = vxor.u32 %v761, 2147483648
      %v848 = vxor.u32 %v764, 2147483648
      %v849 = vxor.u32 %v769, 2147483648
      %v850 = vxor.u32 %v772, 2147483648
      %v851 = vxor.u32 %v777, 2147483648
      %v852 = vxor.u32 %v780, 2147483648
      %v853 = vxor.u32 %v785, 2147483648
      %v854 = vxor.u32 %v788, 2147483648
      %v855 = vmul.f32 %v791, 1.442695
      %v856 = vpow.pop %v855
      %v857 = vmul.f32 %v792, 1.442695
      %v858 = vpow.pop %v857
      %v859 = vmul.f32 %v793, 1.442695
      %v860 = vpow.pop %v859
      %v861 = vmul.f32 %v794, 1.442695
      %v862 = vpow.pop %v861
      %v863 = vmul.f32 %v795, 1.442695
      %v864 = vpow.pop %v863
      %v865 = vmul.f32 %v796, 1.442695
      %v866 = vpow.pop %v865
      %v867 = vmul.f32 %v797, 1.442695
      %v868 = vpow.pop %v867
      %v869 = vmul.f32 %v798, 1.442695
      %v870 = vpow.pop %v869
      %v871 = vmul.f32 %v799, 1.442695
      %v872 = vpow.pop %v871
      %v873 = vmul.f32 %v800, 1.442695
      %v874 = vpow.pop %v873
      %v875 = vmul.f32 %v801, 1.442695
      %v876 = vpow.pop %v875
      %v877 = vmul.f32 %v802, 1.442695
      %v878 = vpow.pop %v877
      %v879 = vmul.f32 %v803, 1.442695
      %v880 = vpow.pop %v879
      %v881 = vmul.f32 %v804, 1.442695
      %v882 = vpow.pop %v881
      %v883 = vmul.f32 %v805, 1.442695
      %v884 = vpow.pop %v883
      %v885 = vmul.f32 %v806, 1.442695
      %v886 = vpow.pop %v885
      %v887 = vmul.f32 %v807, 1.442695
      %v888 = vpow.pop %v887
      %v889 = vmul.f32 %v808, 1.442695
      %v890 = vpow.pop %v889
      %v891 = vmul.f32 %v809, 1.442695
      %v892 = vpow.pop %v891
      %v893 = vmul.f32 %v810, 1.442695
      %v894 = vpow.pop %v893
      %v895 = vmul.f32 %v811, 1.442695
      %v896 = vpow.pop %v895
      %v897 = vmul.f32 %v812, 1.442695
      %v898 = vpow.pop %v897
      %v899 = vmul.f32 %v813, 1.442695
      %v900 = vpow.pop %v899
      %v901 = vmul.f32 %v814, 1.442695
      %v902 = vpow.pop %v901
      %v903 = vmul.f32 %v815, 1.442695
      %v904 = vpow.pop %v903
      %v905 = vmul.f32 %v816, 1.442695
      %v906 = vpow.pop %v905
      %v907 = vmul.f32 %v817, 1.442695
      %v908 = vpow.pop %v907
      %v909 = vmul.f32 %v818, 1.442695
      %v910 = vpow.pop %v909
      %v911 = vmul.f32 %v819, 1.442695
      %v912 = vpow.pop %v911
      %v913 = vmul.f32 %v820, 1.442695
      %v914 = vpow.pop %v913
      %v915 = vmul.f32 %v821, 1.442695
      %v916 = vpow.pop %v915
      %v917 = vmul.f32 %v822, 1.442695
      %v918 = vpow.pop %v917
      %v919 = vmul.f32 %v823, 1.442695
      %v920 = vpow.pop %v919
      %v921 = vmul.f32 %v824, 1.442695
      %v922 = vpow.pop %v921
      %v923 = vmul.f32 %v825, 1.442695
      %v924 = vpow.pop %v923
      %v925 = vmul.f32 %v826, 1.442695
      %v926 = vpow.pop %v925
      %v927 = vmul.f32 %v827, 1.442695
      %v928 = vpow.pop %v927
      %v929 = vmul.f32 %v828, 1.442695
      %v930 = vpow.pop %v929
      %v931 = vmul.f32 %v829, 1.442695
      %v932 = vpow.pop %v931
      %v933 = vmul.f32 %v830, 1.442695
      %v934 = vpow.pop %v933
      %v935 = vmul.f32 %v831, 1.442695
      %v936 = vpow.pop %v935
      %v937 = vmul.f32 %v832, 1.442695
      %v938 = vpow.pop %v937
      %v939 = vmul.f32 %v833, 1.442695
      %v940 = vpow.pop %v939
      %v941 = vmul.f32 %v834, 1.442695
      %v942 = vpow.pop %v941
      %v943 = vmul.f32 %v835, 1.442695
      %v944 = vpow.pop %v943
      %v945 = vmul.f32 %v836, 1.442695
      %v946 = vpow.pop %v945
      %v947 = vmul.f32 %v837, 1.442695
      %v948 = vpow.pop %v947
      %v949 = vmul.f32 %v838, 1.442695
      %v950 = vpow.pop %v949
      %v951 = vmul.f32 %v839, 1.442695
      %v952 = vpow.pop %v951
      %v953 = vmul.f32 %v840, 1.442695
      %v954 = vpow.pop %v953
      %v955 = vmul.f32 %v841, 1.442695
      %v956 = vpow.pop %v955
      %v957 = vmul.f32 %v842, 1.442695
      %v958 = vpow.pop %v957
      %v959 = vmul.f32 %v843, 1.442695
      %v960 = vpow.pop %v959
      %v961 = vmul.f32 %v844, 1.442695
      %v962 = vpow.pop %v961
      %v963 = vmul.f32 %v845, 1.442695
      %v964 = vpow.pop %v963
      %v965 = vmul.f32 %v846, 1.442695
      %v966 = vpow.pop %v965
      %v967 = vmul.f32 %v847, 1.442695
      %v968 = vpow.pop %v967
      %v969 = vmul.f32 %v848, 1.442695
      %v970 = vpow.pop %v969
      %v971 = vmul.f32 %v849, 1.442695
      %v972 = vpow.pop %v971
      %v973 = vmul.f32 %v850, 1.442695
      %v974 = vpow.pop %v973
      %v975 = vmul.f32 %v851, 1.442695
      %v976 = vpow.pop %v975
      %v977 = vmul.f32 %v852, 1.442695
      %v978 = vpow.pop %v977
      %v979 = vmul.f32 %v853, 1.442695
      %v980 = vpow.pop %v979
      %v981 = vmul.f32 %v854, 1.442695
      %v982 = vpow.pop %v981
      %v983 = vadd.f32 %v856, 1.0
      %v984 = vadd.f32 %v858, 1.0
      %v985 = vadd.f32 %v860, 1.0
      %v986 = vadd.f32 %v862, 1.0
      %v987 = vadd.f32 %v864, 1.0
      %v988 = vadd.f32 %v866, 1.0
      %v989 = vadd.f32 %v868, 1.0
      %v990 = vadd.f32 %v870, 1.0
      %v991 = vadd.f32 %v872, 1.0
      %v992 = vadd.f32 %v874, 1.0
      %v993 = vadd.f32 %v876, 1.0
      %v994 = vadd.f32 %v878, 1.0
      %v995 = vadd.f32 %v880, 1.0
      %v996 = vadd.f32 %v882, 1.0
      %v997 = vadd.f32 %v884, 1.0
      %v998 = vadd.f32 %v886, 1.0
      %v999 = vadd.f32 %v888, 1.0
      %v1000 = vadd.f32 %v890, 1.0
      %v1001 = vadd.f32 %v892, 1.0
      %v1002 = vadd.f32 %v894, 1.0
      %v1003 = vadd.f32 %v896, 1.0
      %v1004 = vadd.f32 %v898, 1.0
      %v1005 = vadd.f32 %v900, 1.0
      %v1006 = vadd.f32 %v902, 1.0
      %v1007 = vadd.f32 %v904, 1.0
      %v1008 = vadd.f32 %v906, 1.0
      %v1009 = vadd.f32 %v908, 1.0
      %v1010 = vadd.f32 %v910, 1.0
      %v1011 = vadd.f32 %v912, 1.0
      %v1012 = vadd.f32 %v914, 1.0
      %v1013 = vadd.f32 %v916, 1.0
      %v1014 = vadd.f32 %v918, 1.0
      %v1015 = vadd.f32 %v920, 1.0
      %v1016 = vadd.f32 %v922, 1.0
      %v1017 = vadd.f32 %v924, 1.0
      %v1018 = vadd.f32 %v926, 1.0
      %v1019 = vadd.f32 %v928, 1.0
      %v1020 = vadd.f32 %v930, 1.0
      %v1021 = vadd.f32 %v932, 1.0
      %v1022 = vadd.f32 %v934, 1.0
      %v1023 = vadd.f32 %v936, 1.0
      %v1024 = vadd.f32 %v938, 1.0
      %v1025 = vadd.f32 %v940, 1.0
      %v1026 = vadd.f32 %v942, 1.0
      %v1027 = vadd.f32 %v944, 1.0
      %v1028 = vadd.f32 %v946, 1.0
      %v1029 = vadd.f32 %v948, 1.0
      %v1030 = vadd.f32 %v950, 1.0
      %v1031 = vadd.f32 %v952, 1.0
      %v1032 = vadd.f32 %v954, 1.0
      %v1033 = vadd.f32 %v956, 1.0
      %v1034 = vadd.f32 %v958, 1.0
      %v1035 = vadd.f32 %v960, 1.0
      %v1036 = vadd.f32 %v962, 1.0
      %v1037 = vadd.f32 %v964, 1.0
      %v1038 = vadd.f32 %v966, 1.0
      %v1039 = vadd.f32 %v968, 1.0
      %v1040 = vadd.f32 %v970, 1.0
      %v1041 = vadd.f32 %v972, 1.0
      %v1042 = vadd.f32 %v974, 1.0
      %v1043 = vadd.f32 %v976, 1.0
      %v1044 = vadd.f32 %v978, 1.0
      %v1045 = vadd.f32 %v980, 1.0
      %v1046 = vadd.f32 %v982, 1.0
      %v1047 = vrcp.pop %v983
      %v1048 = vmul.f32 1.0, %v1047
      %v1049 = vrcp.pop %v984
      %v1050 = vmul.f32 1.0, %v1049
      %v1051 = vrcp.pop %v985
      %v1052 = vmul.f32 1.0, %v1051
      %v1053 = vrcp.pop %v986
      %v1054 = vmul.f32 1.0, %v1053
      %v1055 = vrcp.pop %v987
      %v1056 = vmul.f32 1.0, %v1055
      %v1057 = vrcp.pop %v988
      %v1058 = vmul.f32 1.0, %v1057
      %v1059 = vrcp.pop %v989
      %v1060 = vmul.f32 1.0, %v1059
      %v1061 = vrcp.pop %v990
      %v1062 = vmul.f32 1.0, %v1061
      %v1063 = vrcp.pop %v991
      %v1064 = vmul.f32 1.0, %v1063
      %v1065 = vrcp.pop %v992
      %v1066 = vmul.f32 1.0, %v1065
      %v1067 = vrcp.pop %v993
      %v1068 = vmul.f32 1.0, %v1067
      %v1069 = vrcp.pop %v994
      %v1070 = vmul.f32 1.0, %v1069
      %v1071 = vrcp.pop %v995
      %v1072 = vmul.f32 1.0, %v1071
      %v1073 = vrcp.pop %v996
      %v1074 = vmul.f32 1.0, %v1073
      %v1075 = vrcp.pop %v997
      %v1076 = vmul.f32 1.0, %v1075
      %v1077 = vrcp.pop %v998
      %v1078 = vmul.f32 1.0, %v1077
      %v1079 = vrcp.pop %v999
      %v1080 = vmul.f32 1.0, %v1079
      %v1081 = vrcp.pop %v1000
      %v1082 = vmul.f32 1.0, %v1081
      %v1083 = vrcp.pop %v1001
      %v1084 = vmul.f32 1.0, %v1083
      %v1085 = vrcp.pop %v1002
      %v1086 = vmul.f32 1.0, %v1085
      %v1087 = vrcp.pop %v1003
      %v1088 = vmul.f32 1.0, %v1087
      %v1089 = vrcp.pop %v1004
      %v1090 = vmul.f32 1.0, %v1089
      %v1091 = vrcp.pop %v1005
      %v1092 = vmul.f32 1.0, %v1091
      %v1093 = vrcp.pop %v1006
      %v1094 = vmul.f32 1.0, %v1093
      %v1095 = vrcp.pop %v1007
      %v1096 = vmul.f32 1.0, %v1095
      %v1097 = vrcp.pop %v1008
      %v1098 = vmul.f32 1.0, %v1097
      %v1099 = vrcp.pop %v1009
      %v1100 = vmul.f32 1.0, %v1099
      %v1101 = vrcp.pop %v1010
      %v1102 = vmul.f32 1.0, %v1101
      %v1103 = vrcp.pop %v1011
      %v1104 = vmul.f32 1.0, %v1103
      %v1105 = vrcp.pop %v1012
      %v1106 = vmul.f32 1.0, %v1105
      %v1107 = vrcp.pop %v1013
      %v1108 = vmul.f32 1.0, %v1107
      %v1109 = vrcp.pop %v1014
      %v1110 = vmul.f32 1.0, %v1109
      %v1111 = vrcp.pop %v1015
      %v1112 = vmul.f32 1.0, %v1111
      %v1113 = vrcp.pop %v1016
      %v1114 = vmul.f32 1.0, %v1113
      %v1115 = vrcp.pop %v1017
      %v1116 = vmul.f32 1.0, %v1115
      %v1117 = vrcp.pop %v1018
      %v1118 = vmul.f32 1.0, %v1117
      %v1119 = vrcp.pop %v1019
      %v1120 = vmul.f32 1.0, %v1119
      %v1121 = vrcp.pop %v1020
      %v1122 = vmul.f32 1.0, %v1121
      %v1123 = vrcp.pop %v1021
      %v1124 = vmul.f32 1.0, %v1123
      %v1125 = vrcp.pop %v1022
      %v1126 = vmul.f32 1.0, %v1125
      %v1127 = vrcp.pop %v1023
      %v1128 = vmul.f32 1.0, %v1127
      %v1129 = vrcp.pop %v1024
      %v1130 = vmul.f32 1.0, %v1129
      %v1131 = vrcp.pop %v1025
      %v1132 = vmul.f32 1.0, %v1131
      %v1133 = vrcp.pop %v1026
      %v1134 = vmul.f32 1.0, %v1133
      %v1135 = vrcp.pop %v1027
      %v1136 = vmul.f32 1.0, %v1135
      %v1137 = vrcp.pop %v1028
      %v1138 = vmul.f32 1.0, %v1137
      %v1139 = vrcp.pop %v1029
      %v1140 = vmul.f32 1.0, %v1139
      %v1141 = vrcp.pop %v1030
      %v1142 = vmul.f32 1.0, %v1141
      %v1143 = vrcp.pop %v1031
      %v1144 = vmul.f32 1.0, %v1143
      %v1145 = vrcp.pop %v1032
      %v1146 = vmul.f32 1.0, %v1145
      %v1147 = vrcp.pop %v1033
      %v1148 = vmul.f32 1.0, %v1147
      %v1149 = vrcp.pop %v1034
      %v1150 = vmul.f32 1.0, %v1149
      %v1151 = vrcp.pop %v1035
      %v1152 = vmul.f32 1.0, %v1151
      %v1153 = vrcp.pop %v1036
      %v1154 = vmul.f32 1.0, %v1153
      %v1155 = vrcp.pop %v1037
      %v1156 = vmul.f32 1.0, %v1155
      %v1157 = vrcp.pop %v1038
      %v1158 = vmul.f32 1.0, %v1157
      %v1159 = vrcp.pop %v1039
      %v1160 = vmul.f32 1.0, %v1159
      %v1161 = vrcp.pop %v1040
      %v1162 = vmul.f32 1.0, %v1161
      %v1163 = vrcp.pop %v1041
      %v1164 = vmul.f32 1.0, %v1163
      %v1165 = vrcp.pop %v1042
      %v1166 = vmul.f32 1.0, %v1165
      %v1167 = vrcp.pop %v1043
      %v1168 = vmul.f32 1.0, %v1167
      %v1169 = vrcp.pop %v1044
      %v1170 = vmul.f32 1.0, %v1169
      %v1171 = vrcp.pop %v1045
      %v1172 = vmul.f32 1.0, %v1171
      %v1173 = vrcp.pop %v1046
      %v1174 = vmul.f32 1.0, %v1173
      %v1175 = vmul.f32 %v537, %v1048
      %v1176 = vmul.f32 %v540, %v1050
      %v1177 = vmul.f32 %v545, %v1052
      %v1178 = vmul.f32 %v548, %v1054
      %v1179 = vmul.f32 %v553, %v1056
      %v1180 = vmul.f32 %v556, %v1058
      %v1181 = vmul.f32 %v561, %v1060
      %v1182 = vmul.f32 %v564, %v1062
      %v1183 = vmul.f32 %v569, %v1064
      %v1184 = vmul.f32 %v572, %v1066
      %v1185 = vmul.f32 %v577, %v1068
      %v1186 = vmul.f32 %v580, %v1070
      %v1187 = vmul.f32 %v585, %v1072
      %v1188 = vmul.f32 %v588, %v1074
      %v1189 = vmul.f32 %v593, %v1076
      %v1190 = vmul.f32 %v596, %v1078
      %v1191 = vmul.f32 %v601, %v1080
      %v1192 = vmul.f32 %v604, %v1082
      %v1193 = vmul.f32 %v609, %v1084
      %v1194 = vmul.f32 %v612, %v1086
      %v1195 = vmul.f32 %v617, %v1088
      %v1196 = vmul.f32 %v620, %v1090
      %v1197 = vmul.f32 %v625, %v1092
      %v1198 = vmul.f32 %v628, %v1094
      %v1199 = vmul.f32 %v633, %v1096
      %v1200 = vmul.f32 %v636, %v1098
      %v1201 = vmul.f32 %v641, %v1100
      %v1202 = vmul.f32 %v644, %v1102
      %v1203 = vmul.f32 %v649, %v1104
      %v1204 = vmul.f32 %v652, %v1106
      %v1205 = vmul.f32 %v657, %v1108
      %v1206 = vmul.f32 %v660, %v1110
      %v1207 = vmul.f32 %v665, %v1112
      %v1208 = vmul.f32 %v668, %v1114
      %v1209 = vmul.f32 %v673, %v1116
      %v1210 = vmul.f32 %v676, %v1118
      %v1211 = vmul.f32 %v681, %v1120
      %v1212 = vmul.f32 %v684, %v1122
      %v1213 = vmul.f32 %v689, %v1124
      %v1214 = vmul.f32 %v692, %v1126
      %v1215 = vmul.f32 %v697, %v1128
      %v1216 = vmul.f32 %v700, %v1130
      %v1217 = vmul.f32 %v705, %v1132
      %v1218 = vmul.f32 %v708, %v1134
      %v1219 = vmul.f32 %v713, %v1136
      %v1220 = vmul.f32 %v716, %v1138
      %v1221 = vmul.f32 %v721, %v1140
      %v1222 = vmul.f32 %v724, %v1142
      %v1223 = vmul.f32 %v729, %v1144
      %v1224 = vmul.f32 %v732, %v1146
      %v1225 = vmul.f32 %v737, %v1148
      %v1226 = vmul.f32 %v740, %v1150
      %v1227 = vmul.f32 %v745, %v1152
      %v1228 = vmul.f32 %v748, %v1154
      %v1229 = vmul.f32 %v753, %v1156
      %v1230 = vmul.f32 %v756, %v1158
      %v1231 = vmul.f32 %v761, %v1160
      %v1232 = vmul.f32 %v764, %v1162
      %v1233 = vmul.f32 %v769, %v1164
      %v1234 = vmul.f32 %v772, %v1166
      %v1235 = vmul.f32 %v777, %v1168
      %v1236 = vmul.f32 %v780, %v1170
      %v1237 = vmul.f32 %v785, %v1172
      %v1238 = vmul.f32 %v788, %v1174
      %1239 = vst [vmem:[%s172] sm:$0xff] %v1175
      %1240 = vst [vmem:[%s172 + $0x8] sm:$0xff] %v1176
      %1241 = vst [vmem:[%s172 + $0x10] sm:$0xff] %v1177
      %1242 = vst [vmem:[%s172 + $0x18] sm:$0xff] %v1178
      %1243 = vst [vmem:[%s172 + $0x20] sm:$0xff] %v1179
      %1244 = vst [vmem:[%s172 + $0x28] sm:$0xff] %v1180
      %1245 = vst [vmem:[%s172 + $0x30] sm:$0xff] %v1181
      %1246 = vst [vmem:[%s172 + $0x38] sm:$0xff] %v1182
      %1247 = vst [vmem:[%s172 + $0x40] sm:$0xff] %v1183
      %1248 = vst [vmem:[%s172 + $0x48] sm:$0xff] %v1184
      %1249 = vst [vmem:[%s172 + $0x50] sm:$0xff] %v1185
      %1250 = vst [vmem:[%s172 + $0x58] sm:$0xff] %v1186
      %1251 = vst [vmem:[%s172 + $0x60] sm:$0xff] %v1187
      %1252 = vst [vmem:[%s172 + $0x68] sm:$0xff] %v1188
      %1253 = vst [vmem:[%s172 + $0x70] sm:$0xff] %v1189
      %1254 = vst [vmem:[%s172 + $0x78] sm:$0xff] %v1190
      %1255 = vst [vmem:[%s172 + $0x80] sm:$0xff] %v1191
      %1256 = vst [vmem:[%s172 + $0x88] sm:$0xff] %v1192
      %1257 = vst [vmem:[%s172 + $0x90] sm:$0xff] %v1193
      %1258 = vst [vmem:[%s172 + $0x98] sm:$0xff] %v1194
      %1259 = vst [vmem:[%s172 + $0xa0] sm:$0xff] %v1195
      %1260 = vst [vmem:[%s172 + $0xa8] sm:$0xff] %v1196
      %1261 = vst [vmem:[%s172 + $0xb0] sm:$0xff] %v1197
      %1262 = vst [vmem:[%s172 + $0xb8] sm:$0xff] %v1198
      %1263 = vst [vmem:[%s172 + $0xc0] sm:$0xff] %v1199
      %1264 = vst [vmem:[%s172 + $0xc8] sm:$0xff] %v1200
      %1265 = vst [vmem:[%s172 + $0xd0] sm:$0xff] %v1201
      %1266 = vst [vmem:[%s172 + $0xd8] sm:$0xff] %v1202
      %1267 = vst [vmem:[%s172 + $0xe0] sm:$0xff] %v1203
      %1268 = vst [vmem:[%s172 + $0xe8] sm:$0xff] %v1204
      %1269 = vst [vmem:[%s172 + $0xf0] sm:$0xff] %v1205
      %1270 = vst [vmem:[%s172 + $0xf8] sm:$0xff] %v1206
      %1271 = vst [vmem:[%s172 + $0x100] sm:$0xff] %v1207
      %1272 = vst [vmem:[%s172 + $0x108] sm:$0xff] %v1208
      %1273 = vst [vmem:[%s172 + $0x110] sm:$0xff] %v1209
      %1274 = vst [vmem:[%s172 + $0x118] sm:$0xff] %v1210
      %1275 = vst [vmem:[%s172 + $0x120] sm:$0xff] %v1211
      %1276 = vst [vmem:[%s172 + $0x128] sm:$0xff] %v1212
      %1277 = vst [vmem:[%s172 + $0x130] sm:$0xff] %v1213
      %1278 = vst [vmem:[%s172 + $0x138] sm:$0xff] %v1214
      %1279 = vst [vmem:[%s172 + $0x140] sm:$0xff] %v1215
      %1280 = vst [vmem:[%s172 + $0x148] sm:$0xff] %v1216
      %1281 = vst [vmem:[%s172 + $0x150] sm:$0xff] %v1217
      %1282 = vst [vmem:[%s172 + $0x158] sm:$0xff] %v1218
      %1283 = vst [vmem:[%s172 + $0x160] sm:$0xff] %v1219
      %1284 = vst [vmem:[%s172 + $0x168] sm:$0xff] %v1220
      %1285 = vst [vmem:[%s172 + $0x170] sm:$0xff] %v1221
      %1286 = vst [vmem:[%s172 + $0x178] sm:$0xff] %v1222
      %1287 = vst [vmem:[%s172 + $0x180] sm:$0xff] %v1223
      %1288 = vst [vmem:[%s172 + $0x188] sm:$0xff] %v1224
      %1289 = vst [vmem:[%s172 + $0x190] sm:$0xff] %v1225
      %1290 = vst [vmem:[%s172 + $0x198] sm:$0xff] %v1226
      %1291 = vst [vmem:[%s172 + $0x1a0] sm:$0xff] %v1227
      %1292 = vst [vmem:[%s172 + $0x1a8] sm:$0xff] %v1228
      %1293 = vst [vmem:[%s172 + $0x1b0] sm:$0xff] %v1229
      %1294 = vst [vmem:[%s172 + $0x1b8] sm:$0xff] %v1230
      %1295 = vst [vmem:[%s172 + $0x1c0] sm:$0xff] %v1231
      %1296 = vst [vmem:[%s172 + $0x1c8] sm:$0xff] %v1232
      %1297 = vst [vmem:[%s172 + $0x1d0] sm:$0xff] %v1233
      %1298 = vst [vmem:[%s172 + $0x1d8] sm:$0xff] %v1234
      %1299 = vst [vmem:[%s172 + $0x1e0] sm:$0xff] %v1235
      %1300 = vst [vmem:[%s172 + $0x1e8] sm:$0xff] %v1236
      %1301 = vst [vmem:[%s172 + $0x1f0] sm:$0xff] %v1237
      %1302 = vst [vmem:[%s172 + $0x1f8] sm:$0xff] %v1238
      %s1303 = smul.u32 64, %s14
      %p1304 = scmp.lt.s32.totalorder %s1303, 255
      %s1305 = scalar_select %p1304, %s1303, 255
      %s1306 = smul.addr %s1305, 8
      %s1307 = scalar_lea.vmem %s3, %s1306
      // Predicated region
      $region33: #{_lambda_.29} parent=31 // pred_check
        %p1308 = pneg %p100
      $region34: #{_lambda_.29} parent=31 // pred_check_branch
        %1310 = sbr.rel (%p1308) target = $region36
      $region35: #{_lambda_.29} parent=31 // pred_region
        %s1311 = smul.u32 64, %s14
      $region36: #{_lambda_.29} parent=31 // pred_fallthru
        _
    $region32: #{_lambda_.29} parent=5 // pred_fallthru
      _
    %p1312 = scmp.le.s32.totalorder 2, %s9
    // Predicated region
    $region37: #{_lambda_.29} parent=5 // pred_check
      %p1313 = pneg %p1312
    $region38: #{_lambda_.29} parent=5 // pred_check_branch
      %1315 = sbr.rel (%p1313) target = $region40
    $region39: #{_lambda_.29} parent=5 // pred_region
      %s1316 = ssub.s32 %s9, 2
      // Predicated region
      $region41: #{_lambda_.29} parent=39 // pred_check
        %p1317 = pneg %p106
      $region42: #{_lambda_.29} parent=39 // pred_check_branch
        %1319 = sbr.rel (%p1317) target = $region44
      $region43: #{_lambda_.29} parent=39 // pred_region
        %s1320 = smul.u32 64, %s15
        %p1321 = scmp.lt.s32.totalorder %s1320, 255
        %s1322 = scalar_select %p1321, %s1320, 255
        %s1323 = smul.addr %s1322, 8
        %s1324 = scalar_lea.vmem %s3, %s1323
      $region44: #{_lambda_.29} parent=39 // pred_fallthru
        _
    $region40: #{_lambda_.29} parent=5 // pred_fallthru
      _
  $region6: #{_lambda_.29} parent=0 // loop_footer
    %s13 = sadd.s32 1, %s9
  $region7: #{_lambda_.29} parent=0 // loop_footer_branch
    %8 = sbr.rel target = $region3
  $region8: #{_lambda_.29} parent=0 // loop_exit
    _

// kernel: _lambda_.30
$region0: #{_lambda_.30}
  #allocation0 [shape = 'u32[]', space=smem, size = 0x4, offset = 0x4, fixed_abs, tag = 'smem constant byte address 0x4 - core index']
  #allocation1 [shape = 'u32[144,128]{1,0:T(1,128)}', space=vmem, size = 0x12000, scoped, tag = 'internal scratch']
  %s0 = inlined_call_operand.vmem [shape: bf16[512,128], index: 0, kind: input, shape index: {}]
  %s1 = inlined_call_operand.vmem [shape: bf16[128,128], index: 1, kind: input, shape index: {}]
  %s2 = inlined_call_operand.vmem [shape: f32[1,128], index: 2, kind: input, shape index: {}]
  %s3 = inlined_call_operand.vmem [shape: f32[512,128], index: 3, kind: output, shape index: {}]
  %s4 = sld [smem:[#allocation0]]
  $region45: #{_lambda_.30} parent=0
    _
  %s6 = ssub.s32 1, %s4
  %s7 = scalar_select 0, %s6, %s4
  loop: start=0, step=1, limit=4
  $region2: #{_lambda_.30} parent=0 // loop_pre_header
    _
  $region3: #{_lambda_.30} parent=0 // loop_header
    %s9 = sphi 0, %s13
    %p10 = scmp.ge.s32.totalorder %s9, 4
    %s19 = sphi 0, %s21
    %s22 = sphi 0, %s19
    %s23 = sphi 0, %s22
    %s39 = sphi 0, %s23
    %s43 = sphi 0, %s43
    %s45 = sphi 0, %s43
    %s46 = sphi 0, %s45
    %s60 = sphi 0, %s46
    %s64 = sphi 0, %s64
    %s66 = sphi 0, %s64
    %s67 = sphi 0, %s66
    %s81 = sphi 0, %s67
    %s87 = sphi 0, %s89
    %s90 = sphi 0, %s87
    %s91 = sphi 0, %s90
    %s107 = sphi 0, %s91
  $region4: #{_lambda_.30} parent=0 // loop_header_branch
    %12 = sbr.rel (%p10) target = $region8
  $region5: #{_lambda_.30} parent=0 // loop_body
    %s14 = ssub.s32 %s9, 1
    %s15 = ssub.s32 %s9, 2
    %s16 = sadd.s32 %s9, 1
    %s17 = ssub.s32 %s9, %s16
    %p18 = scmp.eq.s32.totalorder %s17, 0
    %s20 = sadd.s32 %s19, 1
    %s21 = scalar_select %p18, %s19, %s20
    %p24 = pneg %p18
    %p25 = scmp.eq.s32.totalorder %s9, 1
    %p26 = por %p24, %p25
    %p27 = scmp.ne.s32.totalorder %s19, %s22
    %p28 = scmp.eq.s32.totalorder %s9, 0
    %p29 = por %p27, %p28
    %p30 = scmp.ne.s32.totalorder %s19, %s22
    %p31 = scmp.eq.s32.totalorder %s14, 1
    %p32 = por %p30, %p31
    %p33 = scmp.ne.s32.totalorder %s22, %s23
    %p34 = scmp.eq.s32.totalorder %s14, 0
    %p35 = por %p33, %p34
    %p36 = scmp.ne.s32.totalorder %s22, %s23
    %p37 = scmp.eq.s32.totalorder %s15, 1
    %p38 = por %p36, %p37
    %p40 = scmp.ne.s32.totalorder %s23, %s39
    %p41 = scmp.eq.s32.totalorder %s15, 0
    %p42 = por %p40, %p41
    %s44 = sadd.s32 %s43, 1
    %p47 = scmp.eq.s32.totalorder %s9, 1
    %p48 = scmp.ne.s32.totalorder %s43, %s45
    %p49 = scmp.eq.s32.totalorder %s9, 0
    %p50 = por %p48, %p49
    %p51 = scmp.ne.s32.totalorder %s43, %s45
    %p52 = scmp.eq.s32.totalorder %s14, 1
    %p53 = por %p51, %p52
    %p54 = scmp.ne.s32.totalorder %s45, %s46
    %p55 = scmp.eq.s32.totalorder %s14, 0
    %p56 = por %p54, %p55
    %p57 = scmp.ne.s32.totalorder %s45, %s46
    %p58 = scmp.eq.s32.totalorder %s15, 1
    %p59 = por %p57, %p58
    %p61 = scmp.ne.s32.totalorder %s46, %s60
    %p62 = scmp.eq.s32.totalorder %s15, 0
    %p63 = por %p61, %p62
    %s65 = sadd.s32 %s64, 1
    %p68 = scmp.eq.s32.totalorder %s9, 1
    %p69 = scmp.ne.s32.totalorder %s64, %s66
    %p70 = scmp.eq.s32.totalorder %s9, 0
    %p71 = por %p69, %p70
    %p72 = scmp.ne.s32.totalorder %s64, %s66
    %p73 = scmp.eq.s32.totalorder %s14, 1
    %p74 = por %p72, %p73
    %p75 = scmp.ne.s32.totalorder %s66, %s67
    %p76 = scmp.eq.s32.totalorder %s14, 0
    %p77 = por %p75, %p76
    %p78 = scmp.ne.s32.totalorder %s66, %s67
    %p79 = scmp.eq.s32.totalorder %s15, 1
    %p80 = por %p78, %p79
    %p82 = scmp.ne.s32.totalorder %s67, %s81
    %p83 = scmp.eq.s32.totalorder %s15, 0
    %p84 = por %p82, %p83
    %s85 = ssub.s32 %s9, %s16
    %p86 = scmp.eq.s32.totalorder %s85, 0
    %s88 = sadd.s32 %s87, 1
    %s89 = scalar_select %p86, %s87, %s88
    %p92 = pneg %p86
    %p93 = scmp.eq.s32.totalorder %s9, 1
    %p94 = por %p92, %p93
    %p95 = scmp.ne.s32.totalorder %s87, %s90
    %p96 = scmp.eq.s32.totalorder %s9, 0
    %p97 = por %p95, %p96
    %p98 = scmp.ne.s32.totalorder %s87, %s90
    %p99 = scmp.eq.s32.totalorder %s14, 1
    %p100 = por %p98, %p99
    %p101 = scmp.ne.s32.totalorder %s90, %s91
    %p102 = scmp.eq.s32.totalorder %s14, 0
    %p103 = por %p101, %p102
    %p104 = scmp.ne.s32.totalorder %s90, %s91
    %p105 = scmp.eq.s32.totalorder %s15, 1
    %p106 = por %p104, %p105
    %p108 = scmp.ne.s32.totalorder %s91, %s107
    %p109 = scmp.eq.s32.totalorder %s15, 0
    %p110 = por %p108, %p109
    %p111 = scmp.le.s32.totalorder 1, %s9
    %p112 = scmp.lt.s32.totalorder %s9, 3
    %p113 = pnand %p111, %p112
    %p114 = pneg %p113
    // Predicated region
    $region9: #{_lambda_.30} parent=5 // pred_check
      _
    $region10: #{_lambda_.30} parent=5 // pred_check_branch
      %116 = sbr.rel (%p113) target = $region12
    $region11: #{_lambda_.30} parent=5 // pred_region
      %s117 = ssub.s32 %s9, 1
      // Predicated region
      $region13: #{_lambda_.30} parent=11 // pred_check
        %p118 = pneg %p56
      $region14: #{_lambda_.30} parent=11 // pred_check_branch
        %120 = sbr.rel (%p118) target = $region16
      $region15: #{_lambda_.30} parent=11 // pred_region
        _
      $region16: #{_lambda_.30} parent=11 // pred_fallthru
        _
      // Predicated region
      $region17: #{_lambda_.30} parent=11 // pred_check
        %p121 = pneg %p77
      $region18: #{_lambda_.30} parent=11 // pred_check_branch
        %123 = sbr.rel (%p121) target = $region20
      $region19: #{_lambda_.30} parent=11 // pred_region
        _
      $region20: #{_lambda_.30} parent=11 // pred_fallthru
        _
    $region12: #{_lambda_.30} parent=5 // pred_fallthru
      _
    %p124 = scmp.lt.s32.totalorder %s9, 2
    // Predicated region
    $region21: #{_lambda_.30} parent=5 // pred_check
      %p125 = pneg %p124
    $region22: #{_lambda_.30} parent=5 // pred_check_branch
      %127 = sbr.rel (%p125) target = $region24
    $region23: #{_lambda_.30} parent=5 // pred_region
      // Predicated region
      $region25: #{_lambda_.30} parent=23 // pred_check
        %p128 = pneg %p29
      $region26: #{_lambda_.30} parent=23 // pred_check_branch
        %130 = sbr.rel (%p128) target = $region28
      $region27: #{_lambda_.30} parent=23 // pred_region
        %s131 = smul.u32 32, %s9
        %p132 = scmp.lt.s32.totalorder %s131, 63
        %s133 = scalar_select %p132, %s131, 63
        %s134 = smul.addr %s133, 4
        %s135 = scalar_lea.vmem %s0, %s134
        %s136 = smul.u32 32, %s9
      $region28: #{_lambda_.30} parent=23 // pred_fallthru
        _
    $region24: #{_lambda_.30} parent=5 // pred_fallthru
      _
    %p137 = scmp.le.s32.totalorder 1, %s9
    %p138 = scmp.lt.s32.totalorder %s9, 3
    %p139 = pnand %p137, %p138
    %p140 = pneg %p139
    // Predicated region
    $region29: #{_lambda_.30} parent=5 // pred_check
      _
    $region30: #{_lambda_.30} parent=5 // pred_check_branch
      %142 = sbr.rel (%p139) target = $region32
    $region31: #{_lambda_.30} parent=5 // pred_region
      %s143 = ssub.s32 %s9, 1
      %s144 = smul.u32 32, %s14
      %p145 = scmp.lt.s32.totalorder %s144, 63
      %s146 = scalar_select %p145, %s144, 63
      %s147 = smul.addr %s146, 4
      %s148 = scalar_lea.vmem %s0, %s147
      %p149 = pneg %p35
      %p150 = pneg %p32
      %p151 = pneg %p56
      %p152 = pneg %p53
      %p153 = pneg %p77
      %p154 = pneg %p74
      %p155 = pneg %p103
      %p156 = pneg %p100
      %s157 = smul.u32 32, %s14
      %p158 = scmp.lt.s32.totalorder %s157, 63
      %s159 = scalar_select %p158, %s157, 63
      %s160 = smul.addr %s159, 8
      %s161 = scalar_lea.vmem %s3, %s160
      %s162 = smul.u32 32, %s14
      %p163 = scmp.lt.s32.totalorder %s162, 63
      %s164 = scalar_select %p163, %s162, 63
      %s165 = smul.addr %s164, 4
      %s166 = scalar_lea.vmem %s0, %s165
      %s167 = smul.u32 32, %s14
      %s168 = smul.u32 32, %s14
      %p169 = scmp.lt.s32.totalorder %s168, 63
      %s170 = scalar_select %p169, %s168, 63
      %s171 = smul.addr %s170, 8
      %s172 = scalar_lea.vmem %s3, %s171
      %s173 = smul.u32 32, %s14
      %v175 = vld [vmem:[%s166] sm:$0xf]
      %v176 = vld [vmem:[%s166 + $0x4] sm:$0xf]
      %v177 = vld [vmem:[%s166 + $0x8] sm:$0xf]
      %v178 = vld [vmem:[%s166 + $0xc] sm:$0xf]
      %v179 = vld [vmem:[%s166 + $0x10] sm:$0xf]
      %v180 = vld [vmem:[%s166 + $0x14] sm:$0xf]
      %v181 = vld [vmem:[%s166 + $0x18] sm:$0xf]
      %v182 = vld [vmem:[%s166 + $0x1c] sm:$0xf]
      %v183 = vld [vmem:[%s166 + $0x20] sm:$0xf]
      %v184 = vld [vmem:[%s166 + $0x24] sm:$0xf]
      %v185 = vld [vmem:[%s166 + $0x28] sm:$0xf]
      %v186 = vld [vmem:[%s166 + $0x2c] sm:$0xf]
      %v187 = vld [vmem:[%s166 + $0x30] sm:$0xf]
      %v188 = vld [vmem:[%s166 + $0x34] sm:$0xf]
      %v189 = vld [vmem:[%s166 + $0x38] sm:$0xf]
      %v190 = vld [vmem:[%s166 + $0x3c] sm:$0xf]
      %v191 = vld [vmem:[%s166 + $0x40] sm:$0xf]
      %v192 = vld [vmem:[%s166 + $0x44] sm:$0xf]
      %v193 = vld [vmem:[%s166 + $0x48] sm:$0xf]
      %v194 = vld [vmem:[%s166 + $0x4c] sm:$0xf]
      %v195 = vld [vmem:[%s166 + $0x50] sm:$0xf]
      %v196 = vld [vmem:[%s166 + $0x54] sm:$0xf]
      %v197 = vld [vmem:[%s166 + $0x58] sm:$0xf]
      %v198 = vld [vmem:[%s166 + $0x5c] sm:$0xf]
      %v199 = vld [vmem:[%s166 + $0x60] sm:$0xf]
      %v200 = vld [vmem:[%s166 + $0x64] sm:$0xf]
      %v201 = vld [vmem:[%s166 + $0x68] sm:$0xf]
      %v202 = vld [vmem:[%s166 + $0x6c] sm:$0xf]
      %v203 = vld [vmem:[%s166 + $0x70] sm:$0xf]
      %v204 = vld [vmem:[%s166 + $0x74] sm:$0xf]
      %v205 = vld [vmem:[%s166 + $0x78] sm:$0xf]
      %v206 = vld [vmem:[%s166 + $0x7c] sm:$0xf]
      %v207 = vld [vmem:[%s1] sm:$0xf]
      %v208 = vld [vmem:[%s1 + $0x4] sm:$0xf]
      %v209 = vld [vmem:[%s1 + $0x8] sm:$0xf]
      %v210 = vld [vmem:[%s1 + $0xc] sm:$0xf]
      %v211 = vld [vmem:[%s1 + $0x10] sm:$0xf]
      %v212 = vld [vmem:[%s1 + $0x14] sm:$0xf]
      %v213 = vld [vmem:[%s1 + $0x18] sm:$0xf]
      %v214 = vld [vmem:[%s1 + $0x1c] sm:$0xf]
      %v215 = vld [vmem:[%s1 + $0x20] sm:$0xf]
      %v216 = vld [vmem:[%s1 + $0x24] sm:$0xf]
      %v217 = vld [vmem:[%s1 + $0x28] sm:$0xf]
      %v218 = vld [vmem:[%s1 + $0x2c] sm:$0xf]
      %v219 = vld [vmem:[%s1 + $0x30] sm:$0xf]
      %v220 = vld [vmem:[%s1 + $0x34] sm:$0xf]
      %v221 = vld [vmem:[%s1 + $0x38] sm:$0xf]
      %v222 = vld [vmem:[%s1 + $0x3c] sm:$0xf]
      %v223 = vld [vmem:[%s2] sm:$0x1]
      %v225 = vlaneseq
      %v226 = vshrl.u32 %v225, 7
      %v227 = vsub.s32 0, %v226
      %v228 = vrot.slane %v223, %v227
      %v262 = vunpack.c.l.b16 %v175
      %v263 = vunpack.c.l.b16 %v176
      %v264 = vunpack.c.l.b16 %v177
      %v265 = vunpack.c.l.b16 %v178
      %v266 = vunpack.c.l.b16 %v179
      %v267 = vunpack.c.l.b16 %v180
      %v268 = vunpack.c.l.b16 %v181
      %v269 = vunpack.c.l.b16 %v182
      %v270 = vunpack.c.l.b16 %v183
      %v271 = vunpack.c.l.b16 %v184
      %v272 = vunpack.c.l.b16 %v185
      %v273 = vunpack.c.l.b16 %v186
      %v274 = vunpack.c.l.b16 %v187
      %v275 = vunpack.c.l.b16 %v188
      %v276 = vunpack.c.l.b16 %v189
      %v277 = vunpack.c.l.b16 %v190
      %v278 = vunpack.c.l.b16 %v191
      %v279 = vunpack.c.l.b16 %v192
      %v280 = vunpack.c.l.b16 %v193
      %v281 = vunpack.c.l.b16 %v194
      %v282 = vunpack.c.l.b16 %v195
      %v283 = vunpack.c.l.b16 %v196
      %v284 = vunpack.c.l.b16 %v197
      %v285 = vunpack.c.l.b16 %v198
      %v286 = vunpack.c.l.b16 %v199
      %v287 = vunpack.c.l.b16 %v200
      %v288 = vunpack.c.l.b16 %v201
      %v289 = vunpack.c.l.b16 %v202
      %v290 = vunpack.c.l.b16 %v203
      %v291 = vunpack.c.l.b16 %v204
      %v292 = vunpack.c.l.b16 %v205
      %v293 = vunpack.c.l.b16 %v206
      %v294 = vpack.c.b16 %v263, %v262
      %v295 = vpack.c.b16 %v265, %v264
      %v296 = vpack.c.b16 %v267, %v266
      %v297 = vpack.c.b16 %v269, %v268
      %v298 = vpack.c.b16 %v271, %v270
      %v299 = vpack.c.b16 %v273, %v272
      %v300 = vpack.c.b16 %v275, %v274
      %v301 = vpack.c.b16 %v277, %v276
      %v302 = vpack.c.b16 %v279, %v278
      %v303 = vpack.c.b16 %v281, %v280
      %v304 = vpack.c.b16 %v283, %v282
      %v305 = vpack.c.b16 %v285, %v284
      %v306 = vpack.c.b16 %v287, %v286
      %v307 = vpack.c.b16 %v289, %v288
      %v308 = vpack.c.b16 %v291, %v290
      %v309 = vpack.c.b16 %v293, %v292
      %v342 = vunpack.c.l.b16 %v207
      %v343 = vunpack.c.l.b16 %v208
      %v344 = vunpack.c.l.b16 %v209
      %v345 = vunpack.c.l.b16 %v210
      %v346 = vunpack.c.l.b16 %v211
      %v347 = vunpack.c.l.b16 %v212
      %v348 = vunpack.c.l.b16 %v213
      %v349 = vunpack.c.l.b16 %v214
      %v350 = vunpack.c.l.b16 %v215
      %v351 = vunpack.c.l.b16 %v216
      %v352 = vunpack.c.l.b16 %v217
      %v353 = vunpack.c.l.b16 %v218
      %v354 = vunpack.c.l.b16 %v219
      %v355 = vunpack.c.l.b16 %v220
      %v356 = vunpack.c.l.b16 %v221
      %v357 = vunpack.c.l.b16 %v222
      %v358 = vpack.c.b16 %v343, %v342
      %v359 = vpack.c.b16 %v345, %v344
      %v360 = vpack.c.b16 %v347, %v346
      %v361 = vpack.c.b16 %v349, %v348
      %v362 = vpack.c.b16 %v351, %v350
      %v363 = vpack.c.b16 %v353, %v352
      %v364 = vpack.c.b16 %v355, %v354
      %v365 = vpack.c.b16 %v357, %v356
      %374 = vmatprep.subr.bf16.mxu0 0
      %375 = vmatpush1.bf16.msra.mxu0 %v358
      %376 = vmatprep.subr.bf16.mxu0 0
      %377 = vmatpush1.bf16.msra.mxu0 %v359
      %378 = vmatprep.subr.bf16.mxu0 0
      %379 = vmatpush1.bf16.msra.mxu0 %v360
      %380 = vmatprep.subr.bf16.mxu0 0
      %381 = vmatpush1.bf16.msra.mxu0 %v361
      %382 = vmatprep.subr.bf16.mxu0 0
      %383 = vmatpush1.bf16.msra.mxu0 %v362
      %384 = vmatprep.subr.bf16.mxu0 0
      %385 = vmatpush1.bf16.msra.mxu0 %v363
      %386 = vmatprep.subr.bf16.mxu0 0
      %387 = vmatpush1.bf16.msra.mxu0 %v364
      %388 = vmatprep.subr.bf16.mxu0 0
      %389 = vmatpush1.bf16.msra.mxu0 %v365
      %390 = vmatprep.subr.bf16.mxu0 0
      %391 = vmatpush1.bf16.msra.mxu0 0
      %392 = vmatprep.subr.bf16.mxu0 0
      %393 = vmatpush1.bf16.msra.mxu0 0
      %394 = vmatprep.subr.bf16.mxu0 0
      %395 = vmatpush1.bf16.msra.mxu0 0
      %396 = vmatprep.subr.bf16.mxu0 0
      %397 = vmatpush1.bf16.msra.mxu0 0
      %398 = vmatprep.subr.bf16.mxu0 0
      %399 = vmatpush1.bf16.msra.mxu0 0
      %400 = vmatprep.subr.bf16.mxu0 0
      %401 = vmatpush1.bf16.msra.mxu0 0
      %402 = vmatprep.subr.bf16.mxu0 0
      %403 = vmatpush1.bf16.msra.mxu0 0
      %404 = vmatprep.subr.bf16.mxu0 0
      %405 = vmatpush1.bf16.msra.mxu0 0
      %406 = vmatprep.mubr.bf16.mxu0 0
      %407 = vmatmul.mubr.bf16.gmra.mrb[0].mxu0 %v294
      %v408 = vpop.f32.mrb[0].mxu0
      %v409 = vadd.f32 %v228, %v408
      %v410 = vpop.f32.mrb[0].mxu0
      %v411 = vpop.f32.mrb[0].mxu0
      %v412 = vadd.f32 %v228, %v411
      %v413 = vpop.f32.mrb[0].mxu0
      %414 = vmatprep.mubr.bf16.mxu0 0
      %415 = vmatmul.mubr.bf16.gmra.mrb[0].mxu0 %v295
      %v416 = vpop.f32.mrb[0].mxu0
      %v417 = vadd.f32 %v228, %v416
      %v418 = vpop.f32.mrb[0].mxu0
      %v419 = vpop.f32.mrb[0].mxu0
      %v420 = vadd.f32 %v228, %v419
      %v421 = vpop.f32.mrb[0].mxu0
      %422 = vmatprep.mubr.bf16.mxu0 0
      %423 = vmatmul.mubr.bf16.gmra.mrb[0].mxu0 %v296
      %v424 = vpop.f32.mrb[0].mxu0
      %v425 = vadd.f32 %v228, %v424
      %v426 = vpop.f32.mrb[0].mxu0
      %v427 = vpop.f32.mrb[0].mxu0
      %v428 = vadd.f32 %v228, %v427
      %v429 = vpop.f32.mrb[0].mxu0
      %430 = vmatprep.mubr.bf16.mxu0 0
      %431 = vmatmul.mubr.bf16.gmra.mrb[0].mxu0 %v297
      %v432 = vpop.f32.mrb[0].mxu0
      %v433 = vadd.f32 %v228, %v432
      %v434 = vpop.f32.mrb[0].mxu0
      %v435 = vpop.f32.mrb[0].mxu0
      %v436 = vadd.f32 %v228, %v435
      %v437 = vpop.f32.mrb[0].mxu0
      %438 = vmatprep.mubr.bf16.mxu0 0
      %439 = vmatmul.mubr.bf16.gmra.mrb[0].mxu0 %v298
      %v440 = vpop.f32.mrb[0].mxu0
      %v441 = vadd.f32 %v228, %v440
      %v442 = vpop.f32.mrb[0].mxu0
      %v443 = vpop.f32.mrb[0].mxu0
      %v444 = vadd.f32 %v228, %v443
      %v445 = vpop.f32.mrb[0].mxu0
      %446 = vmatprep.mubr.bf16.mxu0 0
      %447 = vmatmul.mubr.bf16.gmra.mrb[0].mxu0 %v299
      %v448 = vpop.f32.mrb[0].mxu0
      %v449 = vadd.f32 %v228, %v448
      %v450 = vpop.f32.mrb[0].mxu0
      %v451 = vpop.f32.mrb[0].mxu0
      %v452 = vadd.f32 %v228, %v451
      %v453 = vpop.f32.mrb[0].mxu0
      %454 = vmatprep.mubr.bf16.mxu0 0
      %455 = vmatmul.mubr.bf16.gmra.mrb[0].mxu0 %v300
      %v456 = vpop.f32.mrb[0].mxu0
      %v457 = vadd.f32 %v228, %v456
      %v458 = vpop.f32.mrb[0].mxu0
      %v459 = vpop.f32.mrb[0].mxu0
      %v460 = vadd.f32 %v228, %v459
      %v461 = vpop.f32.mrb[0].mxu0
      %462 = vmatprep.mubr.bf16.mxu0 0
      %463 = vmatmul.mubr.bf16.gmra.mrb[0].mxu0 %v301
      %v464 = vpop.f32.mrb[0].mxu0
      %v465 = vadd.f32 %v228, %v464
      %v466 = vpop.f32.mrb[0].mxu0
      %v467 = vpop.f32.mrb[0].mxu0
      %v468 = vadd.f32 %v228, %v467
      %v469 = vpop.f32.mrb[0].mxu0
      %470 = vmatprep.mubr.bf16.mxu0 0
      %471 = vmatmul.mubr.bf16.gmra.mrb[0].mxu0 %v302
      %v472 = vpop.f32.mrb[0].mxu0
      %v473 = vadd.f32 %v228, %v472
      %v474 = vpop.f32.mrb[0].mxu0
      %v475 = vpop.f32.mrb[0].mxu0
      %v476 = vadd.f32 %v228, %v475
      %v477 = vpop.f32.mrb[0].mxu0
      %478 = vmatprep.mubr.bf16.mxu0 0
      %479 = vmatmul.mubr.bf16.gmra.mrb[0].mxu0 %v303
      %v480 = vpop.f32.mrb[0].mxu0
      %v481 = vadd.f32 %v228, %v480
      %v482 = vpop.f32.mrb[0].mxu0
      %v483 = vpop.f32.mrb[0].mxu0
      %v484 = vadd.f32 %v228, %v483
      %v485 = vpop.f32.mrb[0].mxu0
      %486 = vmatprep.mubr.bf16.mxu0 0
      %487 = vmatmul.mubr.bf16.gmra.mrb[0].mxu0 %v304
      %v488 = vpop.f32.mrb[0].mxu0
      %v489 = vadd.f32 %v228, %v488
      %v490 = vpop.f32.mrb[0].mxu0
      %v491 = vpop.f32.mrb[0].mxu0
      %v492 = vadd.f32 %v228, %v491
      %v493 = vpop.f32.mrb[0].mxu0
      %494 = vmatprep.mubr.bf16.mxu0 0
      %495 = vmatmul.mubr.bf16.gmra.mrb[0].mxu0 %v305
      %v496 = vpop.f32.mrb[0].mxu0
      %v497 = vadd.f32 %v228, %v496
      %v498 = vpop.f32.mrb[0].mxu0
      %v499 = vpop.f32.mrb[0].mxu0
      %v500 = vadd.f32 %v228, %v499
      %v501 = vpop.f32.mrb[0].mxu0
      %502 = vmatprep.mubr.bf16.mxu0 0
      %503 = vmatmul.mubr.bf16.gmra.mrb[0].mxu0 %v306
      %v504 = vpop.f32.mrb[0].mxu0
      %v505 = vadd.f32 %v228, %v504
      %v506 = vpop.f32.mrb[0].mxu0
      %v507 = vpop.f32.mrb[0].mxu0
      %v508 = vadd.f32 %v228, %v507
      %v509 = vpop.f32.mrb[0].mxu0
      %510 = vmatprep.mubr.bf16.mxu0 0
      %511 = vmatmul.mubr.bf16.gmra.mrb[0].mxu0 %v307
      %v512 = vpop.f32.mrb[0].mxu0
      %v513 = vadd.f32 %v228, %v512
      %v514 = vpop.f32.mrb[0].mxu0
      %v515 = vpop.f32.mrb[0].mxu0
      %v516 = vadd.f32 %v228, %v515
      %v517 = vpop.f32.mrb[0].mxu0
      %518 = vmatprep.mubr.bf16.mxu0 0
      %519 = vmatmul.mubr.bf16.gmra.mrb[0].mxu0 %v308
      %v520 = vpop.f32.mrb[0].mxu0
      %v521 = vadd.f32 %v228, %v520
      %v522 = vpop.f32.mrb[0].mxu0
      %v523 = vpop.f32.mrb[0].mxu0
      %v524 = vadd.f32 %v228, %v523
      %v525 = vpop.f32.mrb[0].mxu0
      %526 = vmatprep.mubr.bf16.mxu0 0
      %527 = vmatmul.mubr.bf16.gmra.mrb[0].mxu0 %v309
      %v528 = vpop.f32.mrb[0].mxu0
      %v529 = vadd.f32 %v228, %v528
      %v530 = vpop.f32.mrb[0].mxu0
      %v531 = vpop.f32.mrb[0].mxu0
      %v532 = vadd.f32 %v228, %v531
      %v533 = vpop.f32.mrb[0].mxu0
      %534 = vdwg.mxu0
      %v535 = vxor.u32 %v409, 2147483648
      %v536 = vxor.u32 %v412, 2147483648
      %v537 = vxor.u32 %v417, 2147483648
      %v538 = vxor.u32 %v420, 2147483648
      %v539 = vxor.u32 %v425, 2147483648
      %v540 = vxor.u32 %v428, 2147483648
      %v541 = vxor.u32 %v433, 2147483648
      %v542 = vxor.u32 %v436, 2147483648
      %v543 = vxor.u32 %v441, 2147483648
      %v544 = vxor.u32 %v444, 2147483648
      %v545 = vxor.u32 %v449, 2147483648
      %v546 = vxor.u32 %v452, 2147483648
      %v547 = vxor.u32 %v457, 2147483648
      %v548 = vxor.u32 %v460, 2147483648
      %v549 = vxor.u32 %v465, 2147483648
      %v550 = vxor.u32 %v468, 2147483648
      %v551 = vxor.u32 %v473, 2147483648
      %v552 = vxor.u32 %v476, 2147483648
      %v553 = vxor.u32 %v481, 2147483648
      %v554 = vxor.u32 %v484, 2147483648
      %v555 = vxor.u32 %v489, 2147483648
      %v556 = vxor.u32 %v492, 2147483648
      %v557 = vxor.u32 %v497, 2147483648
      %v558 = vxor.u32 %v500, 2147483648
      %v559 = vxor.u32 %v505, 2147483648
      %v560 = vxor.u32 %v508, 2147483648
      %v561 = vxor.u32 %v513, 2147483648
      %v562 = vxor.u32 %v516, 2147483648
      %v563 = vxor.u32 %v521, 2147483648
      %v564 = vxor.u32 %v524, 2147483648
      %v565 = vxor.u32 %v529, 2147483648
      %v566 = vxor.u32 %v532, 2147483648
      %v567 = vmul.f32 %v535, 1.442695
      %v568 = vpow.pop %v567
      %v569 = vmul.f32 %v536, 1.442695
      %v570 = vpow.pop %v569
      %v571 = vmul.f32 %v537, 1.442695
      %v572 = vpow.pop %v571
      %v573 = vmul.f32 %v538, 1.442695
      %v574 = vpow.pop %v573
      %v575 = vmul.f32 %v539, 1.442695
      %v576 = vpow.pop %v575
      %v577 = vmul.f32 %v540, 1.442695
      %v578 = vpow.pop %v577
      %v579 = vmul.f32 %v541, 1.442695
      %v580 = vpow.pop %v579
      %v581 = vmul.f32 %v542, 1.442695
      %v582 = vpow.pop %v581
      %v583 = vmul.f32 %v543, 1.442695
      %v584 = vpow.pop %v583
      %v585 = vmul.f32 %v544, 1.442695
      %v586 = vpow.pop %v585
      %v587 = vmul.f32 %v545, 1.442695
      %v588 = vpow.pop %v587
      %v589 = vmul.f32 %v546, 1.442695
      %v590 = vpow.pop %v589
      %v591 = vmul.f32 %v547, 1.442695
      %v592 = vpow.pop %v591
      %v593 = vmul.f32 %v548, 1.442695
      %v594 = vpow.pop %v593
      %v595 = vmul.f32 %v549, 1.442695
      %v596 = vpow.pop %v595
      %v597 = vmul.f32 %v550, 1.442695
      %v598 = vpow.pop %v597
      %v599 = vmul.f32 %v551, 1.442695
      %v600 = vpow.pop %v599
      %v601 = vmul.f32 %v552, 1.442695
      %v602 = vpow.pop %v601
      %v603 = vmul.f32 %v553, 1.442695
      %v604 = vpow.pop %v603
      %v605 = vmul.f32 %v554, 1.442695
      %v606 = vpow.pop %v605
      %v607 = vmul.f32 %v555, 1.442695
      %v608 = vpow.pop %v607
      %v609 = vmul.f32 %v556, 1.442695
      %v610 = vpow.pop %v609
      %v611 = vmul.f32 %v557, 1.442695
      %v612 = vpow.pop %v611
      %v613 = vmul.f32 %v558, 1.442695
      %v614 = vpow.pop %v613
      %v615 = vmul.f32 %v559, 1.442695
      %v616 = vpow.pop %v615
      %v617 = vmul.f32 %v560, 1.442695
      %v618 = vpow.pop %v617
      %v619 = vmul.f32 %v561, 1.442695
      %v620 = vpow.pop %v619
      %v621 = vmul.f32 %v562, 1.442695
      %v622 = vpow.pop %v621
      %v623 = vmul.f32 %v563, 1.442695
      %v624 = vpow.pop %v623
      %v625 = vmul.f32 %v564, 1.442695
      %v626 = vpow.pop %v625
      %v627 = vmul.f32 %v565, 1.442695
      %v628 = vpow.pop %v627
      %v629 = vmul.f32 %v566, 1.442695
      %v630 = vpow.pop %v629
      %v631 = vadd.f32 %v568, 1.0
      %v632 = vadd.f32 %v570, 1.0
      %v633 = vadd.f32 %v572, 1.0
      %v634 = vadd.f32 %v574, 1.0
      %v635 = vadd.f32 %v576, 1.0
      %v636 = vadd.f32 %v578, 1.0
      %v637 = vadd.f32 %v580, 1.0
      %v638 = vadd.f32 %v582, 1.0
      %v639 = vadd.f32 %v584, 1.0
      %v640 = vadd.f32 %v586, 1.0
      %v641 = vadd.f32 %v588, 1.0
      %v642 = vadd.f32 %v590, 1.0
      %v643 = vadd.f32 %v592, 1.0
      %v644 = vadd.f32 %v594, 1.0
      %v645 = vadd.f32 %v596, 1.0
      %v646 = vadd.f32 %v598, 1.0
      %v647 = vadd.f32 %v600, 1.0
      %v648 = vadd.f32 %v602, 1.0
      %v649 = vadd.f32 %v604, 1.0
      %v650 = vadd.f32 %v606, 1.0
      %v651 = vadd.f32 %v608, 1.0
      %v652 = vadd.f32 %v610, 1.0
      %v653 = vadd.f32 %v612, 1.0
      %v654 = vadd.f32 %v614, 1.0
      %v655 = vadd.f32 %v616, 1.0
      %v656 = vadd.f32 %v618, 1.0
      %v657 = vadd.f32 %v620, 1.0
      %v658 = vadd.f32 %v622, 1.0
      %v659 = vadd.f32 %v624, 1.0
      %v660 = vadd.f32 %v626, 1.0
      %v661 = vadd.f32 %v628, 1.0
      %v662 = vadd.f32 %v630, 1.0
      %v663 = vrcp.pop %v631
      %v664 = vmul.f32 1.0, %v663
      %v665 = vrcp.pop %v632
      %v666 = vmul.f32 1.0, %v665
      %v667 = vrcp.pop %v633
      %v668 = vmul.f32 1.0, %v667
      %v669 = vrcp.pop %v634
      %v670 = vmul.f32 1.0, %v669
      %v671 = vrcp.pop %v635
      %v672 = vmul.f32 1.0, %v671
      %v673 = vrcp.pop %v636
      %v674 = vmul.f32 1.0, %v673
      %v675 = vrcp.pop %v637
      %v676 = vmul.f32 1.0, %v675
      %v677 = vrcp.pop %v638
      %v678 = vmul.f32 1.0, %v677
      %v679 = vrcp.pop %v639
      %v680 = vmul.f32 1.0, %v679
      %v681 = vrcp.pop %v640
      %v682 = vmul.f32 1.0, %v681
      %v683 = vrcp.pop %v641
      %v684 = vmul.f32 1.0, %v683
      %v685 = vrcp.pop %v642
      %v686 = vmul.f32 1.0, %v685
      %v687 = vrcp.pop %v643
      %v688 = vmul.f32 1.0, %v687
      %v689 = vrcp.pop %v644
      %v690 = vmul.f32 1.0, %v689
      %v691 = vrcp.pop %v645
      %v692 = vmul.f32 1.0, %v691
      %v693 = vrcp.pop %v646
      %v694 = vmul.f32 1.0, %v693
      %v695 = vrcp.pop %v647
      %v696 = vmul.f32 1.0, %v695
      %v697 = vrcp.pop %v648
      %v698 = vmul.f32 1.0, %v697
      %v699 = vrcp.pop %v649
      %v700 = vmul.f32 1.0, %v699
      %v701 = vrcp.pop %v650
      %v702 = vmul.f32 1.0, %v701
      %v703 = vrcp.pop %v651
      %v704 = vmul.f32 1.0, %v703
      %v705 = vrcp.pop %v652
      %v706 = vmul.f32 1.0, %v705
      %v707 = vrcp.pop %v653
      %v708 = vmul.f32 1.0, %v707
      %v709 = vrcp.pop %v654
      %v710 = vmul.f32 1.0, %v709
      %v711 = vrcp.pop %v655
      %v712 = vmul.f32 1.0, %v711
      %v713 = vrcp.pop %v656
      %v714 = vmul.f32 1.0, %v713
      %v715 = vrcp.pop %v657
      %v716 = vmul.f32 1.0, %v715
      %v717 = vrcp.pop %v658
      %v718 = vmul.f32 1.0, %v717
      %v719 = vrcp.pop %v659
      %v720 = vmul.f32 1.0, %v719
      %v721 = vrcp.pop %v660
      %v722 = vmul.f32 1.0, %v721
      %v723 = vrcp.pop %v661
      %v724 = vmul.f32 1.0, %v723
      %v725 = vrcp.pop %v662
      %v726 = vmul.f32 1.0, %v725
      %v727 = vmul.f32 %v409, %v664
      %v728 = vmul.f32 %v412, %v666
      %v729 = vmul.f32 %v417, %v668
      %v730 = vmul.f32 %v420, %v670
      %v731 = vmul.f32 %v425, %v672
      %v732 = vmul.f32 %v428, %v674
      %v733 = vmul.f32 %v433, %v676
      %v734 = vmul.f32 %v436, %v678
      %v735 = vmul.f32 %v441, %v680
      %v736 = vmul.f32 %v444, %v682
      %v737 = vmul.f32 %v449, %v684
      %v738 = vmul.f32 %v452, %v686
      %v739 = vmul.f32 %v457, %v688
      %v740 = vmul.f32 %v460, %v690
      %v741 = vmul.f32 %v465, %v692
      %v742 = vmul.f32 %v468, %v694
      %v743 = vmul.f32 %v473, %v696
      %v744 = vmul.f32 %v476, %v698
      %v745 = vmul.f32 %v481, %v700
      %v746 = vmul.f32 %v484, %v702
      %v747 = vmul.f32 %v489, %v704
      %v748 = vmul.f32 %v492, %v706
      %v749 = vmul.f32 %v497, %v708
      %v750 = vmul.f32 %v500, %v710
      %v751 = vmul.f32 %v505, %v712
      %v752 = vmul.f32 %v508, %v714
      %v753 = vmul.f32 %v513, %v716
      %v754 = vmul.f32 %v516, %v718
      %v755 = vmul.f32 %v521, %v720
      %v756 = vmul.f32 %v524, %v722
      %v757 = vmul.f32 %v529, %v724
      %v758 = vmul.f32 %v532, %v726
      %759 = vst [vmem:[%s172] sm:$0xff] %v727
      %760 = vst [vmem:[%s172 + $0x8] sm:$0xff] %v728
      %761 = vst [vmem:[%s172 + $0x10] sm:$0xff] %v729
      %762 = vst [vmem:[%s172 + $0x18] sm:$0xff] %v730
      %763 = vst [vmem:[%s172 + $0x20] sm:$0xff] %v731
      %764 = vst [vmem:[%s172 + $0x28] sm:$0xff] %v732
      %765 = vst [vmem:[%s172 + $0x30] sm:$0xff] %v733
      %766 = vst [vmem:[%s172 + $0x38] sm:$0xff] %v734
      %767 = vst [vmem:[%s172 + $0x40] sm:$0xff] %v735
      %768 = vst [vmem:[%s172 + $0x48] sm:$0xff] %v736
      %769 = vst [vmem:[%s172 + $0x50] sm:$0xff] %v737
      %770 = vst [vmem:[%s172 + $0x58] sm:$0xff] %v738
      %771 = vst [vmem:[%s172 + $0x60] sm:$0xff] %v739
      %772 = vst [vmem:[%s172 + $0x68] sm:$0xff] %v740
      %773 = vst [vmem:[%s172 + $0x70] sm:$0xff] %v741
      %774 = vst [vmem:[%s172 + $0x78] sm:$0xff] %v742
      %775 = vst [vmem:[%s172 + $0x80] sm:$0xff] %v743
      %776 = vst [vmem:[%s172 + $0x88] sm:$0xff] %v744
      %777 = vst [vmem:[%s172 + $0x90] sm:$0xff] %v745
      %778 = vst [vmem:[%s172 + $0x98] sm:$0xff] %v746
      %779 = vst [vmem:[%s172 + $0xa0] sm:$0xff] %v747
      %780 = vst [vmem:[%s172 + $0xa8] sm:$0xff] %v748
      %781 = vst [vmem:[%s172 + $0xb0] sm:$0xff] %v749
      %782 = vst [vmem:[%s172 + $0xb8] sm:$0xff] %v750
      %783 = vst [vmem:[%s172 + $0xc0] sm:$0xff] %v751
      %784 = vst [vmem:[%s172 + $0xc8] sm:$0xff] %v752
      %785 = vst [vmem:[%s172 + $0xd0] sm:$0xff] %v753
      %786 = vst [vmem:[%s172 + $0xd8] sm:$0xff] %v754
      %787 = vst [vmem:[%s172 + $0xe0] sm:$0xff] %v755
      %788 = vst [vmem:[%s172 + $0xe8] sm:$0xff] %v756
      %789 = vst [vmem:[%s172 + $0xf0] sm:$0xff] %v757
      %790 = vst [vmem:[%s172 + $0xf8] sm:$0xff] %v758
      %s791 = smul.u32 32, %s14
      %p792 = scmp.lt.s32.totalorder %s791, 63
      %s793 = scalar_select %p792, %s791, 63
      %s794 = smul.addr %s793, 8
      %s795 = scalar_lea.vmem %s3, %s794
      // Predicated region
      $region33: #{_lambda_.30} parent=31 // pred_check
        %p796 = pneg %p100
      $region34: #{_lambda_.30} parent=31 // pred_check_branch
        %798 = sbr.rel (%p796) target = $region36
      $region35: #{_lambda_.30} parent=31 // pred_region
        %s799 = smul.u32 32, %s14
      $region36: #{_lambda_.30} parent=31 // pred_fallthru
        _
    $region32: #{_lambda_.30} parent=5 // pred_fallthru
      _
    %p800 = scmp.le.s32.totalorder 2, %s9
    // Predicated region
    $region37: #{_lambda_.30} parent=5 // pred_check
      %p801 = pneg %p800
    $region38: #{_lambda_.30} parent=5 // pred_check_branch
      %803 = sbr.rel (%p801) target = $region40
    $region39: #{_lambda_.30} parent=5 // pred_region
      %s804 = ssub.s32 %s9, 2
      // Predicated region
      $region41: #{_lambda_.30} parent=39 // pred_check
        %p805 = pneg %p106
      $region42: #{_lambda_.30} parent=39 // pred_check_branch
        %807 = sbr.rel (%p805) target = $region44
      $region43: #{_lambda_.30} parent=39 // pred_region
        %s808 = smul.u32 32, %s15
        %p809 = scmp.lt.s32.totalorder %s808, 63
        %s810 = scalar_select %p809, %s808, 63
        %s811 = smul.addr %s810, 8
        %s812 = scalar_lea.vmem %s3, %s811
      $region44: #{_lambda_.30} parent=39 // pred_fallthru
        _
    $region40: #{_lambda_.30} parent=5 // pred_fallthru
      _
  $region6: #{_lambda_.30} parent=0 // loop_footer
    %s13 = sadd.s32 1, %s9
  $region7: #{_lambda_.30} parent=0 // loop_footer_branch
    %8 = sbr.rel target = $region3
  $region8: #{_lambda_.30} parent=0 // loop_exit
    _

// kernel: _lambda_.32
$region0: #{_lambda_.32}
  #allocation0 [shape = 'u32[]', space=smem, size = 0x4, offset = 0x4, fixed_abs, tag = 'smem constant byte address 0x4 - core index']
  #allocation1 [shape = 'u32[144,128]{1,0:T(1,128)}', space=vmem, size = 0x12000, scoped, tag = 'internal scratch']
  %s0 = inlined_call_operand.vmem [shape: bf16[128,128], index: 0, kind: input, shape index: {}]
  %s1 = inlined_call_operand.vmem [shape: bf16[128,128], index: 1, kind: input, shape index: {}]
  %s2 = inlined_call_operand.vmem [shape: f32[1,128], index: 2, kind: input, shape index: {}]
  %s3 = inlined_call_operand.vmem [shape: f32[128,128], index: 3, kind: output, shape index: {}]
  %s4 = sld [smem:[#allocation0]]
  $region22: #{_lambda_.32} parent=0
    _
  %s6 = ssub.s32 1, %s4
  %s7 = scalar_select 0, %s6, %s4
  // Predicated region
  $region2: #{_lambda_.32} parent=0 // pred_check
    _
  $region3: #{_lambda_.32} parent=0 // pred_check_branch
    %9 = sbr.rel (0) target = $region5
  $region4: #{_lambda_.32} parent=0 // pred_region
    _
  $region5: #{_lambda_.32} parent=0 // pred_fallthru
    _
  // Predicated region
  $region6: #{_lambda_.32} parent=0 // pred_check
    _
  $region7: #{_lambda_.32} parent=0 // pred_check_branch
    %11 = sbr.rel (0) target = $region9
  $region8: #{_lambda_.32} parent=0 // pred_region
    _
  $region9: #{_lambda_.32} parent=0 // pred_fallthru
    _
  // Predicated region
  $region10: #{_lambda_.32} parent=0 // pred_check
    _
  $region11: #{_lambda_.32} parent=0 // pred_check_branch
    %13 = sbr.rel (0) target = $region13
  $region12: #{_lambda_.32} parent=0 // pred_region
    _
  $region13: #{_lambda_.32} parent=0 // pred_fallthru
    _
  %v15 = vld [vmem:[%s0] sm:$0xf]
  %v16 = vld [vmem:[%s0 + $0x4] sm:$0xf]
  %v17 = vld [vmem:[%s0 + $0x8] sm:$0xf]
  %v18 = vld [vmem:[%s0 + $0xc] sm:$0xf]
  %v19 = vld [vmem:[%s0 + $0x10] sm:$0xf]
  %v20 = vld [vmem:[%s0 + $0x14] sm:$0xf]
  %v21 = vld [vmem:[%s0 + $0x18] sm:$0xf]
  %v22 = vld [vmem:[%s0 + $0x1c] sm:$0xf]
  %v23 = vld [vmem:[%s0 + $0x20] sm:$0xf]
  %v24 = vld [vmem:[%s0 + $0x24] sm:$0xf]
  %v25 = vld [vmem:[%s0 + $0x28] sm:$0xf]
  %v26 = vld [vmem:[%s0 + $0x2c] sm:$0xf]
  %v27 = vld [vmem:[%s0 + $0x30] sm:$0xf]
  %v28 = vld [vmem:[%s0 + $0x34] sm:$0xf]
  %v29 = vld [vmem:[%s0 + $0x38] sm:$0xf]
  %v30 = vld [vmem:[%s0 + $0x3c] sm:$0xf]
  %v31 = vld [vmem:[%s1] sm:$0xf]
  %v32 = vld [vmem:[%s1 + $0x4] sm:$0xf]
  %v33 = vld [vmem:[%s1 + $0x8] sm:$0xf]
  %v34 = vld [vmem:[%s1 + $0xc] sm:$0xf]
  %v35 = vld [vmem:[%s1 + $0x10] sm:$0xf]
  %v36 = vld [vmem:[%s1 + $0x14] sm:$0xf]
  %v37 = vld [vmem:[%s1 + $0x18] sm:$0xf]
  %v38 = vld [vmem:[%s1 + $0x1c] sm:$0xf]
  %v39 = vld [vmem:[%s1 + $0x20] sm:$0xf]
  %v40 = vld [vmem:[%s1 + $0x24] sm:$0xf]
  %v41 = vld [vmem:[%s1 + $0x28] sm:$0xf]
  %v42 = vld [vmem:[%s1 + $0x2c] sm:$0xf]
  %v43 = vld [vmem:[%s1 + $0x30] sm:$0xf]
  %v44 = vld [vmem:[%s1 + $0x34] sm:$0xf]
  %v45 = vld [vmem:[%s1 + $0x38] sm:$0xf]
  %v46 = vld [vmem:[%s1 + $0x3c] sm:$0xf]
  %v47 = vld [vmem:[%s2] sm:$0x1]
  %v49 = vlaneseq
  %v50 = vshrl.u32 %v49, 7
  %v51 = vsub.s32 0, %v50
  %v52 = vrot.slane %v47, %v51
  %v70 = vunpack.c.l.b16 %v15
  %v71 = vunpack.c.l.b16 %v16
  %v72 = vunpack.c.l.b16 %v17
  %v73 = vunpack.c.l.b16 %v18
  %v74 = vunpack.c.l.b16 %v19
  %v75 = vunpack.c.l.b16 %v20
  %v76 = vunpack.c.l.b16 %v21
  %v77 = vunpack.c.l.b16 %v22
  %v78 = vunpack.c.l.b16 %v23
  %v79 = vunpack.c.l.b16 %v24
  %v80 = vunpack.c.l.b16 %v25
  %v81 = vunpack.c.l.b16 %v26
  %v82 = vunpack.c.l.b16 %v27
  %v83 = vunpack.c.l.b16 %v28
  %v84 = vunpack.c.l.b16 %v29
  %v85 = vunpack.c.l.b16 %v30
  %v86 = vpack.c.b16 %v71, %v70
  %v87 = vpack.c.b16 %v73, %v72
  %v88 = vpack.c.b16 %v75, %v74
  %v89 = vpack.c.b16 %v77, %v76
  %v90 = vpack.c.b16 %v79, %v78
  %v91 = vpack.c.b16 %v81, %v80
  %v92 = vpack.c.b16 %v83, %v82
  %v93 = vpack.c.b16 %v85, %v84
  %v118 = vunpack.c.l.b16 %v31
  %v119 = vunpack.c.l.b16 %v32
  %v120 = vunpack.c.l.b16 %v33
  %v121 = vunpack.c.l.b16 %v34
  %v122 = vunpack.c.l.b16 %v35
  %v123 = vunpack.c.l.b16 %v36
  %v124 = vunpack.c.l.b16 %v37
  %v125 = vunpack.c.l.b16 %v38
  %v126 = vunpack.c.l.b16 %v39
  %v127 = vunpack.c.l.b16 %v40
  %v128 = vunpack.c.l.b16 %v41
  %v129 = vunpack.c.l.b16 %v42
  %v130 = vunpack.c.l.b16 %v43
  %v131 = vunpack.c.l.b16 %v44
  %v132 = vunpack.c.l.b16 %v45
  %v133 = vunpack.c.l.b16 %v46
  %v134 = vpack.c.b16 %v119, %v118
  %v135 = vpack.c.b16 %v121, %v120
  %v136 = vpack.c.b16 %v123, %v122
  %v137 = vpack.c.b16 %v125, %v124
  %v138 = vpack.c.b16 %v127, %v126
  %v139 = vpack.c.b16 %v129, %v128
  %v140 = vpack.c.b16 %v131, %v130
  %v141 = vpack.c.b16 %v133, %v132
  %150 = vmatprep.subr.bf16.mxu0 0
  %151 = vmatpush1.bf16.msra.mxu0 %v134
  %152 = vmatprep.subr.bf16.mxu0 0
  %153 = vmatpush1.bf16.msra.mxu0 %v135
  %154 = vmatprep.subr.bf16.mxu0 0
  %155 = vmatpush1.bf16.msra.mxu0 %v136
  %156 = vmatprep.subr.bf16.mxu0 0
  %157 = vmatpush1.bf16.msra.mxu0 %v137
  %158 = vmatprep.subr.bf16.mxu0 0
  %159 = vmatpush1.bf16.msra.mxu0 %v138
  %160 = vmatprep.subr.bf16.mxu0 0
  %161 = vmatpush1.bf16.msra.mxu0 %v139
  %162 = vmatprep.subr.bf16.mxu0 0
  %163 = vmatpush1.bf16.msra.mxu0 %v140
  %164 = vmatprep.subr.bf16.mxu0 0
  %165 = vmatpush1.bf16.msra.mxu0 %v141
  %166 = vmatprep.subr.bf16.mxu0 0
  %167 = vmatpush1.bf16.msra.mxu0 0
  %168 = vmatprep.subr.bf16.mxu0 0
  %169 = vmatpush1.bf16.msra.mxu0 0
  %170 = vmatprep.subr.bf16.mxu0 0
  %171 = vmatpush1.bf16.msra.mxu0 0
  %172 = vmatprep.subr.bf16.mxu0 0
  %173 = vmatpush1.bf16.msra.mxu0 0
  %174 = vmatprep.subr.bf16.mxu0 0
  %175 = vmatpush1.bf16.msra.mxu0 0
  %176 = vmatprep.subr.bf16.mxu0 0
  %177 = vmatpush1.bf16.msra.mxu0 0
  %178 = vmatprep.subr.bf16.mxu0 0
  %179 = vmatpush1.bf16.msra.mxu0 0
  %180 = vmatprep.subr.bf16.mxu0 0
  %181 = vmatpush1.bf16.msra.mxu0 0
  %182 = vmatprep.mubr.bf16.mxu0 0
  %183 = vmatmul.mubr.bf16.gmra.mrb[0].mxu0 %v86
  %v184 = vpop.f32.mrb[0].mxu0
  %v185 = vadd.f32 %v52, %v184
  %v186 = vpop.f32.mrb[0].mxu0
  %v187 = vpop.f32.mrb[0].mxu0
  %v188 = vadd.f32 %v52, %v187
  %v189 = vpop.f32.mrb[0].mxu0
  %190 = vmatprep.mubr.bf16.mxu0 0
  %191 = vmatmul.mubr.bf16.gmra.mrb[0].mxu0 %v87
  %v192 = vpop.f32.mrb[0].mxu0
  %v193 = vadd.f32 %v52, %v192
  %v194 = vpop.f32.mrb[0].mxu0
  %v195 = vpop.f32.mrb[0].mxu0
  %v196 = vadd.f32 %v52, %v195
  %v197 = vpop.f32.mrb[0].mxu0
  %198 = vmatprep.mubr.bf16.mxu0 0
  %199 = vmatmul.mubr.bf16.gmra.mrb[0].mxu0 %v88
  %v200 = vpop.f32.mrb[0].mxu0
  %v201 = vadd.f32 %v52, %v200
  %v202 = vpop.f32.mrb[0].mxu0
  %v203 = vpop.f32.mrb[0].mxu0
  %v204 = vadd.f32 %v52, %v203
  %v205 = vpop.f32.mrb[0].mxu0
  %206 = vmatprep.mubr.bf16.mxu0 0
  %207 = vmatmul.mubr.bf16.gmra.mrb[0].mxu0 %v89
  %v208 = vpop.f32.mrb[0].mxu0
  %v209 = vadd.f32 %v52, %v208
  %v210 = vpop.f32.mrb[0].mxu0
  %v211 = vpop.f32.mrb[0].mxu0
  %v212 = vadd.f32 %v52, %v211
  %v213 = vpop.f32.mrb[0].mxu0
  %214 = vmatprep.mubr.bf16.mxu0 0
  %215 = vmatmul.mubr.bf16.gmra.mrb[0].mxu0 %v90
  %v216 = vpop.f32.mrb[0].mxu0
  %v217 = vadd.f32 %v52, %v216
  %v218 = vpop.f32.mrb[0].mxu0
  %v219 = vpop.f32.mrb[0].mxu0
  %v220 = vadd.f32 %v52, %v219
  %v221 = vpop.f32.mrb[0].mxu0
  %222 = vmatprep.mubr.bf16.mxu0 0
  %223 = vmatmul.mubr.bf16.gmra.mrb[0].mxu0 %v91
  %v224 = vpop.f32.mrb[0].mxu0
  %v225 = vadd.f32 %v52, %v224
  %v226 = vpop.f32.mrb[0].mxu0
  %v227 = vpop.f32.mrb[0].mxu0
  %v228 = vadd.f32 %v52, %v227
  %v229 = vpop.f32.mrb[0].mxu0
  %230 = vmatprep.mubr.bf16.mxu0 0
  %231 = vmatmul.mubr.bf16.gmra.mrb[0].mxu0 %v92
  %v232 = vpop.f32.mrb[0].mxu0
  %v233 = vadd.f32 %v52, %v232
  %v234 = vpop.f32.mrb[0].mxu0
  %v235 = vpop.f32.mrb[0].mxu0
  %v236 = vadd.f32 %v52, %v235
  %v237 = vpop.f32.mrb[0].mxu0
  %238 = vmatprep.mubr.bf16.mxu0 0
  %239 = vmatmul.mubr.bf16.gmra.mrb[0].mxu0 %v93
  %v240 = vpop.f32.mrb[0].mxu0
  %v241 = vadd.f32 %v52, %v240
  %v242 = vpop.f32.mrb[0].mxu0
  %v243 = vpop.f32.mrb[0].mxu0
  %v244 = vadd.f32 %v52, %v243
  %v245 = vpop.f32.mrb[0].mxu0
  %246 = vdwg.mxu0
  %v247 = vxor.u32 %v185, 2147483648
  %v248 = vxor.u32 %v188, 2147483648
  %v249 = vxor.u32 %v193, 2147483648
  %v250 = vxor.u32 %v196, 2147483648
  %v251 = vxor.u32 %v201, 2147483648
  %v252 = vxor.u32 %v204, 2147483648
  %v253 = vxor.u32 %v209, 2147483648
  %v254 = vxor.u32 %v212, 2147483648
  %v255 = vxor.u32 %v217, 2147483648
  %v256 = vxor.u32 %v220, 2147483648
  %v257 = vxor.u32 %v225, 2147483648
  %v258 = vxor.u32 %v228, 2147483648
  %v259 = vxor.u32 %v233, 2147483648
  %v260 = vxor.u32 %v236, 2147483648
  %v261 = vxor.u32 %v241, 2147483648
  %v262 = vxor.u32 %v244, 2147483648
  %v263 = vmul.f32 %v247, 1.442695
  %v264 = vpow.pop %v263
  %v265 = vmul.f32 %v248, 1.442695
  %v266 = vpow.pop %v265
  %v267 = vmul.f32 %v249, 1.442695
  %v268 = vpow.pop %v267
  %v269 = vmul.f32 %v250, 1.442695
  %v270 = vpow.pop %v269
  %v271 = vmul.f32 %v251, 1.442695
  %v272 = vpow.pop %v271
  %v273 = vmul.f32 %v252, 1.442695
  %v274 = vpow.pop %v273
  %v275 = vmul.f32 %v253, 1.442695
  %v276 = vpow.pop %v275
  %v277 = vmul.f32 %v254, 1.442695
  %v278 = vpow.pop %v277
  %v279 = vmul.f32 %v255, 1.442695
  %v280 = vpow.pop %v279
  %v281 = vmul.f32 %v256, 1.442695
  %v282 = vpow.pop %v281
  %v283 = vmul.f32 %v257, 1.442695
  %v284 = vpow.pop %v283
  %v285 = vmul.f32 %v258, 1.442695
  %v286 = vpow.pop %v285
  %v287 = vmul.f32 %v259, 1.442695
  %v288 = vpow.pop %v287
  %v289 = vmul.f32 %v260, 1.442695
  %v290 = vpow.pop %v289
  %v291 = vmul.f32 %v261, 1.442695
  %v292 = vpow.pop %v291
  %v293 = vmul.f32 %v262, 1.442695
  %v294 = vpow.pop %v293
  %v295 = vadd.f32 %v264, 1.0
  %v296 = vadd.f32 %v266, 1.0
  %v297 = vadd.f32 %v268, 1.0
  %v298 = vadd.f32 %v270, 1.0
  %v299 = vadd.f32 %v272, 1.0
  %v300 = vadd.f32 %v274, 1.0
  %v301 = vadd.f32 %v276, 1.0
  %v302 = vadd.f32 %v278, 1.0
  %v303 = vadd.f32 %v280, 1.0
  %v304 = vadd.f32 %v282, 1.0
  %v305 = vadd.f32 %v284, 1.0
  %v306 = vadd.f32 %v286, 1.0
  %v307 = vadd.f32 %v288, 1.0
  %v308 = vadd.f32 %v290, 1.0
  %v309 = vadd.f32 %v292, 1.0
  %v310 = vadd.f32 %v294, 1.0
  %v311 = vrcp.pop %v295
  %v312 = vmul.f32 1.0, %v311
  %v313 = vrcp.pop %v296
  %v314 = vmul.f32 1.0, %v313
  %v315 = vrcp.pop %v297
  %v316 = vmul.f32 1.0, %v315
  %v317 = vrcp.pop %v298
  %v318 = vmul.f32 1.0, %v317
  %v319 = vrcp.pop %v299
  %v320 = vmul.f32 1.0, %v319
  %v321 = vrcp.pop %v300
  %v322 = vmul.f32 1.0, %v321
  %v323 = vrcp.pop %v301
  %v324 = vmul.f32 1.0, %v323
  %v325 = vrcp.pop %v302
  %v326 = vmul.f32 1.0, %v325
  %v327 = vrcp.pop %v303
  %v328 = vmul.f32 1.0, %v327
  %v329 = vrcp.pop %v304
  %v330 = vmul.f32 1.0, %v329
  %v331 = vrcp.pop %v305
  %v332 = vmul.f32 1.0, %v331
  %v333 = vrcp.pop %v306
  %v334 = vmul.f32 1.0, %v333
  %v335 = vrcp.pop %v307
  %v336 = vmul.f32 1.0, %v335
  %v337 = vrcp.pop %v308
  %v338 = vmul.f32 1.0, %v337
  %v339 = vrcp.pop %v309
  %v340 = vmul.f32 1.0, %v339
  %v341 = vrcp.pop %v310
  %v342 = vmul.f32 1.0, %v341
  %v343 = vmul.f32 %v185, %v312
  %v344 = vmul.f32 %v188, %v314
  %v345 = vmul.f32 %v193, %v316
  %v346 = vmul.f32 %v196, %v318
  %v347 = vmul.f32 %v201, %v320
  %v348 = vmul.f32 %v204, %v322
  %v349 = vmul.f32 %v209, %v324
  %v350 = vmul.f32 %v212, %v326
  %v351 = vmul.f32 %v217, %v328
  %v352 = vmul.f32 %v220, %v330
  %v353 = vmul.f32 %v225, %v332
  %v354 = vmul.f32 %v228, %v334
  %v355 = vmul.f32 %v233, %v336
  %v356 = vmul.f32 %v236, %v338
  %v357 = vmul.f32 %v241, %v340
  %v358 = vmul.f32 %v244, %v342
  %359 = vst [vmem:[%s3] sm:$0xff] %v343
  %360 = vst [vmem:[%s3 + $0x8] sm:$0xff] %v344
  %361 = vst [vmem:[%s3 + $0x10] sm:$0xff] %v345
  %362 = vst [vmem:[%s3 + $0x18] sm:$0xff] %v346
  %363 = vst [vmem:[%s3 + $0x20] sm:$0xff] %v347
  %364 = vst [vmem:[%s3 + $0x28] sm:$0xff] %v348
  %365 = vst [vmem:[%s3 + $0x30] sm:$0xff] %v349
  %366 = vst [vmem:[%s3 + $0x38] sm:$0xff] %v350
  %367 = vst [vmem:[%s3 + $0x40] sm:$0xff] %v351
  %368 = vst [vmem:[%s3 + $0x48] sm:$0xff] %v352
  %369 = vst [vmem:[%s3 + $0x50] sm:$0xff] %v353
  %370 = vst [vmem:[%s3 + $0x58] sm:$0xff] %v354
  %371 = vst [vmem:[%s3 + $0x60] sm:$0xff] %v355
  %372 = vst [vmem:[%s3 + $0x68] sm:$0xff] %v356
  %373 = vst [vmem:[%s3 + $0x70] sm:$0xff] %v357
  %374 = vst [vmem:[%s3 + $0x78] sm:$0xff] %v358
  // Predicated region
  $region14: #{_lambda_.32} parent=0 // pred_check
    _
  $region15: #{_lambda_.32} parent=0 // pred_check_branch
    %376 = sbr.rel (0) target = $region17
  $region16: #{_lambda_.32} parent=0 // pred_region
    _
  $region17: #{_lambda_.32} parent=0 // pred_fallthru
    _
  // Predicated region
  $region18: #{_lambda_.32} parent=0 // pred_check
    _
  $region19: #{_lambda_.32} parent=0 // pred_check_branch
    %378 = sbr.rel (0) target = $region21
  $region20: #{_lambda_.32} parent=0 // pred_region
    _
  $region21: #{_lambda_.32} parent=0 // pred_fallthru
    _

// kernel: _lambda_.33
$region0: #{_lambda_.33}
  #allocation0 [shape = 'u32[]', space=smem, size = 0x4, offset = 0x4, fixed_abs, tag = 'smem constant byte address 0x4 - core index']
  #allocation1 [shape = 'u32[144,128]{1,0:T(1,128)}', space=vmem, size = 0x12000, scoped, tag = 'internal scratch']
  %s0 = inlined_call_operand.vmem [shape: bf16[128,256], index: 0, kind: input, shape index: {}]
  %s1 = inlined_call_operand.vmem [shape: bf16[256,128], index: 1, kind: input, shape index: {}]
  %s2 = inlined_call_operand.vmem [shape: f32[1,128], index: 2, kind: input, shape index: {}]
  %s3 = inlined_call_operand.vmem [shape: f32[128,128], index: 3, kind: output, shape index: {}]
  %s4 = sld [smem:[#allocation0]]
  $region22: #{_lambda_.33} parent=0
    _
  %s6 = ssub.s32 1, %s4
  %s7 = scalar_select 0, %s6, %s4
  // Predicated region
  $region2: #{_lambda_.33} parent=0 // pred_check
    _
  $region3: #{_lambda_.33} parent=0 // pred_check_branch
    %9 = sbr.rel (0) target = $region5
  $region4: #{_lambda_.33} parent=0 // pred_region
    _
  $region5: #{_lambda_.33} parent=0 // pred_fallthru
    _
  // Predicated region
  $region6: #{_lambda_.33} parent=0 // pred_check
    _
  $region7: #{_lambda_.33} parent=0 // pred_check_branch
    %11 = sbr.rel (0) target = $region9
  $region8: #{_lambda_.33} parent=0 // pred_region
    _
  $region9: #{_lambda_.33} parent=0 // pred_fallthru
    _
  // Predicated region
  $region10: #{_lambda_.33} parent=0 // pred_check
    _
  $region11: #{_lambda_.33} parent=0 // pred_check_branch
    %13 = sbr.rel (0) target = $region13
  $region12: #{_lambda_.33} parent=0 // pred_region
    _
  $region13: #{_lambda_.33} parent=0 // pred_fallthru
    _
  %v15 = vld [vmem:[%s0] sm:$0xff]
  %v16 = vld [vmem:[%s0 + $0x8] sm:$0xff]
  %v17 = vld [vmem:[%s0 + $0x10] sm:$0xff]
  %v18 = vld [vmem:[%s0 + $0x18] sm:$0xff]
  %v19 = vld [vmem:[%s0 + $0x20] sm:$0xff]
  %v20 = vld [vmem:[%s0 + $0x28] sm:$0xff]
  %v21 = vld [vmem:[%s0 + $0x30] sm:$0xff]
  %v22 = vld [vmem:[%s0 + $0x38] sm:$0xff]
  %v23 = vld [vmem:[%s0 + $0x40] sm:$0xff]
  %v24 = vld [vmem:[%s0 + $0x48] sm:$0xff]
  %v25 = vld [vmem:[%s0 + $0x50] sm:$0xff]
  %v26 = vld [vmem:[%s0 + $0x58] sm:$0xff]
  %v27 = vld [vmem:[%s0 + $0x60] sm:$0xff]
  %v28 = vld [vmem:[%s0 + $0x68] sm:$0xff]
  %v29 = vld [vmem:[%s0 + $0x70] sm:$0xff]
  %v30 = vld [vmem:[%s0 + $0x78] sm:$0xff]
  %v31 = vld [vmem:[%s1] sm:$0xf]
  %v32 = vld [vmem:[%s1 + $0x4] sm:$0xf]
  %v33 = vld [vmem:[%s1 + $0x8] sm:$0xf]
  %v34 = vld [vmem:[%s1 + $0xc] sm:$0xf]
  %v35 = vld [vmem:[%s1 + $0x10] sm:$0xf]
  %v36 = vld [vmem:[%s1 + $0x14] sm:$0xf]
  %v37 = vld [vmem:[%s1 + $0x18] sm:$0xf]
  %v38 = vld [vmem:[%s1 + $0x1c] sm:$0xf]
  %v39 = vld [vmem:[%s1 + $0x20] sm:$0xf]
  %v40 = vld [vmem:[%s1 + $0x24] sm:$0xf]
  %v41 = vld [vmem:[%s1 + $0x28] sm:$0xf]
  %v42 = vld [vmem:[%s1 + $0x2c] sm:$0xf]
  %v43 = vld [vmem:[%s1 + $0x30] sm:$0xf]
  %v44 = vld [vmem:[%s1 + $0x34] sm:$0xf]
  %v45 = vld [vmem:[%s1 + $0x38] sm:$0xf]
  %v46 = vld [vmem:[%s1 + $0x3c] sm:$0xf]
  %v47 = vld [vmem:[%s1 + $0x40] sm:$0xf]
  %v48 = vld [vmem:[%s1 + $0x44] sm:$0xf]
  %v49 = vld [vmem:[%s1 + $0x48] sm:$0xf]
  %v50 = vld [vmem:[%s1 + $0x4c] sm:$0xf]
  %v51 = vld [vmem:[%s1 + $0x50] sm:$0xf]
  %v52 = vld [vmem:[%s1 + $0x54] sm:$0xf]
  %v53 = vld [vmem:[%s1 + $0x58] sm:$0xf]
  %v54 = vld [vmem:[%s1 + $0x5c] sm:$0xf]
  %v55 = vld [vmem:[%s1 + $0x60] sm:$0xf]
  %v56 = vld [vmem:[%s1 + $0x64] sm:$0xf]
  %v57 = vld [vmem:[%s1 + $0x68] sm:$0xf]
  %v58 = vld [vmem:[%s1 + $0x6c] sm:$0xf]
  %v59 = vld [vmem:[%s1 + $0x70] sm:$0xf]
  %v60 = vld [vmem:[%s1 + $0x74] sm:$0xf]
  %v61 = vld [vmem:[%s1 + $0x78] sm:$0xf]
  %v62 = vld [vmem:[%s1 + $0x7c] sm:$0xf]
  %v63 = vld [vmem:[%s2] sm:$0x1]
  %v65 = vlaneseq
  %v66 = vshrl.u32 %v65, 7
  %v67 = vsub.s32 0, %v66
  %v68 = vrot.slane %v63, %v67
  %v86 = vunpack.c.l.b16 %v15
  %v87 = vunpack.c.h.b16 %v15
  %v88 = vunpack.c.l.b16 %v16
  %v89 = vunpack.c.h.b16 %v16
  %v90 = vunpack.c.l.b16 %v17
  %v91 = vunpack.c.h.b16 %v17
  %v92 = vunpack.c.l.b16 %v18
  %v93 = vunpack.c.h.b16 %v18
  %v94 = vunpack.c.l.b16 %v19
  %v95 = vunpack.c.h.b16 %v19
  %v96 = vunpack.c.l.b16 %v20
  %v97 = vunpack.c.h.b16 %v20
  %v98 = vunpack.c.l.b16 %v21
  %v99 = vunpack.c.h.b16 %v21
  %v100 = vunpack.c.l.b16 %v22
  %v101 = vunpack.c.h.b16 %v22
  %v102 = vunpack.c.l.b16 %v23
  %v103 = vunpack.c.h.b16 %v23
  %v104 = vunpack.c.l.b16 %v24
  %v105 = vunpack.c.h.b16 %v24
  %v106 = vunpack.c.l.b16 %v25
  %v107 = vunpack.c.h.b16 %v25
  %v108 = vunpack.c.l.b16 %v26
  %v109 = vunpack.c.h.b16 %v26
  %v110 = vunpack.c.l.b16 %v27
  %v111 = vunpack.c.h.b16 %v27
  %v112 = vunpack.c.l.b16 %v28
  %v113 = vunpack.c.h.b16 %v28
  %v114 = vunpack.c.l.b16 %v29
  %v115 = vunpack.c.h.b16 %v29
  %v116 = vunpack.c.l.b16 %v30
  %v117 = vunpack.c.h.b16 %v30
  %v118 = vpack.c.b16 %v88, %v86
  %v119 = vpack.c.b16 %v89, %v87
  %v120 = vpack.c.b16 %v92, %v90
  %v121 = vpack.c.b16 %v93, %v91
  %v122 = vpack.c.b16 %v96, %v94
  %v123 = vpack.c.b16 %v97, %v95
  %v124 = vpack.c.b16 %v100, %v98
  %v125 = vpack.c.b16 %v101, %v99
  %v126 = vpack.c.b16 %v104, %v102
  %v127 = vpack.c.b16 %v105, %v103
  %v128 = vpack.c.b16 %v108, %v106
  %v129 = vpack.c.b16 %v109, %v107
  %v130 = vpack.c.b16 %v112, %v110
  %v131 = vpack.c.b16 %v113, %v111
  %v132 = vpack.c.b16 %v116, %v114
  %v133 = vpack.c.b16 %v117, %v115
  %v182 = vunpack.c.l.b16 %v31
  %v183 = vunpack.c.l.b16 %v32
  %v184 = vunpack.c.l.b16 %v33
  %v185 = vunpack.c.l.b16 %v34
  %v186 = vunpack.c.l.b16 %v35
  %v187 = vunpack.c.l.b16 %v36
  %v188 = vunpack.c.l.b16 %v37
  %v189 = vunpack.c.l.b16 %v38
  %v190 = vunpack.c.l.b16 %v39
  %v191 = vunpack.c.l.b16 %v40
  %v192 = vunpack.c.l.b16 %v41
  %v193 = vunpack.c.l.b16 %v42
  %v194 = vunpack.c.l.b16 %v43
  %v195 = vunpack.c.l.b16 %v44
  %v196 = vunpack.c.l.b16 %v45
  %v197 = vunpack.c.l.b16 %v46
  %v198 = vunpack.c.l.b16 %v47
  %v199 = vunpack.c.l.b16 %v48
  %v200 = vunpack.c.l.b16 %v49
  %v201 = vunpack.c.l.b16 %v50
  %v202 = vunpack.c.l.b16 %v51
  %v203 = vunpack.c.l.b16 %v52
  %v204 = vunpack.c.l.b16 %v53
  %v205 = vunpack.c.l.b16 %v54
  %v206 = vunpack.c.l.b16 %v55
  %v207 = vunpack.c.l.b16 %v56
  %v208 = vunpack.c.l.b16 %v57
  %v209 = vunpack.c.l.b16 %v58
  %v210 = vunpack.c.l.b16 %v59
  %v211 = vunpack.c.l.b16 %v60
  %v212 = vunpack.c.l.b16 %v61
  %v213 = vunpack.c.l.b16 %v62
  %v214 = vpack.c.b16 %v183, %v182
  %v215 = vpack.c.b16 %v185, %v184
  %v216 = vpack.c.b16 %v187, %v186
  %v217 = vpack.c.b16 %v189, %v188
  %v218 = vpack.c.b16 %v191, %v190
  %v219 = vpack.c.b16 %v193, %v192
  %v220 = vpack.c.b16 %v195, %v194
  %v221 = vpack.c.b16 %v197, %v196
  %v222 = vpack.c.b16 %v199, %v198
  %v223 = vpack.c.b16 %v201, %v200
  %v224 = vpack.c.b16 %v203, %v202
  %v225 = vpack.c.b16 %v205, %v204
  %v226 = vpack.c.b16 %v207, %v206
  %v227 = vpack.c.b16 %v209, %v208
  %v228 = vpack.c.b16 %v211, %v210
  %v229 = vpack.c.b16 %v213, %v212
  %246 = vmatprep.subr.bf16.mxu0 0
  %247 = vmatpush1.bf16.msra.mxu0 %v214
  %248 = vmatprep.subr.bf16.mxu0 0
  %249 = vmatpush1.bf16.msra.mxu0 %v215
  %250 = vmatprep.subr.bf16.mxu0 0
  %251 = vmatpush1.bf16.msra.mxu0 %v216
  %252 = vmatprep.subr.bf16.mxu0 0
  %253 = vmatpush1.bf16.msra.mxu0 %v217
  %254 = vmatprep.subr.bf16.mxu0 0
  %255 = vmatpush1.bf16.msra.mxu0 %v218
  %256 = vmatprep.subr.bf16.mxu0 0
  %257 = vmatpush1.bf16.msra.mxu0 %v219
  %258 = vmatprep.subr.bf16.mxu0 0
  %259 = vmatpush1.bf16.msra.mxu0 %v220
  %260 = vmatprep.subr.bf16.mxu0 0
  %261 = vmatpush1.bf16.msra.mxu0 %v221
  %262 = vmatprep.subr.bf16.mxu0 0
  %263 = vmatpush1.bf16.msra.mxu0 %v222
  %264 = vmatprep.subr.bf16.mxu0 0
  %265 = vmatpush1.bf16.msra.mxu0 %v223
  %266 = vmatprep.subr.bf16.mxu0 0
  %267 = vmatpush1.bf16.msra.mxu0 %v224
  %268 = vmatprep.subr.bf16.mxu0 0
  %269 = vmatpush1.bf16.msra.mxu0 %v225
  %270 = vmatprep.subr.bf16.mxu0 0
  %271 = vmatpush1.bf16.msra.mxu0 %v226
  %272 = vmatprep.subr.bf16.mxu0 0
  %273 = vmatpush1.bf16.msra.mxu0 %v227
  %274 = vmatprep.subr.bf16.mxu0 0
  %275 = vmatpush1.bf16.msra.mxu0 %v228
  %276 = vmatprep.subr.bf16.mxu0 0
  %277 = vmatpush1.bf16.msra.mxu0 %v229
  %278 = vmatprep.mubr.bf16.mxu0 %v119
  %279 = vmatmul.mubr.bf16.gmra.mrb[0].mxu0 %v118
  %v280 = vpop.f32.mrb[0].mxu0
  %v281 = vadd.f32 %v68, %v280
  %v282 = vpop.f32.mrb[0].mxu0
  %v283 = vpop.f32.mrb[0].mxu0
  %v284 = vadd.f32 %v68, %v283
  %v285 = vpop.f32.mrb[0].mxu0
  %286 = vmatprep.mubr.bf16.mxu0 %v121
  %287 = vmatmul.mubr.bf16.gmra.mrb[0].mxu0 %v120
  %v288 = vpop.f32.mrb[0].mxu0
  %v289 = vadd.f32 %v68, %v288
  %v290 = vpop.f32.mrb[0].mxu0
  %v291 = vpop.f32.mrb[0].mxu0
  %v292 = vadd.f32 %v68, %v291
  %v293 = vpop.f32.mrb[0].mxu0
  %294 = vmatprep.mubr.bf16.mxu0 %v123
  %295 = vmatmul.mubr.bf16.gmra.mrb[0].mxu0 %v122
  %v296 = vpop.f32.mrb[0].mxu0
  %v297 = vadd.f32 %v68, %v296
  %v298 = vpop.f32.mrb[0].mxu0
  %v299 = vpop.f32.mrb[0].mxu0
  %v300 = vadd.f32 %v68, %v299
  %v301 = vpop.f32.mrb[0].mxu0
  %302 = vmatprep.mubr.bf16.mxu0 %v125
  %303 = vmatmul.mubr.bf16.gmra.mrb[0].mxu0 %v124
  %v304 = vpop.f32.mrb[0].mxu0
  %v305 = vadd.f32 %v68, %v304
  %v306 = vpop.f32.mrb[0].mxu0
  %v307 = vpop.f32.mrb[0].mxu0
  %v308 = vadd.f32 %v68, %v307
  %v309 = vpop.f32.mrb[0].mxu0
  %310 = vmatprep.mubr.bf16.mxu0 %v127
  %311 = vmatmul.mubr.bf16.gmra.mrb[0].mxu0 %v126
  %v312 = vpop.f32.mrb[0].mxu0
  %v313 = vadd.f32 %v68, %v312
  %v314 = vpop.f32.mrb[0].mxu0
  %v315 = vpop.f32.mrb[0].mxu0
  %v316 = vadd.f32 %v68, %v315
  %v317 = vpop.f32.mrb[0].mxu0
  %318 = vmatprep.mubr.bf16.mxu0 %v129
  %319 = vmatmul.mubr.bf16.gmra.mrb[0].mxu0 %v128
  %v320 = vpop.f32.mrb[0].mxu0
  %v321 = vadd.f32 %v68, %v320
  %v322 = vpop.f32.mrb[0].mxu0
  %v323 = vpop.f32.mrb[0].mxu0
  %v324 = vadd.f32 %v68, %v323
  %v325 = vpop.f32.mrb[0].mxu0
  %326 = vmatprep.mubr.bf16.mxu0 %v131
  %327 = vmatmul.mubr.bf16.gmra.mrb[0].mxu0 %v130
  %v328 = vpop.f32.mrb[0].mxu0
  %v329 = vadd.f32 %v68, %v328
  %v330 = vpop.f32.mrb[0].mxu0
  %v331 = vpop.f32.mrb[0].mxu0
  %v332 = vadd.f32 %v68, %v331
  %v333 = vpop.f32.mrb[0].mxu0
  %334 = vmatprep.mubr.bf16.mxu0 %v133
  %335 = vmatmul.mubr.bf16.gmra.mrb[0].mxu0 %v132
  %v336 = vpop.f32.mrb[0].mxu0
  %v337 = vadd.f32 %v68, %v336
  %v338 = vpop.f32.mrb[0].mxu0
  %v339 = vpop.f32.mrb[0].mxu0
  %v340 = vadd.f32 %v68, %v339
  %v341 = vpop.f32.mrb[0].mxu0
  %342 = vdwg.mxu0
  %v343 = vxor.u32 %v281, 2147483648
  %v344 = vxor.u32 %v284, 2147483648
  %v345 = vxor.u32 %v289, 2147483648
  %v346 = vxor.u32 %v292, 2147483648
  %v347 = vxor.u32 %v297, 2147483648
  %v348 = vxor.u32 %v300, 2147483648
  %v349 = vxor.u32 %v305, 2147483648
  %v350 = vxor.u32 %v308, 2147483648
  %v351 = vxor.u32 %v313, 2147483648
  %v352 = vxor.u32 %v316, 2147483648
  %v353 = vxor.u32 %v321, 2147483648
  %v354 = vxor.u32 %v324, 2147483648
  %v355 = vxor.u32 %v329, 2147483648
  %v356 = vxor.u32 %v332, 2147483648
  %v357 = vxor.u32 %v337, 2147483648
  %v358 = vxor.u32 %v340, 2147483648
  %v359 = vmul.f32 %v343, 1.442695
  %v360 = vpow.pop %v359
  %v361 = vmul.f32 %v344, 1.442695
  %v362 = vpow.pop %v361
  %v363 = vmul.f32 %v345, 1.442695
  %v364 = vpow.pop %v363
  %v365 = vmul.f32 %v346, 1.442695
  %v366 = vpow.pop %v365
  %v367 = vmul.f32 %v347, 1.442695
  %v368 = vpow.pop %v367
  %v369 = vmul.f32 %v348, 1.442695
  %v370 = vpow.pop %v369
  %v371 = vmul.f32 %v349, 1.442695
  %v372 = vpow.pop %v371
  %v373 = vmul.f32 %v350, 1.442695
  %v374 = vpow.pop %v373
  %v375 = vmul.f32 %v351, 1.442695
  %v376 = vpow.pop %v375
  %v377 = vmul.f32 %v352, 1.442695
  %v378 = vpow.pop %v377
  %v379 = vmul.f32 %v353, 1.442695
  %v380 = vpow.pop %v379
  %v381 = vmul.f32 %v354, 1.442695
  %v382 = vpow.pop %v381
  %v383 = vmul.f32 %v355, 1.442695
  %v384 = vpow.pop %v383
  %v385 = vmul.f32 %v356, 1.442695
  %v386 = vpow.pop %v385
  %v387 = vmul.f32 %v357, 1.442695
  %v388 = vpow.pop %v387
  %v389 = vmul.f32 %v358, 1.442695
  %v390 = vpow.pop %v389
  %v391 = vadd.f32 %v360, 1.0
  %v392 = vadd.f32 %v362, 1.0
  %v393 = vadd.f32 %v364, 1.0
  %v394 = vadd.f32 %v366, 1.0
  %v395 = vadd.f32 %v368, 1.0
  %v396 = vadd.f32 %v370, 1.0
  %v397 = vadd.f32 %v372, 1.0
  %v398 = vadd.f32 %v374, 1.0
  %v399 = vadd.f32 %v376, 1.0
  %v400 = vadd.f32 %v378, 1.0
  %v401 = vadd.f32 %v380, 1.0
  %v402 = vadd.f32 %v382, 1.0
  %v403 = vadd.f32 %v384, 1.0
  %v404 = vadd.f32 %v386, 1.0
  %v405 = vadd.f32 %v388, 1.0
  %v406 = vadd.f32 %v390, 1.0
  %v407 = vrcp.pop %v391
  %v408 = vmul.f32 1.0, %v407
  %v409 = vrcp.pop %v392
  %v410 = vmul.f32 1.0, %v409
  %v411 = vrcp.pop %v393
  %v412 = vmul.f32 1.0, %v411
  %v413 = vrcp.pop %v394
  %v414 = vmul.f32 1.0, %v413
  %v415 = vrcp.pop %v395
  %v416 = vmul.f32 1.0, %v415
  %v417 = vrcp.pop %v396
  %v418 = vmul.f32 1.0, %v417
  %v419 = vrcp.pop %v397
  %v420 = vmul.f32 1.0, %v419
  %v421 = vrcp.pop %v398
  %v422 = vmul.f32 1.0, %v421
  %v423 = vrcp.pop %v399
  %v424 = vmul.f32 1.0, %v423
  %v425 = vrcp.pop %v400
  %v426 = vmul.f32 1.0, %v425
  %v427 = vrcp.pop %v401
  %v428 = vmul.f32 1.0, %v427
  %v429 = vrcp.pop %v402
  %v430 = vmul.f32 1.0, %v429
  %v431 = vrcp.pop %v403
  %v432 = vmul.f32 1.0, %v431
  %v433 = vrcp.pop %v404
  %v434 = vmul.f32 1.0, %v433
  %v435 = vrcp.pop %v405
  %v436 = vmul.f32 1.0, %v435
  %v437 = vrcp.pop %v406
  %v438 = vmul.f32 1.0, %v437
  %v439 = vmul.f32 %v281, %v408
  %v440 = vmul.f32 %v284, %v410
  %v441 = vmul.f32 %v289, %v412
  %v442 = vmul.f32 %v292, %v414
  %v443 = vmul.f32 %v297, %v416
  %v444 = vmul.f32 %v300, %v418
  %v445 = vmul.f32 %v305, %v420
  %v446 = vmul.f32 %v308, %v422
  %v447 = vmul.f32 %v313, %v424
  %v448 = vmul.f32 %v316, %v426
  %v449 = vmul.f32 %v321, %v428
  %v450 = vmul.f32 %v324, %v430
  %v451 = vmul.f32 %v329, %v432
  %v452 = vmul.f32 %v332, %v434
  %v453 = vmul.f32 %v337, %v436
  %v454 = vmul.f32 %v340, %v438
  %455 = vst [vmem:[%s3] sm:$0xff] %v439
  %456 = vst [vmem:[%s3 + $0x8] sm:$0xff] %v440
  %457 = vst [vmem:[%s3 + $0x10] sm:$0xff] %v441
  %458 = vst [vmem:[%s3 + $0x18] sm:$0xff] %v442
  %459 = vst [vmem:[%s3 + $0x20] sm:$0xff] %v443
  %460 = vst [vmem:[%s3 + $0x28] sm:$0xff] %v444
  %461 = vst [vmem:[%s3 + $0x30] sm:$0xff] %v445
  %462 = vst [vmem:[%s3 + $0x38] sm:$0xff] %v446
  %463 = vst [vmem:[%s3 + $0x40] sm:$0xff] %v447
  %464 = vst [vmem:[%s3 + $0x48] sm:$0xff] %v448
  %465 = vst [vmem:[%s3 + $0x50] sm:$0xff] %v449
  %466 = vst [vmem:[%s3 + $0x58] sm:$0xff] %v450
  %467 = vst [vmem:[%s3 + $0x60] sm:$0xff] %v451
  %468 = vst [vmem:[%s3 + $0x68] sm:$0xff] %v452
  %469 = vst [vmem:[%s3 + $0x70] sm:$0xff] %v453
  %470 = vst [vmem:[%s3 + $0x78] sm:$0xff] %v454
  // Predicated region
  $region14: #{_lambda_.33} parent=0 // pred_check
    _
  $region15: #{_lambda_.33} parent=0 // pred_check_branch
    %472 = sbr.rel (0) target = $region17
  $region16: #{_lambda_.33} parent=0 // pred_region
    _
  $region17: #{_lambda_.33} parent=0 // pred_fallthru
    _
  // Predicated region
  $region18: #{_lambda_.33} parent=0 // pred_check
    _
  $region19: #{_lambda_.33} parent=0 // pred_check_branch
    %474 = sbr.rel (0) target = $region21
  $region20: #{_lambda_.33} parent=0 // pred_region
    _
  $region21: #{_lambda_.33} parent=0 // pred_fallthru
    _

// kernel: _lambda_.35
$region0: #{_lambda_.35}
  #allocation0 [shape = 'u32[]', space=smem, size = 0x4, offset = 0x4, fixed_abs, tag = 'smem constant byte address 0x4 - core index']
  #allocation1 [shape = 'u32[144,128]{1,0:T(1,128)}', space=vmem, size = 0x12000, scoped, tag = 'internal scratch']
  %s0 = inlined_call_operand.vmem [shape: bf16[128,384], index: 0, kind: input, shape index: {}]
  %s1 = inlined_call_operand.vmem [shape: bf16[384,128], index: 1, kind: input, shape index: {}]
  %s2 = inlined_call_operand.vmem [shape: f32[1,128], index: 2, kind: input, shape index: {}]
  %s3 = inlined_call_operand.vmem [shape: f32[128,128], index: 3, kind: output, shape index: {}]
  %s4 = sld [smem:[#allocation0]]
  $region22: #{_lambda_.35} parent=0
    _
  %s6 = ssub.s32 1, %s4
  %s7 = scalar_select 0, %s6, %s4
  // Predicated region
  $region2: #{_lambda_.35} parent=0 // pred_check
    _
  $region3: #{_lambda_.35} parent=0 // pred_check_branch
    %9 = sbr.rel (0) target = $region5
  $region4: #{_lambda_.35} parent=0 // pred_region
    _
  $region5: #{_lambda_.35} parent=0 // pred_fallthru
    _
  // Predicated region
  $region6: #{_lambda_.35} parent=0 // pred_check
    _
  $region7: #{_lambda_.35} parent=0 // pred_check_branch
    %11 = sbr.rel (0) target = $region9
  $region8: #{_lambda_.35} parent=0 // pred_region
    _
  $region9: #{_lambda_.35} parent=0 // pred_fallthru
    _
  // Predicated region
  $region10: #{_lambda_.35} parent=0 // pred_check
    _
  $region11: #{_lambda_.35} parent=0 // pred_check_branch
    %13 = sbr.rel (0) target = $region13
  $region12: #{_lambda_.35} parent=0 // pred_region
    _
  $region13: #{_lambda_.35} parent=0 // pred_fallthru
    _
  %v15 = vld [vmem:[%s0] sm:$0xff]
  %v16 = vld [vmem:[%s0 + $0x8] sm:$0xf]
  %v17 = vld [vmem:[%s0 + $0xc] sm:$0xff]
  %v18 = vld [vmem:[%s0 + $0x14] sm:$0xf]
  %v19 = vld [vmem:[%s0 + $0x18] sm:$0xff]
  %v20 = vld [vmem:[%s0 + $0x20] sm:$0xf]
  %v21 = vld [vmem:[%s0 + $0x24] sm:$0xff]
  %v22 = vld [vmem:[%s0 + $0x2c] sm:$0xf]
  %v23 = vld [vmem:[%s0 + $0x30] sm:$0xff]
  %v24 = vld [vmem:[%s0 + $0x38] sm:$0xf]
  %v25 = vld [vmem:[%s0 + $0x3c] sm:$0xff]
  %v26 = vld [vmem:[%s0 + $0x44] sm:$0xf]
  %v27 = vld [vmem:[%s0 + $0x48] sm:$0xff]
  %v28 = vld [vmem:[%s0 + $0x50] sm:$0xf]
  %v29 = vld [vmem:[%s0 + $0x54] sm:$0xff]
  %v30 = vld [vmem:[%s0 + $0x5c] sm:$0xf]
  %v31 = vld [vmem:[%s0 + $0x60] sm:$0xff]
  %v32 = vld [vmem:[%s0 + $0x68] sm:$0xf]
  %v33 = vld [vmem:[%s0 + $0x6c] sm:$0xff]
  %v34 = vld [vmem:[%s0 + $0x74] sm:$0xf]
  %v35 = vld [vmem:[%s0 + $0x78] sm:$0xff]
  %v36 = vld [vmem:[%s0 + $0x80] sm:$0xf]
  %v37 = vld [vmem:[%s0 + $0x84] sm:$0xff]
  %v38 = vld [vmem:[%s0 + $0x8c] sm:$0xf]
  %v39 = vld [vmem:[%s0 + $0x90] sm:$0xff]
  %v40 = vld [vmem:[%s0 + $0x98] sm:$0xf]
  %v41 = vld [vmem:[%s0 + $0x9c] sm:$0xff]
  %v42 = vld [vmem:[%s0 + $0xa4] sm:$0xf]
  %v43 = vld [vmem:[%s0 + $0xa8] sm:$0xff]
  %v44 = vld [vmem:[%s0 + $0xb0] sm:$0xf]
  %v45 = vld [vmem:[%s0 + $0xb4] sm:$0xff]
  %v46 = vld [vmem:[%s0 + $0xbc] sm:$0xf]
  %v47 = vld [vmem:[%s1] sm:$0xf]
  %v48 = vld [vmem:[%s1 + $0x4] sm:$0xf]
  %v49 = vld [vmem:[%s1 + $0x8] sm:$0xf]
  %v50 = vld [vmem:[%s1 + $0xc] sm:$0xf]
  %v51 = vld [vmem:[%s1 + $0x10] sm:$0xf]
  %v52 = vld [vmem:[%s1 + $0x14] sm:$0xf]
  %v53 = vld [vmem:[%s1 + $0x18] sm:$0xf]
  %v54 = vld [vmem:[%s1 + $0x1c] sm:$0xf]
  %v55 = vld [vmem:[%s1 + $0x20] sm:$0xf]
  %v56 = vld [vmem:[%s1 + $0x24] sm:$0xf]
  %v57 = vld [vmem:[%s1 + $0x28] sm:$0xf]
  %v58 = vld [vmem:[%s1 + $0x2c] sm:$0xf]
  %v59 = vld [vmem:[%s1 + $0x30] sm:$0xf]
  %v60 = vld [vmem:[%s1 + $0x34] sm:$0xf]
  %v61 = vld [vmem:[%s1 + $0x38] sm:$0xf]
  %v62 = vld [vmem:[%s1 + $0x3c] sm:$0xf]
  %v63 = vld [vmem:[%s1 + $0x40] sm:$0xf]
  %v64 = vld [vmem:[%s1 + $0x44] sm:$0xf]
  %v65 = vld [vmem:[%s1 + $0x48] sm:$0xf]
  %v66 = vld [vmem:[%s1 + $0x4c] sm:$0xf]
  %v67 = vld [vmem:[%s1 + $0x50] sm:$0xf]
  %v68 = vld [vmem:[%s1 + $0x54] sm:$0xf]
  %v69 = vld [vmem:[%s1 + $0x58] sm:$0xf]
  %v70 = vld [vmem:[%s1 + $0x5c] sm:$0xf]
  %v71 = vld [vmem:[%s1 + $0x60] sm:$0xf]
  %v72 = vld [vmem:[%s1 + $0x64] sm:$0xf]
  %v73 = vld [vmem:[%s1 + $0x68] sm:$0xf]
  %v74 = vld [vmem:[%s1 + $0x6c] sm:$0xf]
  %v75 = vld [vmem:[%s1 + $0x70] sm:$0xf]
  %v76 = vld [vmem:[%s1 + $0x74] sm:$0xf]
  %v77 = vld [vmem:[%s1 + $0x78] sm:$0xf]
  %v78 = vld [vmem:[%s1 + $0x7c] sm:$0xf]
  %v79 = vld [vmem:[%s1 + $0x80] sm:$0xf]
  %v80 = vld [vmem:[%s1 + $0x84] sm:$0xf]
  %v81 = vld [vmem:[%s1 + $0x88] sm:$0xf]
  %v82 = vld [vmem:[%s1 + $0x8c] sm:$0xf]
  %v83 = vld [vmem:[%s1 + $0x90] sm:$0xf]
  %v84 = vld [vmem:[%s1 + $0x94] sm:$0xf]
  %v85 = vld [vmem:[%s1 + $0x98] sm:$0xf]
  %v86 = vld [vmem:[%s1 + $0x9c] sm:$0xf]
  %v87 = vld [vmem:[%s1 + $0xa0] sm:$0xf]
  %v88 = vld [vmem:[%s1 + $0xa4] sm:$0xf]
  %v89 = vld [vmem:[%s1 + $0xa8] sm:$0xf]
  %v90 = vld [vmem:[%s1 + $0xac] sm:$0xf]
  %v91 = vld [vmem:[%s1 + $0xb0] sm:$0xf]
  %v92 = vld [vmem:[%s1 + $0xb4] sm:$0xf]
  %v93 = vld [vmem:[%s1 + $0xb8] sm:$0xf]
  %v94 = vld [vmem:[%s1 + $0xbc] sm:$0xf]
  %v95 = vld [vmem:[%s2] sm:$0x1]
  %v97 = vlaneseq
  %v98 = vshrl.u32 %v97, 7
  %v99 = vsub.s32 0, %v98
  %v100 = vrot.slane %v95, %v99
  %v134 = vunpack.c.l.b16 %v15
  %v135 = vunpack.c.h.b16 %v15
  %v136 = vunpack.c.l.b16 %v16
  %v137 = vunpack.c.l.b16 %v17
  %v138 = vunpack.c.h.b16 %v17
  %v139 = vunpack.c.l.b16 %v18
  %v140 = vunpack.c.l.b16 %v19
  %v141 = vunpack.c.h.b16 %v19
  %v142 = vunpack.c.l.b16 %v20
  %v143 = vunpack.c.l.b16 %v21
  %v144 = vunpack.c.h.b16 %v21
  %v145 = vunpack.c.l.b16 %v22
  %v146 = vunpack.c.l.b16 %v23
  %v147 = vunpack.c.h.b16 %v23
  %v148 = vunpack.c.l.b16 %v24
  %v149 = vunpack.c.l.b16 %v25
  %v150 = vunpack.c.h.b16 %v25
  %v151 = vunpack.c.l.b16 %v26
  %v152 = vunpack.c.l.b16 %v27
  %v153 = vunpack.c.h.b16 %v27
  %v154 = vunpack.c.l.b16 %v28
  %v155 = vunpack.c.l.b16 %v29
  %v156 = vunpack.c.h.b16 %v29
  %v157 = vunpack.c.l.b16 %v30
  %v158 = vunpack.c.l.b16 %v31
  %v159 = vunpack.c.h.b16 %v31
  %v160 = vunpack.c.l.b16 %v32
  %v161 = vunpack.c.l.b16 %v33
  %v162 = vunpack.c.h.b16 %v33
  %v163 = vunpack.c.l.b16 %v34
  %v164 = vunpack.c.l.b16 %v35
  %v165 = vunpack.c.h.b16 %v35
  %v166 = vunpack.c.l.b16 %v36
  %v167 = vunpack.c.l.b16 %v37
  %v168 = vunpack.c.h.b16 %v37
  %v169 = vunpack.c.l.b16 %v38
  %v170 = vunpack.c.l.b16 %v39
  %v171 = vunpack.c.h.b16 %v39
  %v172 = vunpack.c.l.b16 %v40
  %v173 = vunpack.c.l.b16 %v41
  %v174 = vunpack.c.h.b16 %v41
  %v175 = vunpack.c.l.b16 %v42
  %v176 = vunpack.c.l.b16 %v43
  %v177 = vunpack.c.h.b16 %v43
  %v178 = vunpack.c.l.b16 %v44
  %v179 = vunpack.c.l.b16 %v45
  %v180 = vunpack.c.h.b16 %v45
  %v181 = vunpack.c.l.b16 %v46
  %v182 = vpack.c.b16 %v137, %v134
  %v183 = vpack.c.b16 %v138, %v135
  %v184 = vpack.c.b16 %v139, %v136
  %v185 = vpack.c.b16 %v143, %v140
  %v186 = vpack.c.b16 %v144, %v141
  %v187 = vpack.c.b16 %v145, %v142
  %v188 = vpack.c.b16 %v149, %v146
  %v189 = vpack.c.b16 %v150, %v147
  %v190 = vpack.c.b16 %v151, %v148
  %v191 = vpack.c.b16 %v155, %v152
  %v192 = vpack.c.b16 %v156, %v153
  %v193 = vpack.c.b16 %v157, %v154
  %v194 = vpack.c.b16 %v161, %v158
  %v195 = vpack.c.b16 %v162, %v159
  %v196 = vpack.c.b16 %v163, %v160
  %v197 = vpack.c.b16 %v167, %v164
  %v198 = vpack.c.b16 %v168, %v165
  %v199 = vpack.c.b16 %v169, %v166
  %v200 = vpack.c.b16 %v173, %v170
  %v201 = vpack.c.b16 %v174, %v171
  %v202 = vpack.c.b16 %v175, %v172
  %v203 = vpack.c.b16 %v179, %v176
  %v204 = vpack.c.b16 %v180, %v177
  %v205 = vpack.c.b16 %v181, %v178
  %v278 = vunpack.c.l.b16 %v47
  %v279 = vunpack.c.l.b16 %v48
  %v280 = vunpack.c.l.b16 %v49
  %v281 = vunpack.c.l.b16 %v50
  %v282 = vunpack.c.l.b16 %v51
  %v283 = vunpack.c.l.b16 %v52
  %v284 = vunpack.c.l.b16 %v53
  %v285 = vunpack.c.l.b16 %v54
  %v286 = vunpack.c.l.b16 %v55
  %v287 = vunpack.c.l.b16 %v56
  %v288 = vunpack.c.l.b16 %v57
  %v289 = vunpack.c.l.b16 %v58
  %v290 = vunpack.c.l.b16 %v59
  %v291 = vunpack.c.l.b16 %v60
  %v292 = vunpack.c.l.b16 %v61
  %v293 = vunpack.c.l.b16 %v62
  %v294 = vunpack.c.l.b16 %v63
  %v295 = vunpack.c.l.b16 %v64
  %v296 = vunpack.c.l.b16 %v65
  %v297 = vunpack.c.l.b16 %v66
  %v298 = vunpack.c.l.b16 %v67
  %v299 = vunpack.c.l.b16 %v68
  %v300 = vunpack.c.l.b16 %v69
  %v301 = vunpack.c.l.b16 %v70
  %v302 = vunpack.c.l.b16 %v71
  %v303 = vunpack.c.l.b16 %v72
  %v304 = vunpack.c.l.b16 %v73
  %v305 = vunpack.c.l.b16 %v74
  %v306 = vunpack.c.l.b16 %v75
  %v307 = vunpack.c.l.b16 %v76
  %v308 = vunpack.c.l.b16 %v77
  %v309 = vunpack.c.l.b16 %v78
  %v310 = vunpack.c.l.b16 %v79
  %v311 = vunpack.c.l.b16 %v80
  %v312 = vunpack.c.l.b16 %v81
  %v313 = vunpack.c.l.b16 %v82
  %v314 = vunpack.c.l.b16 %v83
  %v315 = vunpack.c.l.b16 %v84
  %v316 = vunpack.c.l.b16 %v85
  %v317 = vunpack.c.l.b16 %v86
  %v318 = vunpack.c.l.b16 %v87
  %v319 = vunpack.c.l.b16 %v88
  %v320 = vunpack.c.l.b16 %v89
  %v321 = vunpack.c.l.b16 %v90
  %v322 = vunpack.c.l.b16 %v91
  %v323 = vunpack.c.l.b16 %v92
  %v324 = vunpack.c.l.b16 %v93
  %v325 = vunpack.c.l.b16 %v94
  %v326 = vpack.c.b16 %v279, %v278
  %v327 = vpack.c.b16 %v281, %v280
  %v328 = vpack.c.b16 %v283, %v282
  %v329 = vpack.c.b16 %v285, %v284
  %v330 = vpack.c.b16 %v287, %v286
  %v331 = vpack.c.b16 %v289, %v288
  %v332 = vpack.c.b16 %v291, %v290
  %v333 = vpack.c.b16 %v293, %v292
  %v334 = vpack.c.b16 %v295, %v294
  %v335 = vpack.c.b16 %v297, %v296
  %v336 = vpack.c.b16 %v299, %v298
  %v337 = vpack.c.b16 %v301, %v300
  %v338 = vpack.c.b16 %v303, %v302
  %v339 = vpack.c.b16 %v305, %v304
  %v340 = vpack.c.b16 %v307, %v306
  %v341 = vpack.c.b16 %v309, %v308
  %v342 = vpack.c.b16 %v311, %v310
  %v343 = vpack.c.b16 %v313, %v312
  %v344 = vpack.c.b16 %v315, %v314
  %v345 = vpack.c.b16 %v317, %v316
  %v346 = vpack.c.b16 %v319, %v318
  %v347 = vpack.c.b16 %v321, %v320
  %v348 = vpack.c.b16 %v323, %v322
  %v349 = vpack.c.b16 %v325, %v324
  %374 = vmatprep.subr.bf16.mxu0 0
  %375 = vmatpush1.bf16.msra.mxu0 %v326
  %376 = vmatprep.subr.bf16.mxu0 0
  %377 = vmatpush1.bf16.msra.mxu0 %v327
  %378 = vmatprep.subr.bf16.mxu0 0
  %379 = vmatpush1.bf16.msra.mxu0 %v328
  %380 = vmatprep.subr.bf16.mxu0 0
  %381 = vmatpush1.bf16.msra.mxu0 %v329
  %382 = vmatprep.subr.bf16.mxu0 0
  %383 = vmatpush1.bf16.msra.mxu0 %v330
  %384 = vmatprep.subr.bf16.mxu0 0
  %385 = vmatpush1.bf16.msra.mxu0 %v331
  %386 = vmatprep.subr.bf16.mxu0 0
  %387 = vmatpush1.bf16.msra.mxu0 %v332
  %388 = vmatprep.subr.bf16.mxu0 0
  %389 = vmatpush1.bf16.msra.mxu0 %v333
  %390 = vmatprep.subr.bf16.mxu0 0
  %391 = vmatpush1.bf16.msra.mxu0 %v334
  %392 = vmatprep.subr.bf16.mxu0 0
  %393 = vmatpush1.bf16.msra.mxu0 %v335
  %394 = vmatprep.subr.bf16.mxu0 0
  %395 = vmatpush1.bf16.msra.mxu0 %v336
  %396 = vmatprep.subr.bf16.mxu0 0
  %397 = vmatpush1.bf16.msra.mxu0 %v337
  %398 = vmatprep.subr.bf16.mxu0 0
  %399 = vmatpush1.bf16.msra.mxu0 %v338
  %400 = vmatprep.subr.bf16.mxu0 0
  %401 = vmatpush1.bf16.msra.mxu0 %v339
  %402 = vmatprep.subr.bf16.mxu0 0
  %403 = vmatpush1.bf16.msra.mxu0 %v340
  %404 = vmatprep.subr.bf16.mxu0 0
  %405 = vmatpush1.bf16.msra.mxu0 %v341
  %406 = vmatprep.mubr.bf16.mxu0 %v183
  %407 = vmatmul.mubr.bf16.gmra.mrb[0].mxu0 %v182
  %v408 = vpop.f32.mrb[0].mxu0
  %v409 = vadd.f32 %v100, %v408
  %v410 = vpop.f32.mrb[0].mxu0
  %v411 = vpop.f32.mrb[0].mxu0
  %v412 = vadd.f32 %v100, %v411
  %v413 = vpop.f32.mrb[0].mxu0
  %414 = vmatprep.mubr.bf16.mxu0 %v186
  %415 = vmatmul.mubr.bf16.gmra.mrb[0].mxu0 %v185
  %v416 = vpop.f32.mrb[0].mxu0
  %v417 = vadd.f32 %v100, %v416
  %v418 = vpop.f32.mrb[0].mxu0
  %v419 = vpop.f32.mrb[0].mxu0
  %v420 = vadd.f32 %v100, %v419
  %v421 = vpop.f32.mrb[0].mxu0
  %422 = vmatprep.mubr.bf16.mxu0 %v189
  %423 = vmatmul.mubr.bf16.gmra.mrb[0].mxu0 %v188
  %v424 = vpop.f32.mrb[0].mxu0
  %v425 = vadd.f32 %v100, %v424
  %v426 = vpop.f32.mrb[0].mxu0
  %v427 = vpop.f32.mrb[0].mxu0
  %v428 = vadd.f32 %v100, %v427
  %v429 = vpop.f32.mrb[0].mxu0
  %430 = vmatprep.mubr.bf16.mxu0 %v192
  %431 = vmatmul.mubr.bf16.gmra.mrb[0].mxu0 %v191
  %v432 = vpop.f32.mrb[0].mxu0
  %v433 = vadd.f32 %v100, %v432
  %v434 = vpop.f32.mrb[0].mxu0
  %v435 = vpop.f32.mrb[0].mxu0
  %v436 = vadd.f32 %v100, %v435
  %v437 = vpop.f32.mrb[0].mxu0
  %438 = vmatprep.mubr.bf16.mxu0 %v195
  %439 = vmatmul.mubr.bf16.gmra.mrb[0].mxu0 %v194
  %v440 = vpop.f32.mrb[0].mxu0
  %v441 = vadd.f32 %v100, %v440
  %v442 = vpop.f32.mrb[0].mxu0
  %v443 = vpop.f32.mrb[0].mxu0
  %v444 = vadd.f32 %v100, %v443
  %v445 = vpop.f32.mrb[0].mxu0
  %446 = vmatprep.mubr.bf16.mxu0 %v198
  %447 = vmatmul.mubr.bf16.gmra.mrb[0].mxu0 %v197
  %v448 = vpop.f32.mrb[0].mxu0
  %v449 = vadd.f32 %v100, %v448
  %v450 = vpop.f32.mrb[0].mxu0
  %v451 = vpop.f32.mrb[0].mxu0
  %v452 = vadd.f32 %v100, %v451
  %v453 = vpop.f32.mrb[0].mxu0
  %454 = vmatprep.mubr.bf16.mxu0 %v201
  %455 = vmatmul.mubr.bf16.gmra.mrb[0].mxu0 %v200
  %v456 = vpop.f32.mrb[0].mxu0
  %v457 = vadd.f32 %v100, %v456
  %v458 = vpop.f32.mrb[0].mxu0
  %v459 = vpop.f32.mrb[0].mxu0
  %v460 = vadd.f32 %v100, %v459
  %v461 = vpop.f32.mrb[0].mxu0
  %462 = vmatprep.mubr.bf16.mxu0 %v204
  %463 = vmatmul.mubr.bf16.gmra.mrb[0].mxu0 %v203
  %v464 = vpop.f32.mrb[0].mxu0
  %v465 = vadd.f32 %v100, %v464
  %v466 = vpop.f32.mrb[0].mxu0
  %v467 = vpop.f32.mrb[0].mxu0
  %v468 = vadd.f32 %v100, %v467
  %v469 = vpop.f32.mrb[0].mxu0
  %470 = vdwg.mxu0
  %471 = vmatprep.subr.bf16.mxu0 0
  %472 = vmatpush1.bf16.msra.mxu0 %v342
  %473 = vmatprep.subr.bf16.mxu0 0
  %474 = vmatpush1.bf16.msra.mxu0 %v343
  %475 = vmatprep.subr.bf16.mxu0 0
  %476 = vmatpush1.bf16.msra.mxu0 %v344
  %477 = vmatprep.subr.bf16.mxu0 0
  %478 = vmatpush1.bf16.msra.mxu0 %v345
  %479 = vmatprep.subr.bf16.mxu0 0
  %480 = vmatpush1.bf16.msra.mxu0 %v346
  %481 = vmatprep.subr.bf16.mxu0 0
  %482 = vmatpush1.bf16.msra.mxu0 %v347
  %483 = vmatprep.subr.bf16.mxu0 0
  %484 = vmatpush1.bf16.msra.mxu0 %v348
  %485 = vmatprep.subr.bf16.mxu0 0
  %486 = vmatpush1.bf16.msra.mxu0 %v349
  %487 = vmatprep.subr.bf16.mxu0 0
  %488 = vmatpush1.bf16.msra.mxu0 0
  %489 = vmatprep.subr.bf16.mxu0 0
  %490 = vmatpush1.bf16.msra.mxu0 0
  %491 = vmatprep.subr.bf16.mxu0 0
  %492 = vmatpush1.bf16.msra.mxu0 0
  %493 = vmatprep.subr.bf16.mxu0 0
  %494 = vmatpush1.bf16.msra.mxu0 0
  %495 = vmatprep.subr.bf16.mxu0 0
  %496 = vmatpush1.bf16.msra.mxu0 0
  %497 = vmatprep.subr.bf16.mxu0 0
  %498 = vmatpush1.bf16.msra.mxu0 0
  %499 = vmatprep.subr.bf16.mxu0 0
  %500 = vmatpush1.bf16.msra.mxu0 0
  %501 = vmatprep.subr.bf16.mxu0 0
  %502 = vmatpush1.bf16.msra.mxu0 0
  %503 = vmatprep.mubr.bf16.mxu0 0
  %504 = vmatmul.mubr.bf16.gmra.mrb[0].mxu0 %v184
  %v505 = vpop.f32.mrb[0].mxu0
  %v506 = vadd.f32 %v409, %v505
  %v507 = vpop.f32.mrb[0].mxu0
  %v508 = vpop.f32.mrb[0].mxu0
  %v509 = vadd.f32 %v412, %v508
  %v510 = vpop.f32.mrb[0].mxu0
  %511 = vmatprep.mubr.bf16.mxu0 0
  %512 = vmatmul.mubr.bf16.gmra.mrb[0].mxu0 %v187
  %v513 = vpop.f32.mrb[0].mxu0
  %v514 = vadd.f32 %v417, %v513
  %v515 = vpop.f32.mrb[0].mxu0
  %v516 = vpop.f32.mrb[0].mxu0
  %v517 = vadd.f32 %v420, %v516
  %v518 = vpop.f32.mrb[0].mxu0
  %519 = vmatprep.mubr.bf16.mxu0 0
  %520 = vmatmul.mubr.bf16.gmra.mrb[0].mxu0 %v190
  %v521 = vpop.f32.mrb[0].mxu0
  %v522 = vadd.f32 %v425, %v521
  %v523 = vpop.f32.mrb[0].mxu0
  %v524 = vpop.f32.mrb[0].mxu0
  %v525 = vadd.f32 %v428, %v524
  %v526 = vpop.f32.mrb[0].mxu0
  %527 = vmatprep.mubr.bf16.mxu0 0
  %528 = vmatmul.mubr.bf16.gmra.mrb[0].mxu0 %v193
  %v529 = vpop.f32.mrb[0].mxu0
  %v530 = vadd.f32 %v433, %v529
  %v531 = vpop.f32.mrb[0].mxu0
  %v532 = vpop.f32.mrb[0].mxu0
  %v533 = vadd.f32 %v436, %v532
  %v534 = vpop.f32.mrb[0].mxu0
  %535 = vmatprep.mubr.bf16.mxu0 0
  %536 = vmatmul.mubr.bf16.gmra.mrb[0].mxu0 %v196
  %v537 = vpop.f32.mrb[0].mxu0
  %v538 = vadd.f32 %v441, %v537
  %v539 = vpop.f32.mrb[0].mxu0
  %v540 = vpop.f32.mrb[0].mxu0
  %v541 = vadd.f32 %v444, %v540
  %v542 = vpop.f32.mrb[0].mxu0
  %543 = vmatprep.mubr.bf16.mxu0 0
  %544 = vmatmul.mubr.bf16.gmra.mrb[0].mxu0 %v199
  %v545 = vpop.f32.mrb[0].mxu0
  %v546 = vadd.f32 %v449, %v545
  %v547 = vpop.f32.mrb[0].mxu0
  %v548 = vpop.f32.mrb[0].mxu0
  %v549 = vadd.f32 %v452, %v548
  %v550 = vpop.f32.mrb[0].mxu0
  %551 = vmatprep.mubr.bf16.mxu0 0
  %552 = vmatmul.mubr.bf16.gmra.mrb[0].mxu0 %v202
  %v553 = vpop.f32.mrb[0].mxu0
  %v554 = vadd.f32 %v457, %v553
  %v555 = vpop.f32.mrb[0].mxu0
  %v556 = vpop.f32.mrb[0].mxu0
  %v557 = vadd.f32 %v460, %v556
  %v558 = vpop.f32.mrb[0].mxu0
  %559 = vmatprep.mubr.bf16.mxu0 0
  %560 = vmatmul.mubr.bf16.gmra.mrb[0].mxu0 %v205
  %v561 = vpop.f32.mrb[0].mxu0
  %v562 = vadd.f32 %v465, %v561
  %v563 = vpop.f32.mrb[0].mxu0
  %v564 = vpop.f32.mrb[0].mxu0
  %v565 = vadd.f32 %v468, %v564
  %v566 = vpop.f32.mrb[0].mxu0
  %567 = vdwg.mxu0
  %v568 = vxor.u32 %v506, 2147483648
  %v569 = vxor.u32 %v509, 2147483648
  %v570 = vxor.u32 %v514, 2147483648
  %v571 = vxor.u32 %v517, 2147483648
  %v572 = vxor.u32 %v522, 2147483648
  %v573 = vxor.u32 %v525, 2147483648
  %v574 = vxor.u32 %v530, 2147483648
  %v575 = vxor.u32 %v533, 2147483648
  %v576 = vxor.u32 %v538, 2147483648
  %v577 = vxor.u32 %v541, 2147483648
  %v578 = vxor.u32 %v546, 2147483648
  %v579 = vxor.u32 %v549, 2147483648
  %v580 = vxor.u32 %v554, 2147483648
  %v581 = vxor.u32 %v557, 2147483648
  %v582 = vxor.u32 %v562, 2147483648
  %v583 = vxor.u32 %v565, 2147483648
  %v584 = vmul.f32 %v568, 1.442695
  %v585 = vpow.pop %v584
  %v586 = vmul.f32 %v569, 1.442695
  %v587 = vpow.pop %v586
  %v588 = vmul.f32 %v570, 1.442695
  %v589 = vpow.pop %v588
  %v590 = vmul.f32 %v571, 1.442695
  %v591 = vpow.pop %v590
  %v592 = vmul.f32 %v572, 1.442695
  %v593 = vpow.pop %v592
  %v594 = vmul.f32 %v573, 1.442695
  %v595 = vpow.pop %v594
  %v596 = vmul.f32 %v574, 1.442695
  %v597 = vpow.pop %v596
  %v598 = vmul.f32 %v575, 1.442695
  %v599 = vpow.pop %v598
  %v600 = vmul.f32 %v576, 1.442695
  %v601 = vpow.pop %v600
  %v602 = vmul.f32 %v577, 1.442695
  %v603 = vpow.pop %v602
  %v604 = vmul.f32 %v578, 1.442695
  %v605 = vpow.pop %v604
  %v606 = vmul.f32 %v579, 1.442695
  %v607 = vpow.pop %v606
  %v608 = vmul.f32 %v580, 1.442695
  %v609 = vpow.pop %v608
  %v610 = vmul.f32 %v581, 1.442695
  %v611 = vpow.pop %v610
  %v612 = vmul.f32 %v582, 1.442695
  %v613 = vpow.pop %v612
  %v614 = vmul.f32 %v583, 1.442695
  %v615 = vpow.pop %v614
  %v616 = vadd.f32 %v585, 1.0
  %v617 = vadd.f32 %v587, 1.0
  %v618 = vadd.f32 %v589, 1.0
  %v619 = vadd.f32 %v591, 1.0
  %v620 = vadd.f32 %v593, 1.0
  %v621 = vadd.f32 %v595, 1.0
  %v622 = vadd.f32 %v597, 1.0
  %v623 = vadd.f32 %v599, 1.0
  %v624 = vadd.f32 %v601, 1.0
  %v625 = vadd.f32 %v603, 1.0
  %v626 = vadd.f32 %v605, 1.0
  %v627 = vadd.f32 %v607, 1.0
  %v628 = vadd.f32 %v609, 1.0
  %v629 = vadd.f32 %v611, 1.0
  %v630 = vadd.f32 %v613, 1.0
  %v631 = vadd.f32 %v615, 1.0
  %v632 = vrcp.pop %v616
  %v633 = vmul.f32 1.0, %v632
  %v634 = vrcp.pop %v617
  %v635 = vmul.f32 1.0, %v634
  %v636 = vrcp.pop %v618
  %v637 = vmul.f32 1.0, %v636
  %v638 = vrcp.pop %v619
  %v639 = vmul.f32 1.0, %v638
  %v640 = vrcp.pop %v620
  %v641 = vmul.f32 1.0, %v640
  %v642 = vrcp.pop %v621
  %v643 = vmul.f32 1.0, %v642
  %v644 = vrcp.pop %v622
  %v645 = vmul.f32 1.0, %v644
  %v646 = vrcp.pop %v623
  %v647 = vmul.f32 1.0, %v646
  %v648 = vrcp.pop %v624
  %v649 = vmul.f32 1.0, %v648
  %v650 = vrcp.pop %v625
  %v651 = vmul.f32 1.0, %v650
  %v652 = vrcp.pop %v626
  %v653 = vmul.f32 1.0, %v652
  %v654 = vrcp.pop %v627
  %v655 = vmul.f32 1.0, %v654
  %v656 = vrcp.pop %v628
  %v657 = vmul.f32 1.0, %v656
  %v658 = vrcp.pop %v629
  %v659 = vmul.f32 1.0, %v658
  %v660 = vrcp.pop %v630
  %v661 = vmul.f32 1.0, %v660
  %v662 = vrcp.pop %v631
  %v663 = vmul.f32 1.0, %v662
  %v664 = vmul.f32 %v506, %v633
  %v665 = vmul.f32 %v509, %v635
  %v666 = vmul.f32 %v514, %v637
  %v667 = vmul.f32 %v517, %v639
  %v668 = vmul.f32 %v522, %v641
  %v669 = vmul.f32 %v525, %v643
  %v670 = vmul.f32 %v530, %v645
  %v671 = vmul.f32 %v533, %v647
  %v672 = vmul.f32 %v538, %v649
  %v673 = vmul.f32 %v541, %v651
  %v674 = vmul.f32 %v546, %v653
  %v675 = vmul.f32 %v549, %v655
  %v676 = vmul.f32 %v554, %v657
  %v677 = vmul.f32 %v557, %v659
  %v678 = vmul.f32 %v562, %v661
  %v679 = vmul.f32 %v565, %v663
  %680 = vst [vmem:[%s3] sm:$0xff] %v664
  %681 = vst [vmem:[%s3 + $0x8] sm:$0xff] %v665
  %682 = vst [vmem:[%s3 + $0x10] sm:$0xff] %v666
  %683 = vst [vmem:[%s3 + $0x18] sm:$0xff] %v667
  %684 = vst [vmem:[%s3 + $0x20] sm:$0xff] %v668
  %685 = vst [vmem:[%s3 + $0x28] sm:$0xff] %v669
  %686 = vst [vmem:[%s3 + $0x30] sm:$0xff] %v670
  %687 = vst [vmem:[%s3 + $0x38] sm:$0xff] %v671
  %688 = vst [vmem:[%s3 + $0x40] sm:$0xff] %v672
  %689 = vst [vmem:[%s3 + $0x48] sm:$0xff] %v673
  %690 = vst [vmem:[%s3 + $0x50] sm:$0xff] %v674
  %691 = vst [vmem:[%s3 + $0x58] sm:$0xff] %v675
  %692 = vst [vmem:[%s3 + $0x60] sm:$0xff] %v676
  %693 = vst [vmem:[%s3 + $0x68] sm:$0xff] %v677
  %694 = vst [vmem:[%s3 + $0x70] sm:$0xff] %v678
  %695 = vst [vmem:[%s3 + $0x78] sm:$0xff] %v679
  // Predicated region
  $region14: #{_lambda_.35} parent=0 // pred_check
    _
  $region15: #{_lambda_.35} parent=0 // pred_check_branch
    %697 = sbr.rel (0) target = $region17
  $region16: #{_lambda_.35} parent=0 // pred_region
    _
  $region17: #{_lambda_.35} parent=0 // pred_fallthru
    _
  // Predicated region
  $region18: #{_lambda_.35} parent=0 // pred_check
    _
  $region19: #{_lambda_.35} parent=0 // pred_check_branch
    %699 = sbr.rel (0) target = $region21
  $region20: #{_lambda_.35} parent=0 // pred_region
    _
  $region21: #{_lambda_.35} parent=0 // pred_fallthru
    _

// kernel: _lambda_.37
$region0: #{_lambda_.37}
  #allocation0 [shape = 'u32[]', space=smem, size = 0x4, offset = 0x4, fixed_abs, tag = 'smem constant byte address 0x4 - core index']
  #allocation1 [shape = 'u32[144,128]{1,0:T(1,128)}', space=vmem, size = 0x12000, scoped, tag = 'internal scratch']
  %s0 = inlined_call_operand.vmem [shape: bf16[128,640], index: 0, kind: input, shape index: {}]
  %s1 = inlined_call_operand.vmem [shape: bf16[640,128], index: 1, kind: input, shape index: {}]
  %s2 = inlined_call_operand.vmem [shape: f32[1,128], index: 2, kind: input, shape index: {}]
  %s3 = inlined_call_operand.vmem [shape: f32[128,128], index: 3, kind: output, shape index: {}]
  %s4 = sld [smem:[#allocation0]]
  $region22: #{_lambda_.37} parent=0
    _
  %s6 = ssub.s32 1, %s4
  %s7 = scalar_select 0, %s6, %s4
  // Predicated region
  $region2: #{_lambda_.37} parent=0 // pred_check
    _
  $region3: #{_lambda_.37} parent=0 // pred_check_branch
    %9 = sbr.rel (0) target = $region5
  $region4: #{_lambda_.37} parent=0 // pred_region
    _
  $region5: #{_lambda_.37} parent=0 // pred_fallthru
    _
  // Predicated region
  $region6: #{_lambda_.37} parent=0 // pred_check
    _
  $region7: #{_lambda_.37} parent=0 // pred_check_branch
    %11 = sbr.rel (0) target = $region9
  $region8: #{_lambda_.37} parent=0 // pred_region
    _
  $region9: #{_lambda_.37} parent=0 // pred_fallthru
    _
  // Predicated region
  $region10: #{_lambda_.37} parent=0 // pred_check
    _
  $region11: #{_lambda_.37} parent=0 // pred_check_branch
    %13 = sbr.rel (0) target = $region13
  $region12: #{_lambda_.37} parent=0 // pred_region
    _
  $region13: #{_lambda_.37} parent=0 // pred_fallthru
    _
  %v15 = vld [vmem:[%s0] sm:$0xff]
  %v16 = vld [vmem:[%s0 + $0x8] sm:$0xff]
  %v17 = vld [vmem:[%s0 + $0x10] sm:$0xf]
  %v18 = vld [vmem:[%s0 + $0x14] sm:$0xff]
  %v19 = vld [vmem:[%s0 + $0x1c] sm:$0xff]
  %v20 = vld [vmem:[%s0 + $0x24] sm:$0xf]
  %v21 = vld [vmem:[%s0 + $0x28] sm:$0xff]
  %v22 = vld [vmem:[%s0 + $0x30] sm:$0xff]
  %v23 = vld [vmem:[%s0 + $0x38] sm:$0xf]
  %v24 = vld [vmem:[%s0 + $0x3c] sm:$0xff]
  %v25 = vld [vmem:[%s0 + $0x44] sm:$0xff]
  %v26 = vld [vmem:[%s0 + $0x4c] sm:$0xf]
  %v27 = vld [vmem:[%s0 + $0x50] sm:$0xff]
  %v28 = vld [vmem:[%s0 + $0x58] sm:$0xff]
  %v29 = vld [vmem:[%s0 + $0x60] sm:$0xf]
  %v30 = vld [vmem:[%s0 + $0x64] sm:$0xff]
  %v31 = vld [vmem:[%s0 + $0x6c] sm:$0xff]
  %v32 = vld [vmem:[%s0 + $0x74] sm:$0xf]
  %v33 = vld [vmem:[%s0 + $0x78] sm:$0xff]
  %v34 = vld [vmem:[%s0 + $0x80] sm:$0xff]
  %v35 = vld [vmem:[%s0 + $0x88] sm:$0xf]
  %v36 = vld [vmem:[%s0 + $0x8c] sm:$0xff]
  %v37 = vld [vmem:[%s0 + $0x94] sm:$0xff]
  %v38 = vld [vmem:[%s0 + $0x9c] sm:$0xf]
  %v39 = vld [vmem:[%s0 + $0xa0] sm:$0xff]
  %v40 = vld [vmem:[%s0 + $0xa8] sm:$0xff]
  %v41 = vld [vmem:[%s0 + $0xb0] sm:$0xf]
  %v42 = vld [vmem:[%s0 + $0xb4] sm:$0xff]
  %v43 = vld [vmem:[%s0 + $0xbc] sm:$0xff]
  %v44 = vld [vmem:[%s0 + $0xc4] sm:$0xf]
  %v45 = vld [vmem:[%s0 + $0xc8] sm:$0xff]
  %v46 = vld [vmem:[%s0 + $0xd0] sm:$0xff]
  %v47 = vld [vmem:[%s0 + $0xd8] sm:$0xf]
  %v48 = vld [vmem:[%s0 + $0xdc] sm:$0xff]
  %v49 = vld [vmem:[%s0 + $0xe4] sm:$0xff]
  %v50 = vld [vmem:[%s0 + $0xec] sm:$0xf]
  %v51 = vld [vmem:[%s0 + $0xf0] sm:$0xff]
  %v52 = vld [vmem:[%s0 + $0xf8] sm:$0xff]
  %v53 = vld [vmem:[%s0 + $0x100] sm:$0xf]
  %v54 = vld [vmem:[%s0 + $0x104] sm:$0xff]
  %v55 = vld [vmem:[%s0 + $0x10c] sm:$0xff]
  %v56 = vld [vmem:[%s0 + $0x114] sm:$0xf]
  %v57 = vld [vmem:[%s0 + $0x118] sm:$0xff]
  %v58 = vld [vmem:[%s0 + $0x120] sm:$0xff]
  %v59 = vld [vmem:[%s0 + $0x128] sm:$0xf]
  %v60 = vld [vmem:[%s0 + $0x12c] sm:$0xff]
  %v61 = vld [vmem:[%s0 + $0x134] sm:$0xff]
  %v62 = vld [vmem:[%s0 + $0x13c] sm:$0xf]
  %v63 = vld [vmem:[%s1] sm:$0xf]
  %v64 = vld [vmem:[%s1 + $0x4] sm:$0xf]
  %v65 = vld [vmem:[%s1 + $0x8] sm:$0xf]
  %v66 = vld [vmem:[%s1 + $0xc] sm:$0xf]
  %v67 = vld [vmem:[%s1 + $0x10] sm:$0xf]
  %v68 = vld [vmem:[%s1 + $0x14] sm:$0xf]
  %v69 = vld [vmem:[%s1 + $0x18] sm:$0xf]
  %v70 = vld [vmem:[%s1 + $0x1c] sm:$0xf]
  %v71 = vld [vmem:[%s1 + $0x20] sm:$0xf]
  %v72 = vld [vmem:[%s1 + $0x24] sm:$0xf]
  %v73 = vld [vmem:[%s1 + $0x28] sm:$0xf]
  %v74 = vld [vmem:[%s1 + $0x2c] sm:$0xf]
  %v75 = vld [vmem:[%s1 + $0x30] sm:$0xf]
  %v76 = vld [vmem:[%s1 + $0x34] sm:$0xf]
  %v77 = vld [vmem:[%s1 + $0x38] sm:$0xf]
  %v78 = vld [vmem:[%s1 + $0x3c] sm:$0xf]
  %v79 = vld [vmem:[%s1 + $0x40] sm:$0xf]
  %v80 = vld [vmem:[%s1 + $0x44] sm:$0xf]
  %v81 = vld [vmem:[%s1 + $0x48] sm:$0xf]
  %v82 = vld [vmem:[%s1 + $0x4c] sm:$0xf]
  %v83 = vld [vmem:[%s1 + $0x50] sm:$0xf]
  %v84 = vld [vmem:[%s1 + $0x54] sm:$0xf]
  %v85 = vld [vmem:[%s1 + $0x58] sm:$0xf]
  %v86 = vld [vmem:[%s1 + $0x5c] sm:$0xf]
  %v87 = vld [vmem:[%s1 + $0x60] sm:$0xf]
  %v88 = vld [vmem:[%s1 + $0x64] sm:$0xf]
  %v89 = vld [vmem:[%s1 + $0x68] sm:$0xf]
  %v90 = vld [vmem:[%s1 + $0x6c] sm:$0xf]
  %v91 = vld [vmem:[%s1 + $0x70] sm:$0xf]
  %v92 = vld [vmem:[%s1 + $0x74] sm:$0xf]
  %v93 = vld [vmem:[%s1 + $0x78] sm:$0xf]
  %v94 = vld [vmem:[%s1 + $0x7c] sm:$0xf]
  %v95 = vld [vmem:[%s1 + $0x80] sm:$0xf]
  %v96 = vld [vmem:[%s1 + $0x84] sm:$0xf]
  %v97 = vld [vmem:[%s1 + $0x88] sm:$0xf]
  %v98 = vld [vmem:[%s1 + $0x8c] sm:$0xf]
  %v99 = vld [vmem:[%s1 + $0x90] sm:$0xf]
  %v100 = vld [vmem:[%s1 + $0x94] sm:$0xf]
  %v101 = vld [vmem:[%s1 + $0x98] sm:$0xf]
  %v102 = vld [vmem:[%s1 + $0x9c] sm:$0xf]
  %v103 = vld [vmem:[%s1 + $0xa0] sm:$0xf]
  %v104 = vld [vmem:[%s1 + $0xa4] sm:$0xf]
  %v105 = vld [vmem:[%s1 + $0xa8] sm:$0xf]
  %v106 = vld [vmem:[%s1 + $0xac] sm:$0xf]
  %v107 = vld [vmem:[%s1 + $0xb0] sm:$0xf]
  %v108 = vld [vmem:[%s1 + $0xb4] sm:$0xf]
  %v109 = vld [vmem:[%s1 + $0xb8] sm:$0xf]
  %v110 = vld [vmem:[%s1 + $0xbc] sm:$0xf]
  %v111 = vld [vmem:[%s1 + $0xc0] sm:$0xf]
  %v112 = vld [vmem:[%s1 + $0xc4] sm:$0xf]
  %v113 = vld [vmem:[%s1 + $0xc8] sm:$0xf]
  %v114 = vld [vmem:[%s1 + $0xcc] sm:$0xf]
  %v115 = vld [vmem:[%s1 + $0xd0] sm:$0xf]
  %v116 = vld [vmem:[%s1 + $0xd4] sm:$0xf]
  %v117 = vld [vmem:[%s1 + $0xd8] sm:$0xf]
  %v118 = vld [vmem:[%s1 + $0xdc] sm:$0xf]
  %v119 = vld [vmem:[%s1 + $0xe0] sm:$0xf]
  %v120 = vld [vmem:[%s1 + $0xe4] sm:$0xf]
  %v121 = vld [vmem:[%s1 + $0xe8] sm:$0xf]
  %v122 = vld [vmem:[%s1 + $0xec] sm:$0xf]
  %v123 = vld [vmem:[%s1 + $0xf0] sm:$0xf]
  %v124 = vld [vmem:[%s1 + $0xf4] sm:$0xf]
  %v125 = vld [vmem:[%s1 + $0xf8] sm:$0xf]
  %v126 = vld [vmem:[%s1 + $0xfc] sm:$0xf]
  %v127 = vld [vmem:[%s1 + $0x100] sm:$0xf]
  %v128 = vld [vmem:[%s1 + $0x104] sm:$0xf]
  %v129 = vld [vmem:[%s1 + $0x108] sm:$0xf]
  %v130 = vld [vmem:[%s1 + $0x10c] sm:$0xf]
  %v131 = vld [vmem:[%s1 + $0x110] sm:$0xf]
  %v132 = vld [vmem:[%s1 + $0x114] sm:$0xf]
  %v133 = vld [vmem:[%s1 + $0x118] sm:$0xf]
  %v134 = vld [vmem:[%s1 + $0x11c] sm:$0xf]
  %v135 = vld [vmem:[%s1 + $0x120] sm:$0xf]
  %v136 = vld [vmem:[%s1 + $0x124] sm:$0xf]
  %v137 = vld [vmem:[%s1 + $0x128] sm:$0xf]
  %v138 = vld [vmem:[%s1 + $0x12c] sm:$0xf]
  %v139 = vld [vmem:[%s1 + $0x130] sm:$0xf]
  %v140 = vld [vmem:[%s1 + $0x134] sm:$0xf]
  %v141 = vld [vmem:[%s1 + $0x138] sm:$0xf]
  %v142 = vld [vmem:[%s1 + $0x13c] sm:$0xf]
  %v143 = vld [vmem:[%s2] sm:$0x1]
  %v145 = vlaneseq
  %v146 = vshrl.u32 %v145, 7
  %v147 = vsub.s32 0, %v146
  %v148 = vrot.slane %v143, %v147
  %v198 = vunpack.c.l.b16 %v15
  %v199 = vunpack.c.h.b16 %v15
  %v200 = vunpack.c.l.b16 %v16
  %v201 = vunpack.c.h.b16 %v16
  %v202 = vunpack.c.l.b16 %v17
  %v203 = vunpack.c.l.b16 %v18
  %v204 = vunpack.c.h.b16 %v18
  %v205 = vunpack.c.l.b16 %v19
  %v206 = vunpack.c.h.b16 %v19
  %v207 = vunpack.c.l.b16 %v20
  %v208 = vunpack.c.l.b16 %v21
  %v209 = vunpack.c.h.b16 %v21
  %v210 = vunpack.c.l.b16 %v22
  %v211 = vunpack.c.h.b16 %v22
  %v212 = vunpack.c.l.b16 %v23
  %v213 = vunpack.c.l.b16 %v24
  %v214 = vunpack.c.h.b16 %v24
  %v215 = vunpack.c.l.b16 %v25
  %v216 = vunpack.c.h.b16 %v25
  %v217 = vunpack.c.l.b16 %v26
  %v218 = vunpack.c.l.b16 %v27
  %v219 = vunpack.c.h.b16 %v27
  %v220 = vunpack.c.l.b16 %v28
  %v221 = vunpack.c.h.b16 %v28
  %v222 = vunpack.c.l.b16 %v29
  %v223 = vunpack.c.l.b16 %v30
  %v224 = vunpack.c.h.b16 %v30
  %v225 = vunpack.c.l.b16 %v31
  %v226 = vunpack.c.h.b16 %v31
  %v227 = vunpack.c.l.b16 %v32
  %v228 = vunpack.c.l.b16 %v33
  %v229 = vunpack.c.h.b16 %v33
  %v230 = vunpack.c.l.b16 %v34
  %v231 = vunpack.c.h.b16 %v34
  %v232 = vunpack.c.l.b16 %v35
  %v233 = vunpack.c.l.b16 %v36
  %v234 = vunpack.c.h.b16 %v36
  %v235 = vunpack.c.l.b16 %v37
  %v236 = vunpack.c.h.b16 %v37
  %v237 = vunpack.c.l.b16 %v38
  %v238 = vunpack.c.l.b16 %v39
  %v239 = vunpack.c.h.b16 %v39
  %v240 = vunpack.c.l.b16 %v40
  %v241 = vunpack.c.h.b16 %v40
  %v242 = vunpack.c.l.b16 %v41
  %v243 = vunpack.c.l.b16 %v42
  %v244 = vunpack.c.h.b16 %v42
  %v245 = vunpack.c.l.b16 %v43
  %v246 = vunpack.c.h.b16 %v43
  %v247 = vunpack.c.l.b16 %v44
  %v248 = vunpack.c.l.b16 %v45
  %v249 = vunpack.c.h.b16 %v45
  %v250 = vunpack.c.l.b16 %v46
  %v251 = vunpack.c.h.b16 %v46
  %v252 = vunpack.c.l.b16 %v47
  %v253 = vunpack.c.l.b16 %v48
  %v254 = vunpack.c.h.b16 %v48
  %v255 = vunpack.c.l.b16 %v49
  %v256 = vunpack.c.h.b16 %v49
  %v257 = vunpack.c.l.b16 %v50
  %v258 = vunpack.c.l.b16 %v51
  %v259 = vunpack.c.h.b16 %v51
  %v260 = vunpack.c.l.b16 %v52
  %v261 = vunpack.c.h.b16 %v52
  %v262 = vunpack.c.l.b16 %v53
  %v263 = vunpack.c.l.b16 %v54
  %v264 = vunpack.c.h.b16 %v54
  %v265 = vunpack.c.l.b16 %v55
  %v266 = vunpack.c.h.b16 %v55
  %v267 = vunpack.c.l.b16 %v56
  %v268 = vunpack.c.l.b16 %v57
  %v269 = vunpack.c.h.b16 %v57
  %v270 = vunpack.c.l.b16 %v58
  %v271 = vunpack.c.h.b16 %v58
  %v272 = vunpack.c.l.b16 %v59
  %v273 = vunpack.c.l.b16 %v60
  %v274 = vunpack.c.h.b16 %v60
  %v275 = vunpack.c.l.b16 %v61
  %v276 = vunpack.c.h.b16 %v61
  %v277 = vunpack.c.l.b16 %v62
  %v278 = vpack.c.b16 %v203, %v198
  %v279 = vpack.c.b16 %v204, %v199
  %v280 = vpack.c.b16 %v205, %v200
  %v281 = vpack.c.b16 %v206, %v201
  %v282 = vpack.c.b16 %v207, %v202
  %v283 = vpack.c.b16 %v213, %v208
  %v284 = vpack.c.b16 %v214, %v209
  %v285 = vpack.c.b16 %v215, %v210
  %v286 = vpack.c.b16 %v216, %v211
  %v287 = vpack.c.b16 %v217, %v212
  %v288 = vpack.c.b16 %v223, %v218
  %v289 = vpack.c.b16 %v224, %v219
  %v290 = vpack.c.b16 %v225, %v220
  %v291 = vpack.c.b16 %v226, %v221
  %v292 = vpack.c.b16 %v227, %v222
  %v293 = vpack.c.b16 %v233, %v228
  %v294 = vpack.c.b16 %v234, %v229
  %v295 = vpack.c.b16 %v235, %v230
  %v296 = vpack.c.b16 %v236, %v231
  %v297 = vpack.c.b16 %v237, %v232
  %v298 = vpack.c.b16 %v243, %v238
  %v299 = vpack.c.b16 %v244, %v239
  %v300 = vpack.c.b16 %v245, %v240
  %v301 = vpack.c.b16 %v246, %v241
  %v302 = vpack.c.b16 %v247, %v242
  %v303 = vpack.c.b16 %v253, %v248
  %v304 = vpack.c.b16 %v254, %v249
  %v305 = vpack.c.b16 %v255, %v250
  %v306 = vpack.c.b16 %v256, %v251
  %v307 = vpack.c.b16 %v257, %v252
  %v308 = vpack.c.b16 %v263, %v258
  %v309 = vpack.c.b16 %v264, %v259
  %v310 = vpack.c.b16 %v265, %v260
  %v311 = vpack.c.b16 %v266, %v261
  %v312 = vpack.c.b16 %v267, %v262
  %v313 = vpack.c.b16 %v273, %v268
  %v314 = vpack.c.b16 %v274, %v269
  %v315 = vpack.c.b16 %v275, %v270
  %v316 = vpack.c.b16 %v276, %v271
  %v317 = vpack.c.b16 %v277, %v272
  %v438 = vunpack.c.l.b16 %v63
  %v439 = vunpack.c.l.b16 %v64
  %v440 = vunpack.c.l.b16 %v65
  %v441 = vunpack.c.l.b16 %v66
  %v442 = vunpack.c.l.b16 %v67
  %v443 = vunpack.c.l.b16 %v68
  %v444 = vunpack.c.l.b16 %v69
  %v445 = vunpack.c.l.b16 %v70
  %v446 = vunpack.c.l.b16 %v71
  %v447 = vunpack.c.l.b16 %v72
  %v448 = vunpack.c.l.b16 %v73
  %v449 = vunpack.c.l.b16 %v74
  %v450 = vunpack.c.l.b16 %v75
  %v451 = vunpack.c.l.b16 %v76
  %v452 = vunpack.c.l.b16 %v77
  %v453 = vunpack.c.l.b16 %v78
  %v454 = vunpack.c.l.b16 %v79
  %v455 = vunpack.c.l.b16 %v80
  %v456 = vunpack.c.l.b16 %v81
  %v457 = vunpack.c.l.b16 %v82
  %v458 = vunpack.c.l.b16 %v83
  %v459 = vunpack.c.l.b16 %v84
  %v460 = vunpack.c.l.b16 %v85
  %v461 = vunpack.c.l.b16 %v86
  %v462 = vunpack.c.l.b16 %v87
  %v463 = vunpack.c.l.b16 %v88
  %v464 = vunpack.c.l.b16 %v89
  %v465 = vunpack.c.l.b16 %v90
  %v466 = vunpack.c.l.b16 %v91
  %v467 = vunpack.c.l.b16 %v92
  %v468 = vunpack.c.l.b16 %v93
  %v469 = vunpack.c.l.b16 %v94
  %v470 = vunpack.c.l.b16 %v95
  %v471 = vunpack.c.l.b16 %v96
  %v472 = vunpack.c.l.b16 %v97
  %v473 = vunpack.c.l.b16 %v98
  %v474 = vunpack.c.l.b16 %v99
  %v475 = vunpack.c.l.b16 %v100
  %v476 = vunpack.c.l.b16 %v101
  %v477 = vunpack.c.l.b16 %v102
  %v478 = vunpack.c.l.b16 %v103
  %v479 = vunpack.c.l.b16 %v104
  %v480 = vunpack.c.l.b16 %v105
  %v481 = vunpack.c.l.b16 %v106
  %v482 = vunpack.c.l.b16 %v107
  %v483 = vunpack.c.l.b16 %v108
  %v484 = vunpack.c.l.b16 %v109
  %v485 = vunpack.c.l.b16 %v110
  %v486 = vunpack.c.l.b16 %v111
  %v487 = vunpack.c.l.b16 %v112
  %v488 = vunpack.c.l.b16 %v113
  %v489 = vunpack.c.l.b16 %v114
  %v490 = vunpack.c.l.b16 %v115
  %v491 = vunpack.c.l.b16 %v116
  %v492 = vunpack.c.l.b16 %v117
  %v493 = vunpack.c.l.b16 %v118
  %v494 = vunpack.c.l.b16 %v119
  %v495 = vunpack.c.l.b16 %v120
  %v496 = vunpack.c.l.b16 %v121
  %v497 = vunpack.c.l.b16 %v122
  %v498 = vunpack.c.l.b16 %v123
  %v499 = vunpack.c.l.b16 %v124
  %v500 = vunpack.c.l.b16 %v125
  %v501 = vunpack.c.l.b16 %v126
  %v502 = vunpack.c.l.b16 %v127
  %v503 = vunpack.c.l.b16 %v128
  %v504 = vunpack.c.l.b16 %v129
  %v505 = vunpack.c.l.b16 %v130
  %v506 = vunpack.c.l.b16 %v131
  %v507 = vunpack.c.l.b16 %v132
  %v508 = vunpack.c.l.b16 %v133
  %v509 = vunpack.c.l.b16 %v134
  %v510 = vunpack.c.l.b16 %v135
  %v511 = vunpack.c.l.b16 %v136
  %v512 = vunpack.c.l.b16 %v137
  %v513 = vunpack.c.l.b16 %v138
  %v514 = vunpack.c.l.b16 %v139
  %v515 = vunpack.c.l.b16 %v140
  %v516 = vunpack.c.l.b16 %v141
  %v517 = vunpack.c.l.b16 %v142
  %v518 = vpack.c.b16 %v439, %v438
  %v519 = vpack.c.b16 %v441, %v440
  %v520 = vpack.c.b16 %v443, %v442
  %v521 = vpack.c.b16 %v445, %v444
  %v522 = vpack.c.b16 %v447, %v446
  %v523 = vpack.c.b16 %v449, %v448
  %v524 = vpack.c.b16 %v451, %v450
  %v525 = vpack.c.b16 %v453, %v452
  %v526 = vpack.c.b16 %v455, %v454
  %v527 = vpack.c.b16 %v457, %v456
  %v528 = vpack.c.b16 %v459, %v458
  %v529 = vpack.c.b16 %v461, %v460
  %v530 = vpack.c.b16 %v463, %v462
  %v531 = vpack.c.b16 %v465, %v464
  %v532 = vpack.c.b16 %v467, %v466
  %v533 = vpack.c.b16 %v469, %v468
  %v534 = vpack.c.b16 %v471, %v470
  %v535 = vpack.c.b16 %v473, %v472
  %v536 = vpack.c.b16 %v475, %v474
  %v537 = vpack.c.b16 %v477, %v476
  %v538 = vpack.c.b16 %v479, %v478
  %v539 = vpack.c.b16 %v481, %v480
  %v540 = vpack.c.b16 %v483, %v482
  %v541 = vpack.c.b16 %v485, %v484
  %v542 = vpack.c.b16 %v487, %v486
  %v543 = vpack.c.b16 %v489, %v488
  %v544 = vpack.c.b16 %v491, %v490
  %v545 = vpack.c.b16 %v493, %v492
  %v546 = vpack.c.b16 %v495, %v494
  %v547 = vpack.c.b16 %v497, %v496
  %v548 = vpack.c.b16 %v499, %v498
  %v549 = vpack.c.b16 %v501, %v500
  %v550 = vpack.c.b16 %v503, %v502
  %v551 = vpack.c.b16 %v505, %v504
  %v552 = vpack.c.b16 %v507, %v506
  %v553 = vpack.c.b16 %v509, %v508
  %v554 = vpack.c.b16 %v511, %v510
  %v555 = vpack.c.b16 %v513, %v512
  %v556 = vpack.c.b16 %v515, %v514
  %v557 = vpack.c.b16 %v517, %v516
  %598 = vmatprep.subr.bf16.mxu0 0
  %599 = vmatpush1.bf16.msra.mxu0 %v518
  %600 = vmatprep.subr.bf16.mxu0 0
  %601 = vmatpush1.bf16.msra.mxu0 %v519
  %602 = vmatprep.subr.bf16.mxu0 0
  %603 = vmatpush1.bf16.msra.mxu0 %v520
  %604 = vmatprep.subr.bf16.mxu0 0
  %605 = vmatpush1.bf16.msra.mxu0 %v521
  %606 = vmatprep.subr.bf16.mxu0 0
  %607 = vmatpush1.bf16.msra.mxu0 %v522
  %608 = vmatprep.subr.bf16.mxu0 0
  %609 = vmatpush1.bf16.msra.mxu0 %v523
  %610 = vmatprep.subr.bf16.mxu0 0
  %611 = vmatpush1.bf16.msra.mxu0 %v524
  %612 = vmatprep.subr.bf16.mxu0 0
  %613 = vmatpush1.bf16.msra.mxu0 %v525
  %614 = vmatprep.subr.bf16.mxu0 0
  %615 = vmatpush1.bf16.msra.mxu0 %v526
  %616 = vmatprep.subr.bf16.mxu0 0
  %617 = vmatpush1.bf16.msra.mxu0 %v527
  %618 = vmatprep.subr.bf16.mxu0 0
  %619 = vmatpush1.bf16.msra.mxu0 %v528
  %620 = vmatprep.subr.bf16.mxu0 0
  %621 = vmatpush1.bf16.msra.mxu0 %v529
  %622 = vmatprep.subr.bf16.mxu0 0
  %623 = vmatpush1.bf16.msra.mxu0 %v530
  %624 = vmatprep.subr.bf16.mxu0 0
  %625 = vmatpush1.bf16.msra.mxu0 %v531
  %626 = vmatprep.subr.bf16.mxu0 0
  %627 = vmatpush1.bf16.msra.mxu0 %v532
  %628 = vmatprep.subr.bf16.mxu0 0
  %629 = vmatpush1.bf16.msra.mxu0 %v533
  %630 = vmatprep.mubr.bf16.mxu0 %v279
  %631 = vmatmul.mubr.bf16.gmra.mrb[0].mxu0 %v278
  %v632 = vpop.f32.mrb[0].mxu0
  %v633 = vadd.f32 %v148, %v632
  %v634 = vpop.f32.mrb[0].mxu0
  %v635 = vpop.f32.mrb[0].mxu0
  %v636 = vadd.f32 %v148, %v635
  %v637 = vpop.f32.mrb[0].mxu0
  %638 = vmatprep.mubr.bf16.mxu0 %v284
  %639 = vmatmul.mubr.bf16.gmra.mrb[0].mxu0 %v283
  %v640 = vpop.f32.mrb[0].mxu0
  %v641 = vadd.f32 %v148, %v640
  %v642 = vpop.f32.mrb[0].mxu0
  %v643 = vpop.f32.mrb[0].mxu0
  %v644 = vadd.f32 %v148, %v643
  %v645 = vpop.f32.mrb[0].mxu0
  %646 = vmatprep.mubr.bf16.mxu0 %v289
  %647 = vmatmul.mubr.bf16.gmra.mrb[0].mxu0 %v288
  %v648 = vpop.f32.mrb[0].mxu0
  %v649 = vadd.f32 %v148, %v648
  %v650 = vpop.f32.mrb[0].mxu0
  %v651 = vpop.f32.mrb[0].mxu0
  %v652 = vadd.f32 %v148, %v651
  %v653 = vpop.f32.mrb[0].mxu0
  %654 = vmatprep.mubr.bf16.mxu0 %v294
  %655 = vmatmul.mubr.bf16.gmra.mrb[0].mxu0 %v293
  %v656 = vpop.f32.mrb[0].mxu0
  %v657 = vadd.f32 %v148, %v656
  %v658 = vpop.f32.mrb[0].mxu0
  %v659 = vpop.f32.mrb[0].mxu0
  %v660 = vadd.f32 %v148, %v659
  %v661 = vpop.f32.mrb[0].mxu0
  %662 = vmatprep.mubr.bf16.mxu0 %v299
  %663 = vmatmul.mubr.bf16.gmra.mrb[0].mxu0 %v298
  %v664 = vpop.f32.mrb[0].mxu0
  %v665 = vadd.f32 %v148, %v664
  %v666 = vpop.f32.mrb[0].mxu0
  %v667 = vpop.f32.mrb[0].mxu0
  %v668 = vadd.f32 %v148, %v667
  %v669 = vpop.f32.mrb[0].mxu0
  %670 = vmatprep.mubr.bf16.mxu0 %v304
  %671 = vmatmul.mubr.bf16.gmra.mrb[0].mxu0 %v303
  %v672 = vpop.f32.mrb[0].mxu0
  %v673 = vadd.f32 %v148, %v672
  %v674 = vpop.f32.mrb[0].mxu0
  %v675 = vpop.f32.mrb[0].mxu0
  %v676 = vadd.f32 %v148, %v675
  %v677 = vpop.f32.mrb[0].mxu0
  %678 = vmatprep.mubr.bf16.mxu0 %v309
  %679 = vmatmul.mubr.bf16.gmra.mrb[0].mxu0 %v308
  %v680 = vpop.f32.mrb[0].mxu0
  %v681 = vadd.f32 %v148, %v680
  %v682 = vpop.f32.mrb[0].mxu0
  %v683 = vpop.f32.mrb[0].mxu0
  %v684 = vadd.f32 %v148, %v683
  %v685 = vpop.f32.mrb[0].mxu0
  %686 = vmatprep.mubr.bf16.mxu0 %v314
  %687 = vmatmul.mubr.bf16.gmra.mrb[0].mxu0 %v313
  %v688 = vpop.f32.mrb[0].mxu0
  %v689 = vadd.f32 %v148, %v688
  %v690 = vpop.f32.mrb[0].mxu0
  %v691 = vpop.f32.mrb[0].mxu0
  %v692 = vadd.f32 %v148, %v691
  %v693 = vpop.f32.mrb[0].mxu0
  %694 = vdwg.mxu0
  %695 = vmatprep.subr.bf16.mxu0 0
  %696 = vmatpush1.bf16.msra.mxu0 %v534
  %697 = vmatprep.subr.bf16.mxu0 0
  %698 = vmatpush1.bf16.msra.mxu0 %v535
  %699 = vmatprep.subr.bf16.mxu0 0
  %700 = vmatpush1.bf16.msra.mxu0 %v536
  %701 = vmatprep.subr.bf16.mxu0 0
  %702 = vmatpush1.bf16.msra.mxu0 %v537
  %703 = vmatprep.subr.bf16.mxu0 0
  %704 = vmatpush1.bf16.msra.mxu0 %v538
  %705 = vmatprep.subr.bf16.mxu0 0
  %706 = vmatpush1.bf16.msra.mxu0 %v539
  %707 = vmatprep.subr.bf16.mxu0 0
  %708 = vmatpush1.bf16.msra.mxu0 %v540
  %709 = vmatprep.subr.bf16.mxu0 0
  %710 = vmatpush1.bf16.msra.mxu0 %v541
  %711 = vmatprep.subr.bf16.mxu0 0
  %712 = vmatpush1.bf16.msra.mxu0 %v542
  %713 = vmatprep.subr.bf16.mxu0 0
  %714 = vmatpush1.bf16.msra.mxu0 %v543
  %715 = vmatprep.subr.bf16.mxu0 0
  %716 = vmatpush1.bf16.msra.mxu0 %v544
  %717 = vmatprep.subr.bf16.mxu0 0
  %718 = vmatpush1.bf16.msra.mxu0 %v545
  %719 = vmatprep.subr.bf16.mxu0 0
  %720 = vmatpush1.bf16.msra.mxu0 %v546
  %721 = vmatprep.subr.bf16.mxu0 0
  %722 = vmatpush1.bf16.msra.mxu0 %v547
  %723 = vmatprep.subr.bf16.mxu0 0
  %724 = vmatpush1.bf16.msra.mxu0 %v548
  %725 = vmatprep.subr.bf16.mxu0 0
  %726 = vmatpush1.bf16.msra.mxu0 %v549
  %727 = vmatprep.mubr.bf16.mxu0 %v281
  %728 = vmatmul.mubr.bf16.gmra.mrb[0].mxu0 %v280
  %v729 = vpop.f32.mrb[0].mxu0
  %v730 = vadd.f32 %v633, %v729
  %v731 = vpop.f32.mrb[0].mxu0
  %v732 = vpop.f32.mrb[0].mxu0
  %v733 = vadd.f32 %v636, %v732
  %v734 = vpop.f32.mrb[0].mxu0
  %735 = vmatprep.mubr.bf16.mxu0 %v286
  %736 = vmatmul.mubr.bf16.gmra.mrb[0].mxu0 %v285
  %v737 = vpop.f32.mrb[0].mxu0
  %v738 = vadd.f32 %v641, %v737
  %v739 = vpop.f32.mrb[0].mxu0
  %v740 = vpop.f32.mrb[0].mxu0
  %v741 = vadd.f32 %v644, %v740
  %v742 = vpop.f32.mrb[0].mxu0
  %743 = vmatprep.mubr.bf16.mxu0 %v291
  %744 = vmatmul.mubr.bf16.gmra.mrb[0].mxu0 %v290
  %v745 = vpop.f32.mrb[0].mxu0
  %v746 = vadd.f32 %v649, %v745
  %v747 = vpop.f32.mrb[0].mxu0
  %v748 = vpop.f32.mrb[0].mxu0
  %v749 = vadd.f32 %v652, %v748
  %v750 = vpop.f32.mrb[0].mxu0
  %751 = vmatprep.mubr.bf16.mxu0 %v296
  %752 = vmatmul.mubr.bf16.gmra.mrb[0].mxu0 %v295
  %v753 = vpop.f32.mrb[0].mxu0
  %v754 = vadd.f32 %v657, %v753
  %v755 = vpop.f32.mrb[0].mxu0
  %v756 = vpop.f32.mrb[0].mxu0
  %v757 = vadd.f32 %v660, %v756
  %v758 = vpop.f32.mrb[0].mxu0
  %759 = vmatprep.mubr.bf16.mxu0 %v301
  %760 = vmatmul.mubr.bf16.gmra.mrb[0].mxu0 %v300
  %v761 = vpop.f32.mrb[0].mxu0
  %v762 = vadd.f32 %v665, %v761
  %v763 = vpop.f32.mrb[0].mxu0
  %v764 = vpop.f32.mrb[0].mxu0
  %v765 = vadd.f32 %v668, %v764
  %v766 = vpop.f32.mrb[0].mxu0
  %767 = vmatprep.mubr.bf16.mxu0 %v306
  %768 = vmatmul.mubr.bf16.gmra.mrb[0].mxu0 %v305
  %v769 = vpop.f32.mrb[0].mxu0
  %v770 = vadd.f32 %v673, %v769
  %v771 = vpop.f32.mrb[0].mxu0
  %v772 = vpop.f32.mrb[0].mxu0
  %v773 = vadd.f32 %v676, %v772
  %v774 = vpop.f32.mrb[0].mxu0
  %775 = vmatprep.mubr.bf16.mxu0 %v311
  %776 = vmatmul.mubr.bf16.gmra.mrb[0].mxu0 %v310
  %v777 = vpop.f32.mrb[0].mxu0
  %v778 = vadd.f32 %v681, %v777
  %v779 = vpop.f32.mrb[0].mxu0
  %v780 = vpop.f32.mrb[0].mxu0
  %v781 = vadd.f32 %v684, %v780
  %v782 = vpop.f32.mrb[0].mxu0
  %783 = vmatprep.mubr.bf16.mxu0 %v316
  %784 = vmatmul.mubr.bf16.gmra.mrb[0].mxu0 %v315
  %v785 = vpop.f32.mrb[0].mxu0
  %v786 = vadd.f32 %v689, %v785
  %v787 = vpop.f32.mrb[0].mxu0
  %v788 = vpop.f32.mrb[0].mxu0
  %v789 = vadd.f32 %v692, %v788
  %v790 = vpop.f32.mrb[0].mxu0
  %791 = vdwg.mxu0
  %792 = vmatprep.subr.bf16.mxu0 0
  %793 = vmatpush1.bf16.msra.mxu0 %v550
  %794 = vmatprep.subr.bf16.mxu0 0
  %795 = vmatpush1.bf16.msra.mxu0 %v551
  %796 = vmatprep.subr.bf16.mxu0 0
  %797 = vmatpush1.bf16.msra.mxu0 %v552
  %798 = vmatprep.subr.bf16.mxu0 0
  %799 = vmatpush1.bf16.msra.mxu0 %v553
  %800 = vmatprep.subr.bf16.mxu0 0
  %801 = vmatpush1.bf16.msra.mxu0 %v554
  %802 = vmatprep.subr.bf16.mxu0 0
  %803 = vmatpush1.bf16.msra.mxu0 %v555
  %804 = vmatprep.subr.bf16.mxu0 0
  %805 = vmatpush1.bf16.msra.mxu0 %v556
  %806 = vmatprep.subr.bf16.mxu0 0
  %807 = vmatpush1.bf16.msra.mxu0 %v557
  %808 = vmatprep.subr.bf16.mxu0 0
  %809 = vmatpush1.bf16.msra.mxu0 0
  %810 = vmatprep.subr.bf16.mxu0 0
  %811 = vmatpush1.bf16.msra.mxu0 0
  %812 = vmatprep.subr.bf16.mxu0 0
  %813 = vmatpush1.bf16.msra.mxu0 0
  %814 = vmatprep.subr.bf16.mxu0 0
  %815 = vmatpush1.bf16.msra.mxu0 0
  %816 = vmatprep.subr.bf16.mxu0 0
  %817 = vmatpush1.bf16.msra.mxu0 0
  %818 = vmatprep.subr.bf16.mxu0 0
  %819 = vmatpush1.bf16.msra.mxu0 0
  %820 = vmatprep.subr.bf16.mxu0 0
  %821 = vmatpush1.bf16.msra.mxu0 0
  %822 = vmatprep.subr.bf16.mxu0 0
  %823 = vmatpush1.bf16.msra.mxu0 0
  %824 = vmatprep.mubr.bf16.mxu0 0
  %825 = vmatmul.mubr.bf16.gmra.mrb[0].mxu0 %v282
  %v826 = vpop.f32.mrb[0].mxu0
  %v827 = vadd.f32 %v730, %v826
  %v828 = vpop.f32.mrb[0].mxu0
  %v829 = vpop.f32.mrb[0].mxu0
  %v830 = vadd.f32 %v733, %v829
  %v831 = vpop.f32.mrb[0].mxu0
  %832 = vmatprep.mubr.bf16.mxu0 0
  %833 = vmatmul.mubr.bf16.gmra.mrb[0].mxu0 %v287
  %v834 = vpop.f32.mrb[0].mxu0
  %v835 = vadd.f32 %v738, %v834
  %v836 = vpop.f32.mrb[0].mxu0
  %v837 = vpop.f32.mrb[0].mxu0
  %v838 = vadd.f32 %v741, %v837
  %v839 = vpop.f32.mrb[0].mxu0
  %840 = vmatprep.mubr.bf16.mxu0 0
  %841 = vmatmul.mubr.bf16.gmra.mrb[0].mxu0 %v292
  %v842 = vpop.f32.mrb[0].mxu0
  %v843 = vadd.f32 %v746, %v842
  %v844 = vpop.f32.mrb[0].mxu0
  %v845 = vpop.f32.mrb[0].mxu0
  %v846 = vadd.f32 %v749, %v845
  %v847 = vpop.f32.mrb[0].mxu0
  %848 = vmatprep.mubr.bf16.mxu0 0
  %849 = vmatmul.mubr.bf16.gmra.mrb[0].mxu0 %v297
  %v850 = vpop.f32.mrb[0].mxu0
  %v851 = vadd.f32 %v754, %v850
  %v852 = vpop.f32.mrb[0].mxu0
  %v853 = vpop.f32.mrb[0].mxu0
  %v854 = vadd.f32 %v757, %v853
  %v855 = vpop.f32.mrb[0].mxu0
  %856 = vmatprep.mubr.bf16.mxu0 0
  %857 = vmatmul.mubr.bf16.gmra.mrb[0].mxu0 %v302
  %v858 = vpop.f32.mrb[0].mxu0
  %v859 = vadd.f32 %v762, %v858
  %v860 = vpop.f32.mrb[0].mxu0
  %v861 = vpop.f32.mrb[0].mxu0
  %v862 = vadd.f32 %v765, %v861
  %v863 = vpop.f32.mrb[0].mxu0
  %864 = vmatprep.mubr.bf16.mxu0 0
  %865 = vmatmul.mubr.bf16.gmra.mrb[0].mxu0 %v307
  %v866 = vpop.f32.mrb[0].mxu0
  %v867 = vadd.f32 %v770, %v866
  %v868 = vpop.f32.mrb[0].mxu0
  %v869 = vpop.f32.mrb[0].mxu0
  %v870 = vadd.f32 %v773, %v869
  %v871 = vpop.f32.mrb[0].mxu0
  %872 = vmatprep.mubr.bf16.mxu0 0
  %873 = vmatmul.mubr.bf16.gmra.mrb[0].mxu0 %v312
  %v874 = vpop.f32.mrb[0].mxu0
  %v875 = vadd.f32 %v778, %v874
  %v876 = vpop.f32.mrb[0].mxu0
  %v877 = vpop.f32.mrb[0].mxu0
  %v878 = vadd.f32 %v781, %v877
  %v879 = vpop.f32.mrb[0].mxu0
  %880 = vmatprep.mubr.bf16.mxu0 0
  %881 = vmatmul.mubr.bf16.gmra.mrb[0].mxu0 %v317
  %v882 = vpop.f32.mrb[0].mxu0
  %v883 = vadd.f32 %v786, %v882
  %v884 = vpop.f32.mrb[0].mxu0
  %v885 = vpop.f32.mrb[0].mxu0
  %v886 = vadd.f32 %v789, %v885
  %v887 = vpop.f32.mrb[0].mxu0
  %888 = vdwg.mxu0
  %v889 = vxor.u32 %v827, 2147483648
  %v890 = vxor.u32 %v830, 2147483648
  %v891 = vxor.u32 %v835, 2147483648
  %v892 = vxor.u32 %v838, 2147483648
  %v893 = vxor.u32 %v843, 2147483648
  %v894 = vxor.u32 %v846, 2147483648
  %v895 = vxor.u32 %v851, 2147483648
  %v896 = vxor.u32 %v854, 2147483648
  %v897 = vxor.u32 %v859, 2147483648
  %v898 = vxor.u32 %v862, 2147483648
  %v899 = vxor.u32 %v867, 2147483648
  %v900 = vxor.u32 %v870, 2147483648
  %v901 = vxor.u32 %v875, 2147483648
  %v902 = vxor.u32 %v878, 2147483648
  %v903 = vxor.u32 %v883, 2147483648
  %v904 = vxor.u32 %v886, 2147483648
  %v905 = vmul.f32 %v889, 1.442695
  %v906 = vpow.pop %v905
  %v907 = vmul.f32 %v890, 1.442695
  %v908 = vpow.pop %v907
  %v909 = vmul.f32 %v891, 1.442695
  %v910 = vpow.pop %v909
  %v911 = vmul.f32 %v892, 1.442695
  %v912 = vpow.pop %v911
  %v913 = vmul.f32 %v893, 1.442695
  %v914 = vpow.pop %v913
  %v915 = vmul.f32 %v894, 1.442695
  %v916 = vpow.pop %v915
  %v917 = vmul.f32 %v895, 1.442695
  %v918 = vpow.pop %v917
  %v919 = vmul.f32 %v896, 1.442695
  %v920 = vpow.pop %v919
  %v921 = vmul.f32 %v897, 1.442695
  %v922 = vpow.pop %v921
  %v923 = vmul.f32 %v898, 1.442695
  %v924 = vpow.pop %v923
  %v925 = vmul.f32 %v899, 1.442695
  %v926 = vpow.pop %v925
  %v927 = vmul.f32 %v900, 1.442695
  %v928 = vpow.pop %v927
  %v929 = vmul.f32 %v901, 1.442695
  %v930 = vpow.pop %v929
  %v931 = vmul.f32 %v902, 1.442695
  %v932 = vpow.pop %v931
  %v933 = vmul.f32 %v903, 1.442695
  %v934 = vpow.pop %v933
  %v935 = vmul.f32 %v904, 1.442695
  %v936 = vpow.pop %v935
  %v937 = vadd.f32 %v906, 1.0
  %v938 = vadd.f32 %v908, 1.0
  %v939 = vadd.f32 %v910, 1.0
  %v940 = vadd.f32 %v912, 1.0
  %v941 = vadd.f32 %v914, 1.0
  %v942 = vadd.f32 %v916, 1.0
  %v943 = vadd.f32 %v918, 1.0
  %v944 = vadd.f32 %v920, 1.0
  %v945 = vadd.f32 %v922, 1.0
  %v946 = vadd.f32 %v924, 1.0
  %v947 = vadd.f32 %v926, 1.0
  %v948 = vadd.f32 %v928, 1.0
  %v949 = vadd.f32 %v930, 1.0
  %v950 = vadd.f32 %v932, 1.0
  %v951 = vadd.f32 %v934, 1.0
  %v952 = vadd.f32 %v936, 1.0
  %v953 = vrcp.pop %v937
  %v954 = vmul.f32 1.0, %v953
  %v955 = vrcp.pop %v938
  %v956 = vmul.f32 1.0, %v955
  %v957 = vrcp.pop %v939
  %v958 = vmul.f32 1.0, %v957
  %v959 = vrcp.pop %v940
  %v960 = vmul.f32 1.0, %v959
  %v961 = vrcp.pop %v941
  %v962 = vmul.f32 1.0, %v961
  %v963 = vrcp.pop %v942
  %v964 = vmul.f32 1.0, %v963
  %v965 = vrcp.pop %v943
  %v966 = vmul.f32 1.0, %v965
  %v967 = vrcp.pop %v944
  %v968 = vmul.f32 1.0, %v967
  %v969 = vrcp.pop %v945
  %v970 = vmul.f32 1.0, %v969
  %v971 = vrcp.pop %v946
  %v972 = vmul.f32 1.0, %v971
  %v973 = vrcp.pop %v947
  %v974 = vmul.f32 1.0, %v973
  %v975 = vrcp.pop %v948
  %v976 = vmul.f32 1.0, %v975
  %v977 = vrcp.pop %v949
  %v978 = vmul.f32 1.0, %v977
  %v979 = vrcp.pop %v950
  %v980 = vmul.f32 1.0, %v979
  %v981 = vrcp.pop %v951
  %v982 = vmul.f32 1.0, %v981
  %v983 = vrcp.pop %v952
  %v984 = vmul.f32 1.0, %v983
  %v985 = vmul.f32 %v827, %v954
  %v986 = vmul.f32 %v830, %v956
  %v987 = vmul.f32 %v835, %v958
  %v988 = vmul.f32 %v838, %v960
  %v989 = vmul.f32 %v843, %v962
  %v990 = vmul.f32 %v846, %v964
  %v991 = vmul.f32 %v851, %v966
  %v992 = vmul.f32 %v854, %v968
  %v993 = vmul.f32 %v859, %v970
  %v994 = vmul.f32 %v862, %v972
  %v995 = vmul.f32 %v867, %v974
  %v996 = vmul.f32 %v870, %v976
  %v997 = vmul.f32 %v875, %v978
  %v998 = vmul.f32 %v878, %v980
  %v999 = vmul.f32 %v883, %v982
  %v1000 = vmul.f32 %v886, %v984
  %1001 = vst [vmem:[%s3] sm:$0xff] %v985
  %1002 = vst [vmem:[%s3 + $0x8] sm:$0xff] %v986
  %1003 = vst [vmem:[%s3 + $0x10] sm:$0xff] %v987
  %1004 = vst [vmem:[%s3 + $0x18] sm:$0xff] %v988
  %1005 = vst [vmem:[%s3 + $0x20] sm:$0xff] %v989
  %1006 = vst [vmem:[%s3 + $0x28] sm:$0xff] %v990
  %1007 = vst [vmem:[%s3 + $0x30] sm:$0xff] %v991
  %1008 = vst [vmem:[%s3 + $0x38] sm:$0xff] %v992
  %1009 = vst [vmem:[%s3 + $0x40] sm:$0xff] %v993
  %1010 = vst [vmem:[%s3 + $0x48] sm:$0xff] %v994
  %1011 = vst [vmem:[%s3 + $0x50] sm:$0xff] %v995
  %1012 = vst [vmem:[%s3 + $0x58] sm:$0xff] %v996
  %1013 = vst [vmem:[%s3 + $0x60] sm:$0xff] %v997
  %1014 = vst [vmem:[%s3 + $0x68] sm:$0xff] %v998
  %1015 = vst [vmem:[%s3 + $0x70] sm:$0xff] %v999
  %1016 = vst [vmem:[%s3 + $0x78] sm:$0xff] %v1000
  // Predicated region
  $region14: #{_lambda_.37} parent=0 // pred_check
    _
  $region15: #{_lambda_.37} parent=0 // pred_check_branch
    %1018 = sbr.rel (0) target = $region17
  $region16: #{_lambda_.37} parent=0 // pred_region
    _
  $region17: #{_lambda_.37} parent=0 // pred_fallthru
    _
  // Predicated region
  $region18: #{_lambda_.37} parent=0 // pred_check
    _
  $region19: #{_lambda_.37} parent=0 // pred_check_branch
    %1020 = sbr.rel (0) target = $region21
  $region20: #{_lambda_.37} parent=0 // pred_region
    _
  $region21: #{_lambda_.37} parent=0 // pred_fallthru
    _

// kernel: _lambda_.57
$region0: #{_lambda_.57}
  #allocation0 [shape = 'u32[]', space=smem, size = 0x4, offset = 0x4, fixed_abs, tag = 'smem constant byte address 0x4 - core index']
  #allocation1 [shape = 'u32[144,128]{1,0:T(1,128)}', space=vmem, size = 0x12000, scoped, tag = 'internal scratch']
  %s0 = inlined_call_operand.vmem [shape: bf16[128,128], index: 0, kind: input, shape index: {}]
  %s1 = inlined_call_operand.vmem [shape: bf16[128,128], index: 1, kind: input, shape index: {}]
  %s2 = inlined_call_operand.vmem [shape: f32[1,128], index: 2, kind: input, shape index: {}]
  %s3 = inlined_call_operand.vmem [shape: f32[128,128], index: 3, kind: output, shape index: {}]
  %s4 = sld [smem:[#allocation0]]
  $region22: #{_lambda_.57} parent=0
    _
  %s6 = ssub.s32 1, %s4
  %s7 = scalar_select 0, %s6, %s4
  // Predicated region
  $region2: #{_lambda_.57} parent=0 // pred_check
    _
  $region3: #{_lambda_.57} parent=0 // pred_check_branch
    %9 = sbr.rel (0) target = $region5
  $region4: #{_lambda_.57} parent=0 // pred_region
    _
  $region5: #{_lambda_.57} parent=0 // pred_fallthru
    _
  // Predicated region
  $region6: #{_lambda_.57} parent=0 // pred_check
    _
  $region7: #{_lambda_.57} parent=0 // pred_check_branch
    %11 = sbr.rel (0) target = $region9
  $region8: #{_lambda_.57} parent=0 // pred_region
    _
  $region9: #{_lambda_.57} parent=0 // pred_fallthru
    _
  // Predicated region
  $region10: #{_lambda_.57} parent=0 // pred_check
    _
  $region11: #{_lambda_.57} parent=0 // pred_check_branch
    %13 = sbr.rel (0) target = $region13
  $region12: #{_lambda_.57} parent=0 // pred_region
    _
  $region13: #{_lambda_.57} parent=0 // pred_fallthru
    _
  %v15 = vld [vmem:[%s0] sm:$0xf]
  %v16 = vld [vmem:[%s0 + $0x4] sm:$0xf]
  %v17 = vld [vmem:[%s0 + $0x8] sm:$0xf]
  %v18 = vld [vmem:[%s0 + $0xc] sm:$0xf]
  %v19 = vld [vmem:[%s0 + $0x10] sm:$0xf]
  %v20 = vld [vmem:[%s0 + $0x14] sm:$0xf]
  %v21 = vld [vmem:[%s0 + $0x18] sm:$0xf]
  %v22 = vld [vmem:[%s0 + $0x1c] sm:$0xf]
  %v23 = vld [vmem:[%s0 + $0x20] sm:$0xf]
  %v24 = vld [vmem:[%s0 + $0x24] sm:$0xf]
  %v25 = vld [vmem:[%s0 + $0x28] sm:$0xf]
  %v26 = vld [vmem:[%s0 + $0x2c] sm:$0xf]
  %v27 = vld [vmem:[%s0 + $0x30] sm:$0xf]
  %v28 = vld [vmem:[%s0 + $0x34] sm:$0xf]
  %v29 = vld [vmem:[%s0 + $0x38] sm:$0xf]
  %v30 = vld [vmem:[%s0 + $0x3c] sm:$0xf]
  %v31 = vld [vmem:[%s1] sm:$0xf]
  %v32 = vld [vmem:[%s1 + $0x4] sm:$0xf]
  %v33 = vld [vmem:[%s1 + $0x8] sm:$0xf]
  %v34 = vld [vmem:[%s1 + $0xc] sm:$0xf]
  %v35 = vld [vmem:[%s1 + $0x10] sm:$0xf]
  %v36 = vld [vmem:[%s1 + $0x14] sm:$0xf]
  %v37 = vld [vmem:[%s1 + $0x18] sm:$0xf]
  %v38 = vld [vmem:[%s1 + $0x1c] sm:$0xf]
  %v39 = vld [vmem:[%s1 + $0x20] sm:$0xf]
  %v40 = vld [vmem:[%s1 + $0x24] sm:$0xf]
  %v41 = vld [vmem:[%s1 + $0x28] sm:$0xf]
  %v42 = vld [vmem:[%s1 + $0x2c] sm:$0xf]
  %v43 = vld [vmem:[%s1 + $0x30] sm:$0xf]
  %v44 = vld [vmem:[%s1 + $0x34] sm:$0xf]
  %v45 = vld [vmem:[%s1 + $0x38] sm:$0xf]
  %v46 = vld [vmem:[%s1 + $0x3c] sm:$0xf]
  %v47 = vld [vmem:[%s2] sm:$0x1]
  %v49 = vlaneseq
  %v50 = vshrl.u32 %v49, 7
  %v51 = vsub.s32 0, %v50
  %v52 = vrot.slane %v47, %v51
  %v70 = vunpack.c.l.b16 %v15
  %v71 = vunpack.c.l.b16 %v16
  %v72 = vunpack.c.l.b16 %v17
  %v73 = vunpack.c.l.b16 %v18
  %v74 = vunpack.c.l.b16 %v19
  %v75 = vunpack.c.l.b16 %v20
  %v76 = vunpack.c.l.b16 %v21
  %v77 = vunpack.c.l.b16 %v22
  %v78 = vunpack.c.l.b16 %v23
  %v79 = vunpack.c.l.b16 %v24
  %v80 = vunpack.c.l.b16 %v25
  %v81 = vunpack.c.l.b16 %v26
  %v82 = vunpack.c.l.b16 %v27
  %v83 = vunpack.c.l.b16 %v28
  %v84 = vunpack.c.l.b16 %v29
  %v85 = vunpack.c.l.b16 %v30
  %v86 = vpack.c.b16 %v71, %v70
  %v87 = vpack.c.b16 %v73, %v72
  %v88 = vpack.c.b16 %v75, %v74
  %v89 = vpack.c.b16 %v77, %v76
  %v90 = vpack.c.b16 %v79, %v78
  %v91 = vpack.c.b16 %v81, %v80
  %v92 = vpack.c.b16 %v83, %v82
  %v93 = vpack.c.b16 %v85, %v84
  %v118 = vunpack.c.l.b16 %v31
  %v119 = vunpack.c.l.b16 %v32
  %v120 = vunpack.c.l.b16 %v33
  %v121 = vunpack.c.l.b16 %v34
  %v122 = vunpack.c.l.b16 %v35
  %v123 = vunpack.c.l.b16 %v36
  %v124 = vunpack.c.l.b16 %v37
  %v125 = vunpack.c.l.b16 %v38
  %v126 = vunpack.c.l.b16 %v39
  %v127 = vunpack.c.l.b16 %v40
  %v128 = vunpack.c.l.b16 %v41
  %v129 = vunpack.c.l.b16 %v42
  %v130 = vunpack.c.l.b16 %v43
  %v131 = vunpack.c.l.b16 %v44
  %v132 = vunpack.c.l.b16 %v45
  %v133 = vunpack.c.l.b16 %v46
  %v134 = vpack.c.b16 %v119, %v118
  %v135 = vpack.c.b16 %v121, %v120
  %v136 = vpack.c.b16 %v123, %v122
  %v137 = vpack.c.b16 %v125, %v124
  %v138 = vpack.c.b16 %v127, %v126
  %v139 = vpack.c.b16 %v129, %v128
  %v140 = vpack.c.b16 %v131, %v130
  %v141 = vpack.c.b16 %v133, %v132
  %150 = vmatprep.subr.bf16.mxu0 0
  %151 = vmatpush1.bf16.msra.mxu0 %v134
  %152 = vmatprep.subr.bf16.mxu0 0
  %153 = vmatpush1.bf16.msra.mxu0 %v135
  %154 = vmatprep.subr.bf16.mxu0 0
  %155 = vmatpush1.bf16.msra.mxu0 %v136
  %156 = vmatprep.subr.bf16.mxu0 0
  %157 = vmatpush1.bf16.msra.mxu0 %v137
  %158 = vmatprep.subr.bf16.mxu0 0
  %159 = vmatpush1.bf16.msra.mxu0 %v138
  %160 = vmatprep.subr.bf16.mxu0 0
  %161 = vmatpush1.bf16.msra.mxu0 %v139
  %162 = vmatprep.subr.bf16.mxu0 0
  %163 = vmatpush1.bf16.msra.mxu0 %v140
  %164 = vmatprep.subr.bf16.mxu0 0
  %165 = vmatpush1.bf16.msra.mxu0 %v141
  %166 = vmatprep.subr.bf16.mxu0 0
  %167 = vmatpush1.bf16.msra.mxu0 0
  %168 = vmatprep.subr.bf16.mxu0 0
  %169 = vmatpush1.bf16.msra.mxu0 0
  %170 = vmatprep.subr.bf16.mxu0 0
  %171 = vmatpush1.bf16.msra.mxu0 0
  %172 = vmatprep.subr.bf16.mxu0 0
  %173 = vmatpush1.bf16.msra.mxu0 0
  %174 = vmatprep.subr.bf16.mxu0 0
  %175 = vmatpush1.bf16.msra.mxu0 0
  %176 = vmatprep.subr.bf16.mxu0 0
  %177 = vmatpush1.bf16.msra.mxu0 0
  %178 = vmatprep.subr.bf16.mxu0 0
  %179 = vmatpush1.bf16.msra.mxu0 0
  %180 = vmatprep.subr.bf16.mxu0 0
  %181 = vmatpush1.bf16.msra.mxu0 0
  %182 = vmatprep.mubr.bf16.mxu0 0
  %183 = vmatmul.mubr.bf16.gmra.mrb[0].mxu0 %v86
  %v184 = vpop.f32.mrb[0].mxu0
  %v185 = vadd.f32 %v52, %v184
  %v186 = vpop.f32.mrb[0].mxu0
  %v187 = vpop.f32.mrb[0].mxu0
  %v188 = vadd.f32 %v52, %v187
  %v189 = vpop.f32.mrb[0].mxu0
  %190 = vmatprep.mubr.bf16.mxu0 0
  %191 = vmatmul.mubr.bf16.gmra.mrb[0].mxu0 %v87
  %v192 = vpop.f32.mrb[0].mxu0
  %v193 = vadd.f32 %v52, %v192
  %v194 = vpop.f32.mrb[0].mxu0
  %v195 = vpop.f32.mrb[0].mxu0
  %v196 = vadd.f32 %v52, %v195
  %v197 = vpop.f32.mrb[0].mxu0
  %198 = vmatprep.mubr.bf16.mxu0 0
  %199 = vmatmul.mubr.bf16.gmra.mrb[0].mxu0 %v88
  %v200 = vpop.f32.mrb[0].mxu0
  %v201 = vadd.f32 %v52, %v200
  %v202 = vpop.f32.mrb[0].mxu0
  %v203 = vpop.f32.mrb[0].mxu0
  %v204 = vadd.f32 %v52, %v203
  %v205 = vpop.f32.mrb[0].mxu0
  %206 = vmatprep.mubr.bf16.mxu0 0
  %207 = vmatmul.mubr.bf16.gmra.mrb[0].mxu0 %v89
  %v208 = vpop.f32.mrb[0].mxu0
  %v209 = vadd.f32 %v52, %v208
  %v210 = vpop.f32.mrb[0].mxu0
  %v211 = vpop.f32.mrb[0].mxu0
  %v212 = vadd.f32 %v52, %v211
  %v213 = vpop.f32.mrb[0].mxu0
  %214 = vmatprep.mubr.bf16.mxu0 0
  %215 = vmatmul.mubr.bf16.gmra.mrb[0].mxu0 %v90
  %v216 = vpop.f32.mrb[0].mxu0
  %v217 = vadd.f32 %v52, %v216
  %v218 = vpop.f32.mrb[0].mxu0
  %v219 = vpop.f32.mrb[0].mxu0
  %v220 = vadd.f32 %v52, %v219
  %v221 = vpop.f32.mrb[0].mxu0
  %222 = vmatprep.mubr.bf16.mxu0 0
  %223 = vmatmul.mubr.bf16.gmra.mrb[0].mxu0 %v91
  %v224 = vpop.f32.mrb[0].mxu0
  %v225 = vadd.f32 %v52, %v224
  %v226 = vpop.f32.mrb[0].mxu0
  %v227 = vpop.f32.mrb[0].mxu0
  %v228 = vadd.f32 %v52, %v227
  %v229 = vpop.f32.mrb[0].mxu0
  %230 = vmatprep.mubr.bf16.mxu0 0
  %231 = vmatmul.mubr.bf16.gmra.mrb[0].mxu0 %v92
  %v232 = vpop.f32.mrb[0].mxu0
  %v233 = vadd.f32 %v52, %v232
  %v234 = vpop.f32.mrb[0].mxu0
  %v235 = vpop.f32.mrb[0].mxu0
  %v236 = vadd.f32 %v52, %v235
  %v237 = vpop.f32.mrb[0].mxu0
  %238 = vmatprep.mubr.bf16.mxu0 0
  %239 = vmatmul.mubr.bf16.gmra.mrb[0].mxu0 %v93
  %v240 = vpop.f32.mrb[0].mxu0
  %v241 = vadd.f32 %v52, %v240
  %v242 = vpop.f32.mrb[0].mxu0
  %v243 = vpop.f32.mrb[0].mxu0
  %v244 = vadd.f32 %v52, %v243
  %v245 = vpop.f32.mrb[0].mxu0
  %246 = vdwg.mxu0
  %v247 = vlaneseq
  %v248 = vand.u32 %v247, 127
  %vm249 = vcmp.ge.s32.totalorder %v248, 4
  %v250 = vxor.u32 %v185, 2147483648
  %v251 = vxor.u32 %v188, 2147483648
  %v252 = vxor.u32 %v193, 2147483648
  %v253 = vxor.u32 %v196, 2147483648
  %v254 = vxor.u32 %v201, 2147483648
  %v255 = vxor.u32 %v204, 2147483648
  %v256 = vxor.u32 %v209, 2147483648
  %v257 = vxor.u32 %v212, 2147483648
  %v258 = vxor.u32 %v217, 2147483648
  %v259 = vxor.u32 %v220, 2147483648
  %v260 = vxor.u32 %v225, 2147483648
  %v261 = vxor.u32 %v228, 2147483648
  %v262 = vxor.u32 %v233, 2147483648
  %v263 = vxor.u32 %v236, 2147483648
  %v264 = vxor.u32 %v241, 2147483648
  %v265 = vxor.u32 %v244, 2147483648
  %v266 = vmul.f32 %v250, 1.442695
  %v267 = vpow.pop %v266
  %v268 = vmul.f32 %v251, 1.442695
  %v269 = vpow.pop %v268
  %v270 = vmul.f32 %v252, 1.442695
  %v271 = vpow.pop %v270
  %v272 = vmul.f32 %v253, 1.442695
  %v273 = vpow.pop %v272
  %v274 = vmul.f32 %v254, 1.442695
  %v275 = vpow.pop %v274
  %v276 = vmul.f32 %v255, 1.442695
  %v277 = vpow.pop %v276
  %v278 = vmul.f32 %v256, 1.442695
  %v279 = vpow.pop %v278
  %v280 = vmul.f32 %v257, 1.442695
  %v281 = vpow.pop %v280
  %v282 = vmul.f32 %v258, 1.442695
  %v283 = vpow.pop %v282
  %v284 = vmul.f32 %v259, 1.442695
  %v285 = vpow.pop %v284
  %v286 = vmul.f32 %v260, 1.442695
  %v287 = vpow.pop %v286
  %v288 = vmul.f32 %v261, 1.442695
  %v289 = vpow.pop %v288
  %v290 = vmul.f32 %v262, 1.442695
  %v291 = vpow.pop %v290
  %v292 = vmul.f32 %v263, 1.442695
  %v293 = vpow.pop %v292
  %v294 = vmul.f32 %v264, 1.442695
  %v295 = vpow.pop %v294
  %v296 = vmul.f32 %v265, 1.442695
  %v297 = vpow.pop %v296
  %v298 = vadd.f32 %v267, 1.0
  %v299 = vadd.f32 %v269, 1.0
  %v300 = vadd.f32 %v271, 1.0
  %v301 = vadd.f32 %v273, 1.0
  %v302 = vadd.f32 %v275, 1.0
  %v303 = vadd.f32 %v277, 1.0
  %v304 = vadd.f32 %v279, 1.0
  %v305 = vadd.f32 %v281, 1.0
  %v306 = vadd.f32 %v283, 1.0
  %v307 = vadd.f32 %v285, 1.0
  %v308 = vadd.f32 %v287, 1.0
  %v309 = vadd.f32 %v289, 1.0
  %v310 = vadd.f32 %v291, 1.0
  %v311 = vadd.f32 %v293, 1.0
  %v312 = vadd.f32 %v295, 1.0
  %v313 = vadd.f32 %v297, 1.0
  %v314 = vrcp.pop %v298
  %v315 = vmul.f32 1.0, %v314
  %v316 = vrcp.pop %v299
  %v317 = vmul.f32 1.0, %v316
  %v318 = vrcp.pop %v300
  %v319 = vmul.f32 1.0, %v318
  %v320 = vrcp.pop %v301
  %v321 = vmul.f32 1.0, %v320
  %v322 = vrcp.pop %v302
  %v323 = vmul.f32 1.0, %v322
  %v324 = vrcp.pop %v303
  %v325 = vmul.f32 1.0, %v324
  %v326 = vrcp.pop %v304
  %v327 = vmul.f32 1.0, %v326
  %v328 = vrcp.pop %v305
  %v329 = vmul.f32 1.0, %v328
  %v330 = vrcp.pop %v306
  %v331 = vmul.f32 1.0, %v330
  %v332 = vrcp.pop %v307
  %v333 = vmul.f32 1.0, %v332
  %v334 = vrcp.pop %v308
  %v335 = vmul.f32 1.0, %v334
  %v336 = vrcp.pop %v309
  %v337 = vmul.f32 1.0, %v336
  %v338 = vrcp.pop %v310
  %v339 = vmul.f32 1.0, %v338
  %v340 = vrcp.pop %v311
  %v341 = vmul.f32 1.0, %v340
  %v342 = vrcp.pop %v312
  %v343 = vmul.f32 1.0, %v342
  %v344 = vrcp.pop %v313
  %v345 = vmul.f32 1.0, %v344
  %v346 = vsel %vm249, %v315, %v185
  %v347 = vsel %vm249, %v317, %v188
  %v348 = vsel %vm249, %v319, %v193
  %v349 = vsel %vm249, %v321, %v196
  %v350 = vsel %vm249, %v323, %v201
  %v351 = vsel %vm249, %v325, %v204
  %v352 = vsel %vm249, %v327, %v209
  %v353 = vsel %vm249, %v329, %v212
  %v354 = vsel %vm249, %v331, %v217
  %v355 = vsel %vm249, %v333, %v220
  %v356 = vsel %vm249, %v335, %v225
  %v357 = vsel %vm249, %v337, %v228
  %v358 = vsel %vm249, %v339, %v233
  %v359 = vsel %vm249, %v341, %v236
  %v360 = vsel %vm249, %v343, %v241
  %v361 = vsel %vm249, %v345, %v244
  %362 = vst [vmem:[%s3] sm:$0xff] %v346
  %363 = vst [vmem:[%s3 + $0x8] sm:$0xff] %v347
  %364 = vst [vmem:[%s3 + $0x10] sm:$0xff] %v348
  %365 = vst [vmem:[%s3 + $0x18] sm:$0xff] %v349
  %366 = vst [vmem:[%s3 + $0x20] sm:$0xff] %v350
  %367 = vst [vmem:[%s3 + $0x28] sm:$0xff] %v351
  %368 = vst [vmem:[%s3 + $0x30] sm:$0xff] %v352
  %369 = vst [vmem:[%s3 + $0x38] sm:$0xff] %v353
  %370 = vst [vmem:[%s3 + $0x40] sm:$0xff] %v354
  %371 = vst [vmem:[%s3 + $0x48] sm:$0xff] %v355
  %372 = vst [vmem:[%s3 + $0x50] sm:$0xff] %v356
  %373 = vst [vmem:[%s3 + $0x58] sm:$0xff] %v357
  %374 = vst [vmem:[%s3 + $0x60] sm:$0xff] %v358
  %375 = vst [vmem:[%s3 + $0x68] sm:$0xff] %v359
  %376 = vst [vmem:[%s3 + $0x70] sm:$0xff] %v360
  %377 = vst [vmem:[%s3 + $0x78] sm:$0xff] %v361
  // Predicated region
  $region14: #{_lambda_.57} parent=0 // pred_check
    _
  $region15: #{_lambda_.57} parent=0 // pred_check_branch
    %379 = sbr.rel (0) target = $region17
  $region16: #{_lambda_.57} parent=0 // pred_region
    _
  $region17: #{_lambda_.57} parent=0 // pred_fallthru
    _
  // Predicated region
  $region18: #{_lambda_.57} parent=0 // pred_check
    _
  $region19: #{_lambda_.57} parent=0 // pred_check_branch
    %381 = sbr.rel (0) target = $region21
  $region20: #{_lambda_.57} parent=0 // pred_region
    _
  $region21: #{_lambda_.57} parent=0 // pred_fallthru
    _

</llo_original>
